<compile_context>
chip_gen: v7x
topology: tpu7x:2x2x1
jax: 0.10.0
libtpu: 0.0.40
codegen_flags: <defaults>
</compile_context>

<pallas_src>
import functools

import jax
import jax.numpy as jnp
from jax.experimental import pallas as pl
from jax.experimental.pallas import tpu as pltpu

_HIGHEST = jax.lax.Precision.HIGHEST


def _ffm_kernel(aux_ref, main_ref,
                w1a_ref, w1b_ref, b1_ref,
                w2_ref, b2_ref, w3_ref, b3_ref,
                w4_ref, b4_ref, w5_ref, b5_ref,
                out_ref):
    # aux_ref:  (Ca, P)   main_ref: (Cm, P)   out_ref: (Cm, P), P = H*W
    aux = aux_ref[...].astype(jnp.float32)
    mn = main_ref[...].astype(jnp.float32)

    dot = functools.partial(jnp.dot, precision=_HIGHEST,
                            preferred_element_type=jnp.float32)

    # basic_block: Conv1x1 (+ folded BN) + ReLU, concat split into two matmuls.
    pre = dot(w1a_ref[...], aux) + dot(w1b_ref[...], mn) + b1_ref[...]
    fusion = jnp.maximum(pre, 0.0)                                # (Co, P)

    # local attention branch (per pixel).
    h = jnp.maximum(dot(w2_ref[...], fusion) + b2_ref[...], 0.0)  # (Cmid, P)
    local = dot(w3_ref[...], h) + b3_ref[...]                     # (Co, P)

    # global attention branch (global average pool -> tiny matmuls).
    g = jnp.mean(fusion, axis=1, keepdims=True)                   # (Co, 1)
    hg = jnp.maximum(dot(w4_ref[...], g) + b4_ref[...], 0.0)      # (Cmid, 1)
    gatt = dot(w5_ref[...], hg) + b5_ref[...]                     # (Co, 1)

    z = local + gatt
    att = 1.0 / (1.0 + jnp.exp(-z))                               # sigmoid
    out_ref[...] = (mn + fusion * att).astype(out_ref.dtype)


def _fold_bn(w, gamma, beta, mean, var, eps):
    """Fold inference-mode BatchNorm into a bias-free 1x1 conv weight."""
    scale = gamma / jnp.sqrt(var + eps)
    w_f = w * scale[:, None]
    b_f = (beta - scale * mean)[:, None]          # (C_out, 1)
    return w_f, b_f


def _full_spec(arr):
    nd = arr.ndim
    return pl.BlockSpec(arr.shape, lambda *_: (0,) * nd)


def feature_fusion_pallas(aux, main, params, eps=1e-5):
    B, Ca, H, W = aux.shape
    _, Cm, _, _ = main.shape
    P = H * W

    w1, b1 = _fold_bn(params["w1"], params["g1"], params["be1"],
                      params["m1"], params["v1"], eps)
    w2, b2 = _fold_bn(params["w2"], params["g2"], params["be2"],
                      params["m2"], params["v2"], eps)
    w3, b3 = _fold_bn(params["w3"], params["g3"], params["be3"],
                      params["m3"], params["v3"], eps)
    w4, b4 = _fold_bn(params["w4"], params["g4"], params["be4"],
                      params["m4"], params["v4"], eps)
    w5, b5 = _fold_bn(params["w5"], params["g5"], params["be5"],
                      params["m5"], params["v5"], eps)

    Co = w1.shape[0]
    Cmid = w2.shape[0]
    assert Co == Cm, "out_channel must match main's channel count"
    w1a, w1b = w1[:, :Ca], w1[:, Ca:]

    aux2 = aux.reshape(B, Ca, P)
    main2 = main.reshape(B, Cm, P)

    itemsize = jnp.dtype(aux.dtype).itemsize
    cost = pl.CostEstimate(
        flops=int(2 * B * P * (Co * (Ca + Cm) + 2 * Co * Cmid)),
        transcendentals=int(B * P * Co),
        bytes_accessed=int(itemsize * (aux.size + 2 * main.size)),
    )

    out = pl.pallas_call(
        _ffm_kernel,
        out_shape=jax.ShapeDtypeStruct((B, Cm, P), main.dtype),
        grid=(B,),
        in_specs=[
            pl.BlockSpec((None, Ca, P), lambda b: (b, 0, 0)),
            pl.BlockSpec((None, Cm, P), lambda b: (b, 0, 0)),
            _full_spec(w1a), _full_spec(w1b), _full_spec(b1),
            _full_spec(w2), _full_spec(b2),
            _full_spec(w3), _full_spec(b3),
            _full_spec(w4), _full_spec(b4),
            _full_spec(w5), _full_spec(b5),
        ],
        out_specs=pl.BlockSpec((None, Cm, P), lambda b: (b, 0, 0)),
        compiler_params=pltpu.CompilerParams(
            dimension_semantics=("parallel",)),
        cost_estimate=cost,
    )(aux2, main2, w1a, w1b, b1, w2, b2, w3, b3, w4, b4, w5, b5)

    return out.reshape(B, Cm, H, W)


# ----------------------------- pure-JAX reference ---------------------------

def feature_fusion_reference(aux, main, params, eps=1e-5):
    def conv1x1(x, w):
        return jnp.einsum("oc,bchw->bohw", w, x, precision=_HIGHEST)

    def bn(x, gamma, beta, mean, var):
        inv = 1.0 / jnp.sqrt(var + eps)
        return ((x - mean[None, :, None, None]) * inv[None, :, None, None]
                * gamma[None, :, None, None] + beta[None, :, None, None])

    fusion = jnp.concatenate([aux, main], axis=1)
    fusion = jax.nn.relu(bn(conv1x1(fusion, params["w1"]),
                            params["g1"], params["be1"],
                            params["m1"], params["v1"]))
    h = jax.nn.relu(bn(conv1x1(fusion, params["w2"]),
                       params["g2"], params["be2"],
                       params["m2"], params["v2"]))
    local = bn(conv1x1(h, params["w3"]),
               params["g3"], params["be3"], params["m3"], params["v3"])

    g = jnp.mean(fusion, axis=(2, 3), keepdims=True)
    hg = jax.nn.relu(bn(conv1x1(g, params["w4"]),
                        params["g4"], params["be4"],
                        params["m4"], params["v4"]))
    glob = bn(conv1x1(hg, params["w5"]),
              params["g5"], params["be5"], params["m5"], params["v5"])

    return main + fusion * jax.nn.sigmoid(local + glob)


def make_params(key, in_channel, out_channel, ratio):
    mid = max(out_channel // ratio, 1)
    ks = jax.random.split(key, 10)

    def w(k, o, i):
        return 0.1 * jax.random.normal(k, (o, i), jnp.float32)

    def bnp(k, c):
        k1, k2, k3, k4 = jax.random.split(k, 4)
        gamma = 1.0 + 0.1 * jax.random.normal(k1, (c,), jnp.float32)
        beta = 0.1 * jax.random.normal(k2, (c,), jnp.float32)
        mean = 0.1 * jax.random.normal(k3, (c,), jnp.float32)
        var = 0.5 + jnp.abs(jax.random.normal(k4, (c,), jnp.float32))
        return gamma, beta, mean, var

    p = {}
    p["w1"] = w(ks[0], out_channel, in_channel)
    p["g1"], p["be1"], p["m1"], p["v1"] = bnp(ks[1], out_channel)
    p["w2"] = w(ks[2], mid, out_channel)
    p["g2"], p["be2"], p["m2"], p["v2"] = bnp(ks[3], mid)
    p["w3"] = w(ks[4], out_channel, mid)
    p["g3"], p["be3"], p["m3"], p["v3"] = bnp(ks[5], out_channel)
    p["w4"] = w(ks[6], mid, out_channel)
    p["g4"], p["be4"], p["m4"], p["v4"] = bnp(ks[7], mid)
    p["w5"] = w(ks[8], out_channel, mid)
    p["g5"], p["be5"], p["m5"], p["v5"] = bnp(ks[9], out_channel)
    return p


if __name__ == "__main__":
    key = jax.random.PRNGKey(0)
    B, Ca, Cm, H, W = 2, 4, 4, 16, 16
    ratio = 2
    in_channel, out_channel = Ca + Cm, Cm

    k1, k2, k3 = jax.random.split(key, 3)
    aux = jax.random.normal(k1, (B, Ca, H, W), dtype=jnp.float32)
    main = jax.random.normal(k2, (B, Cm, H, W), dtype=jnp.float32)
    params = make_params(k3, in_channel, out_channel, ratio)

    out = feature_fusion_pallas(aux, main, params)
    out = jax.block_until_ready(out)

    ref = feature_fusion_reference(aux, main, params)
    assert out.shape == main.shape
    max_err = float(jnp.max(jnp.abs(out - ref)))
    assert jnp.allclose(out, ref, rtol=1e-4, atol=1e-4), f"mismatch, max_err={max_err}"

    print("KERNEL_OK")
</pallas_src>

<mosaic_0001>
module attributes {stable_mosaic.version = 11 : i64} {
  func.func @_ffm_kernel(%arg0: i32, %arg1: memref<1x4x256xf32, #tpu.memory_space<vmem>>, %arg2: memref<1x4x256xf32, #tpu.memory_space<vmem>>, %arg3: memref<4x4xf32, #tpu.memory_space<vmem>>, %arg4: memref<4x4xf32, #tpu.memory_space<vmem>>, %arg5: memref<4x1xf32, #tpu.memory_space<vmem>>, %arg6: memref<2x4xf32, #tpu.memory_space<vmem>>, %arg7: memref<2x1xf32, #tpu.memory_space<vmem>>, %arg8: memref<4x2xf32, #tpu.memory_space<vmem>>, %arg9: memref<4x1xf32, #tpu.memory_space<vmem>>, %arg10: memref<2x4xf32, #tpu.memory_space<vmem>>, %arg11: memref<2x1xf32, #tpu.memory_space<vmem>>, %arg12: memref<4x2xf32, #tpu.memory_space<vmem>>, %arg13: memref<4x1xf32, #tpu.memory_space<vmem>>, %arg14: memref<1x4x256xf32, #tpu.memory_space<vmem>>) attributes {dimension_semantics = [#tpu.dimension_semantics<parallel>], iteration_bounds = array<i64: 2>, scalar_prefetch = 0 : i64, scratch_operands = 0 : i64, tpu.core_type = #tpu.core_type<tc>, window_params = [{transform_indices = @transform_0, window_bounds = array<i64: 1, 4, 256>}, {transform_indices = @transform_1, window_bounds = array<i64: 1, 4, 256>}, {pipeline_mode = #tpu.pipeline_mode<synchronous>, transform_indices = @transform_2, window_bounds = array<i64: 4, 4>}, {pipeline_mode = #tpu.pipeline_mode<synchronous>, transform_indices = @transform_3, window_bounds = array<i64: 4, 4>}, {pipeline_mode = #tpu.pipeline_mode<synchronous>, transform_indices = @transform_4, window_bounds = array<i64: 4, 1>}, {pipeline_mode = #tpu.pipeline_mode<synchronous>, transform_indices = @transform_5, window_bounds = array<i64: 2, 4>}, {pipeline_mode = #tpu.pipeline_mode<synchronous>, transform_indices = @transform_6, window_bounds = array<i64: 2, 1>}, {pipeline_mode = #tpu.pipeline_mode<synchronous>, transform_indices = @transform_7, window_bounds = array<i64: 4, 2>}, {pipeline_mode = #tpu.pipeline_mode<synchronous>, transform_indices = @transform_8, window_bounds = array<i64: 4, 1>}, {pipeline_mode = #tpu.pipeline_mode<synchronous>, transform_indices = @transform_9, window_bounds = array<i64: 2, 4>}, {pipeline_mode = #tpu.pipeline_mode<synchronous>, transform_indices = @transform_10, window_bounds = array<i64: 2, 1>}, {pipeline_mode = #tpu.pipeline_mode<synchronous>, transform_indices = @transform_11, window_bounds = array<i64: 4, 2>}, {pipeline_mode = #tpu.pipeline_mode<synchronous>, transform_indices = @transform_12, window_bounds = array<i64: 4, 1>}, {transform_indices = @transform_13, window_bounds = array<i64: 1, 4, 256>}]} {
    %c0 = arith.constant 0 : index
    %c0_0 = arith.constant 0 : index
    %c0_1 = arith.constant 0 : index
    %0 = vector.load %arg1[%c0, %c0_0, %c0_1] : memref<1x4x256xf32, #tpu.memory_space<vmem>>, vector<1x4x256xf32>
    %1 = vector.shape_cast %0 : vector<1x4x256xf32> to vector<4x256xf32>
    %c0_2 = arith.constant 0 : index
    %c0_3 = arith.constant 0 : index
    %c0_4 = arith.constant 0 : index
    %2 = vector.load %arg2[%c0_2, %c0_3, %c0_4] : memref<1x4x256xf32, #tpu.memory_space<vmem>>, vector<1x4x256xf32>
    %3 = vector.shape_cast %2 : vector<1x4x256xf32> to vector<4x256xf32>
    %c0_5 = arith.constant 0 : index
    %c0_6 = arith.constant 0 : index
    %4 = vector.load %arg3[%c0_5, %c0_6] : memref<4x4xf32, #tpu.memory_space<vmem>>, vector<4x4xf32>
    %cst = arith.constant dense<0.000000e+00> : vector<4x256xf32>
    %5 = tpu.matmul %4, %1, %cst {dimension_numbers = #tpu.dot_dimension_numbers<[1], [0], [0], [1], [0, 0, 1, 1], [], []>, precision = #tpu.contract_precision<fp32>} : vector<4x4xf32>, vector<4x256xf32>, vector<4x256xf32> -> vector<4x256xf32>
    %c0_7 = arith.constant 0 : index
    %c0_8 = arith.constant 0 : index
    %6 = vector.load %arg4[%c0_7, %c0_8] : memref<4x4xf32, #tpu.memory_space<vmem>>, vector<4x4xf32>
    %cst_9 = arith.constant dense<0.000000e+00> : vector<4x256xf32>
    %7 = tpu.matmul %6, %3, %cst_9 {dimension_numbers = #tpu.dot_dimension_numbers<[1], [0], [0], [1], [0, 0, 1, 1], [], []>, precision = #tpu.contract_precision<fp32>} : vector<4x4xf32>, vector<4x256xf32>, vector<4x256xf32> -> vector<4x256xf32>
    %8 = arith.addf %5, %7 : vector<4x256xf32>
    %c0_10 = arith.constant 0 : index
    %c0_11 = arith.constant 0 : index
    %9 = vector.load %arg5[%c0_10, %c0_11] : memref<4x1xf32, #tpu.memory_space<vmem>>, vector<4x1xf32>
    %10 = vector.broadcast %9 : vector<4x1xf32> to vector<4x256xf32>
    %11 = arith.addf %8, %10 : vector<4x256xf32>
    %cst_12 = arith.constant 0.000000e+00 : f32
    %12 = vector.broadcast %cst_12 : f32 to vector<4x256xf32>
    %13 = arith.maximumf %11, %12 : vector<4x256xf32>
    %c0_13 = arith.constant 0 : index
    %c0_14 = arith.constant 0 : index
    %14 = vector.load %arg6[%c0_13, %c0_14] : memref<2x4xf32, #tpu.memory_space<vmem>>, vector<2x4xf32>
    %cst_15 = arith.constant dense<0.000000e+00> : vector<2x256xf32>
    %15 = tpu.matmul %14, %13, %cst_15 {dimension_numbers = #tpu.dot_dimension_numbers<[1], [0], [0], [1], [0, 0, 1, 1], [], []>, precision = #tpu.contract_precision<fp32>} : vector<2x4xf32>, vector<4x256xf32>, vector<2x256xf32> -> vector<2x256xf32>
    %c0_16 = arith.constant 0 : index
    %c0_17 = arith.constant 0 : index
    %16 = vector.load %arg7[%c0_16, %c0_17] : memref<2x1xf32, #tpu.memory_space<vmem>>, vector<2x1xf32>
    %17 = vector.broadcast %16 : vector<2x1xf32> to vector<2x256xf32>
    %18 = arith.addf %15, %17 : vector<2x256xf32>
    %cst_18 = arith.constant 0.000000e+00 : f32
    %19 = vector.broadcast %cst_18 : f32 to vector<2x256xf32>
    %20 = arith.maximumf %18, %19 : vector<2x256xf32>
    %c0_19 = arith.constant 0 : index
    %c0_20 = arith.constant 0 : index
    %21 = vector.load %arg8[%c0_19, %c0_20] : memref<4x2xf32, #tpu.memory_space<vmem>>, vector<4x2xf32>
    %cst_21 = arith.constant dense<0.000000e+00> : vector<4x256xf32>
    %22 = tpu.matmul %21, %20, %cst_21 {dimension_numbers = #tpu.dot_dimension_numbers<[1], [0], [0], [1], [0, 0, 1, 1], [], []>, precision = #tpu.contract_precision<fp32>} : vector<4x2xf32>, vector<2x256xf32>, vector<4x256xf32> -> vector<4x256xf32>
    %c0_22 = arith.constant 0 : index
    %c0_23 = arith.constant 0 : index
    %23 = vector.load %arg9[%c0_22, %c0_23] : memref<4x1xf32, #tpu.memory_space<vmem>>, vector<4x1xf32>
    %24 = vector.broadcast %23 : vector<4x1xf32> to vector<4x256xf32>
    %25 = arith.addf %22, %24 : vector<4x256xf32>
    %cst_24 = arith.constant dense<0.000000e+00> : vector<4xf32>
    %26 = vector.multi_reduction <add>, %13, %cst_24 [1] : vector<4x256xf32> to vector<4xf32>
    %27 = vector.shape_cast %26 : vector<4xf32> to vector<4x1xf32>
    %cst_25 = arith.constant 2.560000e+02 : f32
    %28 = vector.broadcast %cst_25 : f32 to vector<4x1xf32>
    %29 = arith.divf %27, %28 : vector<4x1xf32>
    %c0_26 = arith.constant 0 : index
    %c0_27 = arith.constant 0 : index
    %30 = vector.load %arg10[%c0_26, %c0_27] : memref<2x4xf32, #tpu.memory_space<vmem>>, vector<2x4xf32>
    %cst_28 = arith.constant dense<0.000000e+00> : vector<2x1xf32>
    %31 = tpu.matmul %30, %29, %cst_28 {dimension_numbers = #tpu.dot_dimension_numbers<[1], [0], [0], [1], [0, 0, 1, 1], [], []>, precision = #tpu.contract_precision<fp32>} : vector<2x4xf32>, vector<4x1xf32>, vector<2x1xf32> -> vector<2x1xf32>
    %c0_29 = arith.constant 0 : index
    %c0_30 = arith.constant 0 : index
    %32 = vector.load %arg11[%c0_29, %c0_30] : memref<2x1xf32, #tpu.memory_space<vmem>>, vector<2x1xf32>
    %33 = arith.addf %31, %32 : vector<2x1xf32>
    %cst_31 = arith.constant 0.000000e+00 : f32
    %34 = vector.broadcast %cst_31 : f32 to vector<2x1xf32>
    %35 = arith.maximumf %33, %34 : vector<2x1xf32>
    %c0_32 = arith.constant 0 : index
    %c0_33 = arith.constant 0 : index
    %36 = vector.load %arg12[%c0_32, %c0_33] : memref<4x2xf32, #tpu.memory_space<vmem>>, vector<4x2xf32>
    %cst_34 = arith.constant dense<0.000000e+00> : vector<4x1xf32>
    %37 = tpu.matmul %36, %35, %cst_34 {dimension_numbers = #tpu.dot_dimension_numbers<[1], [0], [0], [1], [0, 0, 1, 1], [], []>, precision = #tpu.contract_precision<fp32>} : vector<4x2xf32>, vector<2x1xf32>, vector<4x1xf32> -> vector<4x1xf32>
    %c0_35 = arith.constant 0 : index
    %c0_36 = arith.constant 0 : index
    %38 = vector.load %arg13[%c0_35, %c0_36] : memref<4x1xf32, #tpu.memory_space<vmem>>, vector<4x1xf32>
    %39 = arith.addf %37, %38 : vector<4x1xf32>
    %40 = vector.broadcast %39 : vector<4x1xf32> to vector<4x256xf32>
    %41 = arith.addf %25, %40 : vector<4x256xf32>
    %cst_37 = arith.constant 0.000000e+00 : f32
    %42 = vector.broadcast %cst_37 : f32 to vector<4x256xf32>
    %43 = arith.subf %42, %41 : vector<4x256xf32>
    %44 = math.exp %43 : vector<4x256xf32>
    %cst_38 = arith.constant 1.000000e+00 : f32
    %45 = vector.broadcast %cst_38 : f32 to vector<4x256xf32>
    %46 = arith.addf %45, %44 : vector<4x256xf32>
    %cst_39 = arith.constant 1.000000e+00 : f32
    %47 = vector.broadcast %cst_39 : f32 to vector<4x256xf32>
    %48 = arith.divf %47, %46 : vector<4x256xf32>
    %49 = arith.mulf %13, %48 : vector<4x256xf32>
    %50 = arith.addf %3, %49 : vector<4x256xf32>
    %c0_40 = arith.constant 0 : index
    %c0_41 = arith.constant 0 : index
    %c0_42 = arith.constant 0 : index
    %51 = vector.load %arg14[%c0_40, %c0_41, %c0_42] : memref<1x4x256xf32, #tpu.memory_space<vmem>>, vector<1x4x256xf32>
    %52 = vector.shape_cast %51 : vector<1x4x256xf32> to vector<4x256xf32>
    %53 = vector.shape_cast %50 : vector<4x256xf32> to vector<1x4x256xf32>
    tpu.vector_store %arg14[%c0_40, %c0_41, %c0_42], %53 {strides = array<i32>} : memref<1x4x256xf32, #tpu.memory_space<vmem>>, vector<1x4x256xf32>,
    return
  }
  func.func @transform_0(%arg0: i32) -> (i32, i32, i32) {
    %c0_i32 = arith.constant 0 : i32
    %c0_i32_0 = arith.constant 0 : i32
    %c0_i32_1 = arith.constant 0 : i32
    return %arg0, %c0_i32, %c0_i32_0 : i32, i32, i32
  }
  func.func @transform_1(%arg0: i32) -> (i32, i32, i32) {
    %c0_i32 = arith.constant 0 : i32
    %c0_i32_0 = arith.constant 0 : i32
    %c0_i32_1 = arith.constant 0 : i32
    return %arg0, %c0_i32, %c0_i32_0 : i32, i32, i32
  }
  func.func @transform_2(%arg0: i32) -> (i32, i32) {
    %c0_i32 = arith.constant 0 : i32
    %c0_i32_0 = arith.constant 0 : i32
    %c0_i32_1 = arith.constant 0 : i32
    return %c0_i32, %c0_i32_0 : i32, i32
  }
  func.func @transform_3(%arg0: i32) -> (i32, i32) {
    %c0_i32 = arith.constant 0 : i32
    %c0_i32_0 = arith.constant 0 : i32
    %c0_i32_1 = arith.constant 0 : i32
    return %c0_i32, %c0_i32_0 : i32, i32
  }
  func.func @transform_4(%arg0: i32) -> (i32, i32) {
    %c0_i32 = arith.constant 0 : i32
    %c0_i32_0 = arith.constant 0 : i32
    %c0_i32_1 = arith.constant 0 : i32
    return %c0_i32, %c0_i32_0 : i32, i32
  }
  func.func @transform_5(%arg0: i32) -> (i32, i32) {
    %c0_i32 = arith.constant 0 : i32
    %c0_i32_0 = arith.constant 0 : i32
    %c0_i32_1 = arith.constant 0 : i32
    return %c0_i32, %c0_i32_0 : i32, i32
  }
  func.func @transform_6(%arg0: i32) -> (i32, i32) {
    %c0_i32 = arith.constant 0 : i32
    %c0_i32_0 = arith.constant 0 : i32
    %c0_i32_1 = arith.constant 0 : i32
    return %c0_i32, %c0_i32_0 : i32, i32
  }
  func.func @transform_7(%arg0: i32) -> (i32, i32) {
    %c0_i32 = arith.constant 0 : i32
    %c0_i32_0 = arith.constant 0 : i32
    %c0_i32_1 = arith.constant 0 : i32
    return %c0_i32, %c0_i32_0 : i32, i32
  }
  func.func @transform_8(%arg0: i32) -> (i32, i32) {
    %c0_i32 = arith.constant 0 : i32
    %c0_i32_0 = arith.constant 0 : i32
    %c0_i32_1 = arith.constant 0 : i32
    return %c0_i32, %c0_i32_0 : i32, i32
  }
  func.func @transform_9(%arg0: i32) -> (i32, i32) {
    %c0_i32 = arith.constant 0 : i32
    %c0_i32_0 = arith.constant 0 : i32
    %c0_i32_1 = arith.constant 0 : i32
    return %c0_i32, %c0_i32_0 : i32, i32
  }
  func.func @transform_10(%arg0: i32) -> (i32, i32) {
    %c0_i32 = arith.constant 0 : i32
    %c0_i32_0 = arith.constant 0 : i32
    %c0_i32_1 = arith.constant 0 : i32
    return %c0_i32, %c0_i32_0 : i32, i32
  }
  func.func @transform_11(%arg0: i32) -> (i32, i32) {
    %c0_i32 = arith.constant 0 : i32
    %c0_i32_0 = arith.constant 0 : i32
    %c0_i32_1 = arith.constant 0 : i32
    return %c0_i32, %c0_i32_0 : i32, i32
  }
  func.func @transform_12(%arg0: i32) -> (i32, i32) {
    %c0_i32 = arith.constant 0 : i32
    %c0_i32_0 = arith.constant 0 : i32
    %c0_i32_1 = arith.constant 0 : i32
    return %c0_i32, %c0_i32_0 : i32, i32
  }
  func.func @transform_13(%arg0: i32) -> (i32, i32, i32) {
    %c0_i32 = arith.constant 0 : i32
    %c0_i32_0 = arith.constant 0 : i32
    %c0_i32_1 = arith.constant 0 : i32
    return %arg0, %c0_i32, %c0_i32_0 : i32, i32, i32
  }
}

</mosaic_0001>

<llo_original>
// kernel: tpu_custom_call.1
$region0: #{tpu_custom_call.1}
  #allocation0 [shape = 'u32[]', space=smem, size = 0x4, offset = 0x4, fixed_abs, tag = 'smem constant byte address 0x4 - core index']
  #allocation1 [shape = 'u32[144,128]{1,0:T(1,128)}', space=vmem, size = 0x12000, scoped, tag = 'internal scratch']
  %s0 = inlined_call_operand.vmem [shape: f32[2,4,256], index: 0, kind: input, shape index: {}]
  %s1 = inlined_call_operand.vmem [shape: f32[2,4,256], index: 1, kind: input, shape index: {}]
  %s2 = inlined_call_operand.vmem [shape: f32[4,4], index: 2, kind: input, shape index: {}]
  %s3 = inlined_call_operand.vmem [shape: f32[4,4], index: 3, kind: input, shape index: {}]
  %s4 = inlined_call_operand.vmem [shape: f32[4,1], index: 4, kind: input, shape index: {}]
  %s5 = inlined_call_operand.vmem [shape: f32[2,4], index: 5, kind: input, shape index: {}]
  %s6 = inlined_call_operand.vmem [shape: f32[2,1], index: 6, kind: input, shape index: {}]
  %s7 = inlined_call_operand.vmem [shape: f32[4,2], index: 7, kind: input, shape index: {}]
  %s8 = inlined_call_operand.vmem [shape: f32[4,1], index: 8, kind: input, shape index: {}]
  %s9 = inlined_call_operand.vmem [shape: f32[2,4], index: 9, kind: input, shape index: {}]
  %s10 = inlined_call_operand.vmem [shape: f32[2,1], index: 10, kind: input, shape index: {}]
  %s11 = inlined_call_operand.vmem [shape: f32[4,2], index: 11, kind: input, shape index: {}]
  %s12 = inlined_call_operand.vmem [shape: f32[4,1], index: 12, kind: input, shape index: {}]
  %s13 = inlined_call_operand.hbm [shape: f32[2,4,256], index: 13, kind: output, shape index: {}]
  %s14 = sld [smem:[#allocation0]]
  $region85: #{tpu_custom_call.1} parent=0
    _
  %s16 = ssub.s32 1, %s14
  %s17 = scalar_select 0, %s16, %s14
  $region1: #{tpu_custom_call.1} parent=0
    #allocation2 [shape = 'u8[8192]{0}', space=vmem, size = 0x2000, scoped, tag = 'output window, operand 0']
    #allocation3 [shape = 's32[2]{0}', space=sflag, size = 0x8, scoped, tag = 'scoped memory for tpu_custom_call.1']
    %18 = vsyncpa [#allocation3], 0
    %s19 = scalar_lea.sflag [#allocation3], 1
    %20 = vsyncpa %s19, 0
    loop: start=0, step=1, limit=4
    $region2: #{tpu_custom_call.1} parent=1 // loop_pre_header
      _
    $region3: #{tpu_custom_call.1} parent=1 // loop_header
      %s22 = sphi 0, %s26
      %p23 = scmp.ge.s32.totalorder %s22, 4
      %s32 = sphi 0, %s34
      %s35 = sphi 0, %s32
      %s36 = sphi 0, %s35
      %s52 = sphi 0, %s36
      %s58 = sphi 0, %s60
      %s61 = sphi 0, %s58
      %s62 = sphi 0, %s61
      %s78 = sphi 0, %s62
      %s82 = sphi 0, %s82
      %s84 = sphi 0, %s82
      %s85 = sphi 0, %s84
      %s99 = sphi 0, %s85
      %s103 = sphi 0, %s103
      %s105 = sphi 0, %s103
      %s106 = sphi 0, %s105
      %s120 = sphi 0, %s106
      %s124 = sphi 0, %s124
      %s126 = sphi 0, %s124
      %s127 = sphi 0, %s126
      %s141 = sphi 0, %s127
      %s145 = sphi 0, %s145
      %s147 = sphi 0, %s145
      %s148 = sphi 0, %s147
      %s162 = sphi 0, %s148
      %s166 = sphi 0, %s166
      %s168 = sphi 0, %s166
      %s169 = sphi 0, %s168
      %s183 = sphi 0, %s169
      %s187 = sphi 0, %s187
      %s189 = sphi 0, %s187
      %s190 = sphi 0, %s189
      %s204 = sphi 0, %s190
      %s208 = sphi 0, %s208
      %s210 = sphi 0, %s208
      %s211 = sphi 0, %s210
      %s225 = sphi 0, %s211
      %s229 = sphi 0, %s229
      %s231 = sphi 0, %s229
      %s232 = sphi 0, %s231
      %s246 = sphi 0, %s232
      %s250 = sphi 0, %s250
      %s252 = sphi 0, %s250
      %s253 = sphi 0, %s252
      %s267 = sphi 0, %s253
      %s271 = sphi 0, %s271
      %s273 = sphi 0, %s271
      %s274 = sphi 0, %s273
      %s288 = sphi 0, %s274
      %s292 = sphi 0, %s292
      %s294 = sphi 0, %s292
      %s295 = sphi 0, %s294
      %s309 = sphi 0, %s295
      %s315 = sphi 0, %s317
      %s318 = sphi 0, %s315
      %s319 = sphi 0, %s318
      %s335 = sphi 0, %s319
    $region4: #{tpu_custom_call.1} parent=1 // loop_header_branch
      %25 = sbr.rel (%p23) target = $region8
    $region5: #{tpu_custom_call.1} parent=1 // loop_body
      %s27 = ssub.s32 %s22, 1
      %s28 = ssub.s32 %s22, 2
      %s29 = sadd.s32 %s22, 1
      %s30 = ssub.s32 %s22, %s29
      %p31 = scmp.eq.s32.totalorder %s30, 0
      %s33 = sadd.s32 %s32, 1
      %s34 = scalar_select %p31, %s32, %s33
      %p37 = pneg %p31
      %p38 = scmp.eq.s32.totalorder %s22, 1
      %p39 = por %p37, %p38
      %p40 = scmp.ne.s32.totalorder %s32, %s35
      %p41 = scmp.eq.s32.totalorder %s22, 0
      %p42 = por %p40, %p41
      %p43 = scmp.ne.s32.totalorder %s32, %s35
      %p44 = scmp.eq.s32.totalorder %s27, 1
      %p45 = por %p43, %p44
      %p46 = scmp.ne.s32.totalorder %s35, %s36
      %p47 = scmp.eq.s32.totalorder %s27, 0
      %p48 = por %p46, %p47
      %p49 = scmp.ne.s32.totalorder %s35, %s36
      %p50 = scmp.eq.s32.totalorder %s28, 1
      %p51 = por %p49, %p50
      %p53 = scmp.ne.s32.totalorder %s36, %s52
      %p54 = scmp.eq.s32.totalorder %s28, 0
      %p55 = por %p53, %p54
      %s56 = ssub.s32 %s22, %s29
      %p57 = scmp.eq.s32.totalorder %s56, 0
      %s59 = sadd.s32 %s58, 1
      %s60 = scalar_select %p57, %s58, %s59
      %p63 = pneg %p57
      %p64 = scmp.eq.s32.totalorder %s22, 1
      %p65 = por %p63, %p64
      %p66 = scmp.ne.s32.totalorder %s58, %s61
      %p67 = scmp.eq.s32.totalorder %s22, 0
      %p68 = por %p66, %p67
      %p69 = scmp.ne.s32.totalorder %s58, %s61
      %p70 = scmp.eq.s32.totalorder %s27, 1
      %p71 = por %p69, %p70
      %p72 = scmp.ne.s32.totalorder %s61, %s62
      %p73 = scmp.eq.s32.totalorder %s27, 0
      %p74 = por %p72, %p73
      %p75 = scmp.ne.s32.totalorder %s61, %s62
      %p76 = scmp.eq.s32.totalorder %s28, 1
      %p77 = por %p75, %p76
      %p79 = scmp.ne.s32.totalorder %s62, %s78
      %p80 = scmp.eq.s32.totalorder %s28, 0
      %p81 = por %p79, %p80
      %s83 = sadd.s32 %s82, 1
      %p86 = scmp.eq.s32.totalorder %s22, 1
      %p87 = scmp.ne.s32.totalorder %s82, %s84
      %p88 = scmp.eq.s32.totalorder %s22, 0
      %p89 = por %p87, %p88
      %p90 = scmp.ne.s32.totalorder %s82, %s84
      %p91 = scmp.eq.s32.totalorder %s27, 1
      %p92 = por %p90, %p91
      %p93 = scmp.ne.s32.totalorder %s84, %s85
      %p94 = scmp.eq.s32.totalorder %s27, 0
      %p95 = por %p93, %p94
      %p96 = scmp.ne.s32.totalorder %s84, %s85
      %p97 = scmp.eq.s32.totalorder %s28, 1
      %p98 = por %p96, %p97
      %p100 = scmp.ne.s32.totalorder %s85, %s99
      %p101 = scmp.eq.s32.totalorder %s28, 0
      %p102 = por %p100, %p101
      %s104 = sadd.s32 %s103, 1
      %p107 = scmp.eq.s32.totalorder %s22, 1
      %p108 = scmp.ne.s32.totalorder %s103, %s105
      %p109 = scmp.eq.s32.totalorder %s22, 0
      %p110 = por %p108, %p109
      %p111 = scmp.ne.s32.totalorder %s103, %s105
      %p112 = scmp.eq.s32.totalorder %s27, 1
      %p113 = por %p111, %p112
      %p114 = scmp.ne.s32.totalorder %s105, %s106
      %p115 = scmp.eq.s32.totalorder %s27, 0
      %p116 = por %p114, %p115
      %p117 = scmp.ne.s32.totalorder %s105, %s106
      %p118 = scmp.eq.s32.totalorder %s28, 1
      %p119 = por %p117, %p118
      %p121 = scmp.ne.s32.totalorder %s106, %s120
      %p122 = scmp.eq.s32.totalorder %s28, 0
      %p123 = por %p121, %p122
      %s125 = sadd.s32 %s124, 1
      %p128 = scmp.eq.s32.totalorder %s22, 1
      %p129 = scmp.ne.s32.totalorder %s124, %s126
      %p130 = scmp.eq.s32.totalorder %s22, 0
      %p131 = por %p129, %p130
      %p132 = scmp.ne.s32.totalorder %s124, %s126
      %p133 = scmp.eq.s32.totalorder %s27, 1
      %p134 = por %p132, %p133
      %p135 = scmp.ne.s32.totalorder %s126, %s127
      %p136 = scmp.eq.s32.totalorder %s27, 0
      %p137 = por %p135, %p136
      %p138 = scmp.ne.s32.totalorder %s126, %s127
      %p139 = scmp.eq.s32.totalorder %s28, 1
      %p140 = por %p138, %p139
      %p142 = scmp.ne.s32.totalorder %s127, %s141
      %p143 = scmp.eq.s32.totalorder %s28, 0
      %p144 = por %p142, %p143
      %s146 = sadd.s32 %s145, 1
      %p149 = scmp.eq.s32.totalorder %s22, 1
      %p150 = scmp.ne.s32.totalorder %s145, %s147
      %p151 = scmp.eq.s32.totalorder %s22, 0
      %p152 = por %p150, %p151
      %p153 = scmp.ne.s32.totalorder %s145, %s147
      %p154 = scmp.eq.s32.totalorder %s27, 1
      %p155 = por %p153, %p154
      %p156 = scmp.ne.s32.totalorder %s147, %s148
      %p157 = scmp.eq.s32.totalorder %s27, 0
      %p158 = por %p156, %p157
      %p159 = scmp.ne.s32.totalorder %s147, %s148
      %p160 = scmp.eq.s32.totalorder %s28, 1
      %p161 = por %p159, %p160
      %p163 = scmp.ne.s32.totalorder %s148, %s162
      %p164 = scmp.eq.s32.totalorder %s28, 0
      %p165 = por %p163, %p164
      %s167 = sadd.s32 %s166, 1
      %p170 = scmp.eq.s32.totalorder %s22, 1
      %p171 = scmp.ne.s32.totalorder %s166, %s168
      %p172 = scmp.eq.s32.totalorder %s22, 0
      %p173 = por %p171, %p172
      %p174 = scmp.ne.s32.totalorder %s166, %s168
      %p175 = scmp.eq.s32.totalorder %s27, 1
      %p176 = por %p174, %p175
      %p177 = scmp.ne.s32.totalorder %s168, %s169
      %p178 = scmp.eq.s32.totalorder %s27, 0
      %p179 = por %p177, %p178
      %p180 = scmp.ne.s32.totalorder %s168, %s169
      %p181 = scmp.eq.s32.totalorder %s28, 1
      %p182 = por %p180, %p181
      %p184 = scmp.ne.s32.totalorder %s169, %s183
      %p185 = scmp.eq.s32.totalorder %s28, 0
      %p186 = por %p184, %p185
      %s188 = sadd.s32 %s187, 1
      %p191 = scmp.eq.s32.totalorder %s22, 1
      %p192 = scmp.ne.s32.totalorder %s187, %s189
      %p193 = scmp.eq.s32.totalorder %s22, 0
      %p194 = por %p192, %p193
      %p195 = scmp.ne.s32.totalorder %s187, %s189
      %p196 = scmp.eq.s32.totalorder %s27, 1
      %p197 = por %p195, %p196
      %p198 = scmp.ne.s32.totalorder %s189, %s190
      %p199 = scmp.eq.s32.totalorder %s27, 0
      %p200 = por %p198, %p199
      %p201 = scmp.ne.s32.totalorder %s189, %s190
      %p202 = scmp.eq.s32.totalorder %s28, 1
      %p203 = por %p201, %p202
      %p205 = scmp.ne.s32.totalorder %s190, %s204
      %p206 = scmp.eq.s32.totalorder %s28, 0
      %p207 = por %p205, %p206
      %s209 = sadd.s32 %s208, 1
      %p212 = scmp.eq.s32.totalorder %s22, 1
      %p213 = scmp.ne.s32.totalorder %s208, %s210
      %p214 = scmp.eq.s32.totalorder %s22, 0
      %p215 = por %p213, %p214
      %p216 = scmp.ne.s32.totalorder %s208, %s210
      %p217 = scmp.eq.s32.totalorder %s27, 1
      %p218 = por %p216, %p217
      %p219 = scmp.ne.s32.totalorder %s210, %s211
      %p220 = scmp.eq.s32.totalorder %s27, 0
      %p221 = por %p219, %p220
      %p222 = scmp.ne.s32.totalorder %s210, %s211
      %p223 = scmp.eq.s32.totalorder %s28, 1
      %p224 = por %p222, %p223
      %p226 = scmp.ne.s32.totalorder %s211, %s225
      %p227 = scmp.eq.s32.totalorder %s28, 0
      %p228 = por %p226, %p227
      %s230 = sadd.s32 %s229, 1
      %p233 = scmp.eq.s32.totalorder %s22, 1
      %p234 = scmp.ne.s32.totalorder %s229, %s231
      %p235 = scmp.eq.s32.totalorder %s22, 0
      %p236 = por %p234, %p235
      %p237 = scmp.ne.s32.totalorder %s229, %s231
      %p238 = scmp.eq.s32.totalorder %s27, 1
      %p239 = por %p237, %p238
      %p240 = scmp.ne.s32.totalorder %s231, %s232
      %p241 = scmp.eq.s32.totalorder %s27, 0
      %p242 = por %p240, %p241
      %p243 = scmp.ne.s32.totalorder %s231, %s232
      %p244 = scmp.eq.s32.totalorder %s28, 1
      %p245 = por %p243, %p244
      %p247 = scmp.ne.s32.totalorder %s232, %s246
      %p248 = scmp.eq.s32.totalorder %s28, 0
      %p249 = por %p247, %p248
      %s251 = sadd.s32 %s250, 1
      %p254 = scmp.eq.s32.totalorder %s22, 1
      %p255 = scmp.ne.s32.totalorder %s250, %s252
      %p256 = scmp.eq.s32.totalorder %s22, 0
      %p257 = por %p255, %p256
      %p258 = scmp.ne.s32.totalorder %s250, %s252
      %p259 = scmp.eq.s32.totalorder %s27, 1
      %p260 = por %p258, %p259
      %p261 = scmp.ne.s32.totalorder %s252, %s253
      %p262 = scmp.eq.s32.totalorder %s27, 0
      %p263 = por %p261, %p262
      %p264 = scmp.ne.s32.totalorder %s252, %s253
      %p265 = scmp.eq.s32.totalorder %s28, 1
      %p266 = por %p264, %p265
      %p268 = scmp.ne.s32.totalorder %s253, %s267
      %p269 = scmp.eq.s32.totalorder %s28, 0
      %p270 = por %p268, %p269
      %s272 = sadd.s32 %s271, 1
      %p275 = scmp.eq.s32.totalorder %s22, 1
      %p276 = scmp.ne.s32.totalorder %s271, %s273
      %p277 = scmp.eq.s32.totalorder %s22, 0
      %p278 = por %p276, %p277
      %p279 = scmp.ne.s32.totalorder %s271, %s273
      %p280 = scmp.eq.s32.totalorder %s27, 1
      %p281 = por %p279, %p280
      %p282 = scmp.ne.s32.totalorder %s273, %s274
      %p283 = scmp.eq.s32.totalorder %s27, 0
      %p284 = por %p282, %p283
      %p285 = scmp.ne.s32.totalorder %s273, %s274
      %p286 = scmp.eq.s32.totalorder %s28, 1
      %p287 = por %p285, %p286
      %p289 = scmp.ne.s32.totalorder %s274, %s288
      %p290 = scmp.eq.s32.totalorder %s28, 0
      %p291 = por %p289, %p290
      %s293 = sadd.s32 %s292, 1
      %p296 = scmp.eq.s32.totalorder %s22, 1
      %p297 = scmp.ne.s32.totalorder %s292, %s294
      %p298 = scmp.eq.s32.totalorder %s22, 0
      %p299 = por %p297, %p298
      %p300 = scmp.ne.s32.totalorder %s292, %s294
      %p301 = scmp.eq.s32.totalorder %s27, 1
      %p302 = por %p300, %p301
      %p303 = scmp.ne.s32.totalorder %s294, %s295
      %p304 = scmp.eq.s32.totalorder %s27, 0
      %p305 = por %p303, %p304
      %p306 = scmp.ne.s32.totalorder %s294, %s295
      %p307 = scmp.eq.s32.totalorder %s28, 1
      %p308 = por %p306, %p307
      %p310 = scmp.ne.s32.totalorder %s295, %s309
      %p311 = scmp.eq.s32.totalorder %s28, 0
      %p312 = por %p310, %p311
      %s313 = ssub.s32 %s22, %s29
      %p314 = scmp.eq.s32.totalorder %s313, 0
      %s316 = sadd.s32 %s315, 1
      %s317 = scalar_select %p314, %s315, %s316
      %p320 = pneg %p314
      %p321 = scmp.eq.s32.totalorder %s22, 1
      %p322 = por %p320, %p321
      %p323 = scmp.ne.s32.totalorder %s315, %s318
      %p324 = scmp.eq.s32.totalorder %s22, 0
      %p325 = por %p323, %p324
      %p326 = scmp.ne.s32.totalorder %s315, %s318
      %p327 = scmp.eq.s32.totalorder %s27, 1
      %p328 = por %p326, %p327
      %p329 = scmp.ne.s32.totalorder %s318, %s319
      %p330 = scmp.eq.s32.totalorder %s27, 0
      %p331 = por %p329, %p330
      %p332 = scmp.ne.s32.totalorder %s318, %s319
      %p333 = scmp.eq.s32.totalorder %s28, 1
      %p334 = por %p332, %p333
      %p336 = scmp.ne.s32.totalorder %s319, %s335
      %p337 = scmp.eq.s32.totalorder %s28, 0
      %p338 = por %p336, %p337
      %p339 = scmp.le.s32.totalorder 1, %s22
      %p340 = scmp.lt.s32.totalorder %s22, 3
      %p341 = pnand %p339, %p340
      %p342 = pneg %p341
      // Predicated region
      $region9: #{tpu_custom_call.1} parent=5 // pred_check
        _
      $region10: #{tpu_custom_call.1} parent=5 // pred_check_branch
        %344 = sbr.rel (%p341) target = $region12
      $region11: #{tpu_custom_call.1} parent=5 // pred_region
        %s345 = ssub.s32 %s22, 1
        // Predicated region
        $region13: #{tpu_custom_call.1} parent=11 // pred_check
          %p346 = pneg %p95
        $region14: #{tpu_custom_call.1} parent=11 // pred_check_branch
          %348 = sbr.rel (%p346) target = $region16
        $region15: #{tpu_custom_call.1} parent=11 // pred_region
          _
        $region16: #{tpu_custom_call.1} parent=11 // pred_fallthru
          _
        // Predicated region
        $region17: #{tpu_custom_call.1} parent=11 // pred_check
          %p349 = pneg %p116
        $region18: #{tpu_custom_call.1} parent=11 // pred_check_branch
          %351 = sbr.rel (%p349) target = $region20
        $region19: #{tpu_custom_call.1} parent=11 // pred_region
          _
        $region20: #{tpu_custom_call.1} parent=11 // pred_fallthru
          _
        // Predicated region
        $region21: #{tpu_custom_call.1} parent=11 // pred_check
          %p352 = pneg %p137
        $region22: #{tpu_custom_call.1} parent=11 // pred_check_branch
          %354 = sbr.rel (%p352) target = $region24
        $region23: #{tpu_custom_call.1} parent=11 // pred_region
          _
        $region24: #{tpu_custom_call.1} parent=11 // pred_fallthru
          _
        // Predicated region
        $region25: #{tpu_custom_call.1} parent=11 // pred_check
          %p355 = pneg %p158
        $region26: #{tpu_custom_call.1} parent=11 // pred_check_branch
          %357 = sbr.rel (%p355) target = $region28
        $region27: #{tpu_custom_call.1} parent=11 // pred_region
          _
        $region28: #{tpu_custom_call.1} parent=11 // pred_fallthru
          _
        // Predicated region
        $region29: #{tpu_custom_call.1} parent=11 // pred_check
          %p358 = pneg %p179
        $region30: #{tpu_custom_call.1} parent=11 // pred_check_branch
          %360 = sbr.rel (%p358) target = $region32
        $region31: #{tpu_custom_call.1} parent=11 // pred_region
          _
        $region32: #{tpu_custom_call.1} parent=11 // pred_fallthru
          _
        // Predicated region
        $region33: #{tpu_custom_call.1} parent=11 // pred_check
          %p361 = pneg %p200
        $region34: #{tpu_custom_call.1} parent=11 // pred_check_branch
          %363 = sbr.rel (%p361) target = $region36
        $region35: #{tpu_custom_call.1} parent=11 // pred_region
          _
        $region36: #{tpu_custom_call.1} parent=11 // pred_fallthru
          _
        // Predicated region
        $region37: #{tpu_custom_call.1} parent=11 // pred_check
          %p364 = pneg %p221
        $region38: #{tpu_custom_call.1} parent=11 // pred_check_branch
          %366 = sbr.rel (%p364) target = $region40
        $region39: #{tpu_custom_call.1} parent=11 // pred_region
          _
        $region40: #{tpu_custom_call.1} parent=11 // pred_fallthru
          _
        // Predicated region
        $region41: #{tpu_custom_call.1} parent=11 // pred_check
          %p367 = pneg %p242
        $region42: #{tpu_custom_call.1} parent=11 // pred_check_branch
          %369 = sbr.rel (%p367) target = $region44
        $region43: #{tpu_custom_call.1} parent=11 // pred_region
          _
        $region44: #{tpu_custom_call.1} parent=11 // pred_fallthru
          _
        // Predicated region
        $region45: #{tpu_custom_call.1} parent=11 // pred_check
          %p370 = pneg %p263
        $region46: #{tpu_custom_call.1} parent=11 // pred_check_branch
          %372 = sbr.rel (%p370) target = $region48
        $region47: #{tpu_custom_call.1} parent=11 // pred_region
          _
        $region48: #{tpu_custom_call.1} parent=11 // pred_fallthru
          _
        // Predicated region
        $region49: #{tpu_custom_call.1} parent=11 // pred_check
          %p373 = pneg %p284
        $region50: #{tpu_custom_call.1} parent=11 // pred_check_branch
          %375 = sbr.rel (%p373) target = $region52
        $region51: #{tpu_custom_call.1} parent=11 // pred_region
          _
        $region52: #{tpu_custom_call.1} parent=11 // pred_fallthru
          _
        // Predicated region
        $region53: #{tpu_custom_call.1} parent=11 // pred_check
          %p376 = pneg %p305
        $region54: #{tpu_custom_call.1} parent=11 // pred_check_branch
          %378 = sbr.rel (%p376) target = $region56
        $region55: #{tpu_custom_call.1} parent=11 // pred_region
          _
        $region56: #{tpu_custom_call.1} parent=11 // pred_fallthru
          _
      $region12: #{tpu_custom_call.1} parent=5 // pred_fallthru
        _
      %p379 = scmp.lt.s32.totalorder %s22, 2
      // Predicated region
      $region57: #{tpu_custom_call.1} parent=5 // pred_check
        %p380 = pneg %p379
      $region58: #{tpu_custom_call.1} parent=5 // pred_check_branch
        %382 = sbr.rel (%p380) target = $region60
      $region59: #{tpu_custom_call.1} parent=5 // pred_region
        // Predicated region
        $region61: #{tpu_custom_call.1} parent=59 // pred_check
          %p383 = pneg %p42
        $region62: #{tpu_custom_call.1} parent=59 // pred_check_branch
          %385 = sbr.rel (%p383) target = $region64
        $region63: #{tpu_custom_call.1} parent=59 // pred_region
          %p386 = scmp.lt.s32.totalorder %s22, 1
          %s387 = scalar_select %p386, %s22, 1
          %s388 = smul.addr %s387, 2
          %s389 = smul.addr %s388, 4
          %s390 = scalar_lea.vmem %s0, %s389
        $region64: #{tpu_custom_call.1} parent=59 // pred_fallthru
          _
        // Predicated region
        $region65: #{tpu_custom_call.1} parent=59 // pred_check
          %p391 = pneg %p68
        $region66: #{tpu_custom_call.1} parent=59 // pred_check_branch
          %393 = sbr.rel (%p391) target = $region68
        $region67: #{tpu_custom_call.1} parent=59 // pred_region
          %p394 = scmp.lt.s32.totalorder %s22, 1
          %s395 = scalar_select %p394, %s22, 1
          %s396 = smul.addr %s395, 2
          %s397 = smul.addr %s396, 4
          %s398 = scalar_lea.vmem %s1, %s397
        $region68: #{tpu_custom_call.1} parent=59 // pred_fallthru
          _
      $region60: #{tpu_custom_call.1} parent=5 // pred_fallthru
        _
      %p399 = scmp.le.s32.totalorder 1, %s22
      %p400 = scmp.lt.s32.totalorder %s22, 3
      %p401 = pnand %p399, %p400
      %p402 = pneg %p401
      // Predicated region
      $region69: #{tpu_custom_call.1} parent=5 // pred_check
        _
      $region70: #{tpu_custom_call.1} parent=5 // pred_check_branch
        %404 = sbr.rel (%p401) target = $region72
      $region71: #{tpu_custom_call.1} parent=5 // pred_region
        %s405 = ssub.s32 %s22, 1
        %p406 = scmp.lt.s32.totalorder %s27, 1
        %s407 = scalar_select %p406, %s27, 1
        %s408 = smul.addr %s407, 2
        %s409 = smul.addr %s408, 4
        %s410 = scalar_lea.vmem %s0, %s409
        %p411 = pneg %p48
        %p412 = pneg %p45
        %p413 = scmp.lt.s32.totalorder %s27, 1
        %s414 = scalar_select %p413, %s27, 1
        %s415 = smul.addr %s414, 2
        %s416 = smul.addr %s415, 4
        %s417 = scalar_lea.vmem %s1, %s416
        %p418 = pneg %p74
        %p419 = pneg %p71
        %p420 = pneg %p95
        %p421 = pneg %p92
        %p422 = pneg %p116
        %p423 = pneg %p113
        %p424 = pneg %p137
        %p425 = pneg %p134
        %p426 = pneg %p158
        %p427 = pneg %p155
        %p428 = pneg %p179
        %p429 = pneg %p176
        %p430 = pneg %p200
        %p431 = pneg %p197
        %p432 = pneg %p221
        %p433 = pneg %p218
        %p434 = pneg %p242
        %p435 = pneg %p239
        %p436 = pneg %p263
        %p437 = pneg %p260
        %p438 = pneg %p284
        %p439 = pneg %p281
        %p440 = pneg %p305
        %p441 = pneg %p302
        %p442 = pneg %p331
        %p443 = pneg %p328
        %s444 = sand.u32 %s318, 1
        %s445 = scalar_lea.sflag [#allocation3], %s444
        %s446 = sand.u32 %s318, 1
        %s447 = smul.addr %s446, 8
        %s448 = scalar_lea.vmem [#allocation2], %s447
        %p449 = scmp.lt.s32.totalorder %s27, 1
        %s450 = scalar_select %p449, %s27, 1
        %s451 = smul.addr %s450, 2
        %s452 = smul.addr %s451, 4
        %s453 = scalar_lea.vmem %s0, %s452
        %p454 = scmp.lt.s32.totalorder %s27, 1
        %s455 = scalar_select %p454, %s27, 1
        %s456 = smul.addr %s455, 2
        %s457 = smul.addr %s456, 4
        %s458 = scalar_lea.vmem %s1, %s457
        %v459 = vld [vmem:[%s453] sm:$0xff]
        %v460 = vld [vmem:[%s458] sm:$0xff]
        %v461 = vld [vmem:[%s2] sm:$0xf]
        %v462 = vld [vmem:[%s3] sm:$0xf]
        %v464 = vcombine.high %v460, %v460
        %vm465 = vcmask 31744
        %v467 = vsel %vm465, %v462, 0
        %vm469 = vcmask 1043456
        %v470 = vsel %vm469, %v460, 0
        %v472 = vsel %vm469, %v464, 0
        %v474 = vand.u32 %v472, 4294901760
        %475 = vmatprep.subr.mxu0 %v474
        %v476 = vand.u32 %v470, 4294901760
        %477 = vmatpush1.msra.mxu0 %v476
        %478 = vmatprep.subr.mxu0 0.0
        %479 = vmatpush1.msra.mxu0 0.0
        %480 = vmatprep.subr.mxu0 0.0
        %481 = vmatpush1.msra.mxu0 0.0
        %482 = vmatprep.subr.mxu0 0.0
        %483 = vmatpush1.msra.mxu0 0.0
        %484 = vmatprep.subr.mxu0 0.0
        %485 = vmatpush1.msra.mxu0 0.0
        %486 = vmatprep.subr.mxu0 0.0
        %487 = vmatpush1.msra.mxu0 0.0
        %488 = vmatprep.subr.mxu0 0.0
        %489 = vmatpush1.msra.mxu0 0.0
        %490 = vmatprep.subr.mxu0 0.0
        %491 = vmatpush1.msra.mxu0 0.0
        %492 = vmatprep.subr.mxu0 0.0
        %493 = vmatpush1.msra.mxu0 0.0
        %494 = vmatprep.subr.mxu0 0.0
        %495 = vmatpush1.msra.mxu0 0.0
        %496 = vmatprep.subr.mxu0 0.0
        %497 = vmatpush1.msra.mxu0 0.0
        %498 = vmatprep.subr.mxu0 0.0
        %499 = vmatpush1.msra.mxu0 0.0
        %500 = vmatprep.subr.mxu0 0.0
        %501 = vmatpush1.msra.mxu0 0.0
        %502 = vmatprep.subr.mxu0 0.0
        %503 = vmatpush1.msra.mxu0 0.0
        %504 = vmatprep.subr.mxu0 0.0
        %505 = vmatpush1.msra.mxu0 0.0
        %506 = vmatprep.subr.mxu0 0.0
        %507 = vmatpush1.msra.mxu0 0.0
        %508 = vmatprep.subr.mxu0 0.0
        %509 = vmatpush1.msra.mxu0 0.0
        %510 = vmatprep.subr.mxu0 0.0
        %511 = vmatpush1.msra.mxu0 0.0
        %512 = vmatprep.subr.mxu0 0.0
        %513 = vmatpush1.msra.mxu0 0.0
        %514 = vmatprep.subr.mxu0 0.0
        %515 = vmatpush1.msra.mxu0 0.0
        %516 = vmatprep.subr.mxu0 0.0
        %517 = vmatpush1.msra.mxu0 0.0
        %518 = vmatprep.subr.mxu0 0.0
        %519 = vmatpush1.msra.mxu0 0.0
        %520 = vmatprep.subr.mxu0 0.0
        %521 = vmatpush1.msra.mxu0 0.0
        %522 = vmatprep.subr.mxu0 0.0
        %523 = vmatpush1.msra.mxu0 0.0
        %524 = vmatprep.subr.mxu0 0.0
        %525 = vmatpush1.msra.mxu0 0.0
        %526 = vmatprep.subr.mxu0 0.0
        %527 = vmatpush1.msra.mxu0 0.0
        %528 = vmatprep.subr.mxu0 0.0
        %529 = vmatpush1.msra.mxu0 0.0
        %530 = vmatprep.subr.mxu0 0.0
        %531 = vmatpush1.msra.mxu0 0.0
        %532 = vmatprep.subr.mxu0 0.0
        %533 = vmatpush1.msra.mxu0 0.0
        %534 = vmatprep.subr.mxu0 0.0
        %535 = vmatpush1.msra.mxu0 0.0
        %536 = vmatprep.subr.mxu0 0.0
        %537 = vmatpush1.msra.mxu0 0.0
        %538 = vmatprep.subr.mxu0 0.0
        %539 = vmatpush1.msra.mxu0 0.0
        %540 = vmatprep.mubr.f32.mxu0 0.0
        %v541 = vand.u32 %v467, 4294901760
        %v542 = vsub.f32 %v467, %v541
        %v543 = vand.u32 %v542, 4294901760
        %v544 = vsub.f32 %v542, %v543
        %v545 = vand.u32 %v544, 4294901760
        %546 = vmatmul.mubr.f32.gmra.mrb[0].mxu0 %v545
        %v547 = vpop.f32.mrb[0].mxu0
        %v548 = vadd.f32 0.0, %v547
        %v549 = vpop.f32.mrb[0].mxu0
        %v550 = vadd.f32 0.0, %v549
        %551 = vdwg.mxu0
        %v552 = vand.u32 %v472, 4294901760
        %v553 = vsub.f32 %v472, %v552
        %v554 = vand.u32 %v553, 4294901760
        %v555 = vsub.f32 %v553, %v554
        %v556 = vand.u32 %v555, 4294901760
        %557 = vmatprep.subr.mxu0 %v556
        %v558 = vand.u32 %v470, 4294901760
        %v559 = vsub.f32 %v470, %v558
        %v560 = vand.u32 %v559, 4294901760
        %v561 = vsub.f32 %v559, %v560
        %v562 = vand.u32 %v561, 4294901760
        %563 = vmatpush1.msra.mxu0 %v562
        %564 = vmatprep.subr.mxu0 0.0
        %565 = vmatpush1.msra.mxu0 0.0
        %566 = vmatprep.subr.mxu0 0.0
        %567 = vmatpush1.msra.mxu0 0.0
        %568 = vmatprep.subr.mxu0 0.0
        %569 = vmatpush1.msra.mxu0 0.0
        %570 = vmatprep.subr.mxu0 0.0
        %571 = vmatpush1.msra.mxu0 0.0
        %572 = vmatprep.subr.mxu0 0.0
        %573 = vmatpush1.msra.mxu0 0.0
        %574 = vmatprep.subr.mxu0 0.0
        %575 = vmatpush1.msra.mxu0 0.0
        %576 = vmatprep.subr.mxu0 0.0
        %577 = vmatpush1.msra.mxu0 0.0
        %578 = vmatprep.subr.mxu0 0.0
        %579 = vmatpush1.msra.mxu0 0.0
        %580 = vmatprep.subr.mxu0 0.0
        %581 = vmatpush1.msra.mxu0 0.0
        %582 = vmatprep.subr.mxu0 0.0
        %583 = vmatpush1.msra.mxu0 0.0
        %584 = vmatprep.subr.mxu0 0.0
        %585 = vmatpush1.msra.mxu0 0.0
        %586 = vmatprep.subr.mxu0 0.0
        %587 = vmatpush1.msra.mxu0 0.0
        %588 = vmatprep.subr.mxu0 0.0
        %589 = vmatpush1.msra.mxu0 0.0
        %590 = vmatprep.subr.mxu0 0.0
        %591 = vmatpush1.msra.mxu0 0.0
        %592 = vmatprep.subr.mxu0 0.0
        %593 = vmatpush1.msra.mxu0 0.0
        %594 = vmatprep.subr.mxu0 0.0
        %595 = vmatpush1.msra.mxu0 0.0
        %596 = vmatprep.subr.mxu0 0.0
        %597 = vmatpush1.msra.mxu0 0.0
        %598 = vmatprep.subr.mxu0 0.0
        %599 = vmatpush1.msra.mxu0 0.0
        %600 = vmatprep.subr.mxu0 0.0
        %601 = vmatpush1.msra.mxu0 0.0
        %602 = vmatprep.subr.mxu0 0.0
        %603 = vmatpush1.msra.mxu0 0.0
        %604 = vmatprep.subr.mxu0 0.0
        %605 = vmatpush1.msra.mxu0 0.0
        %606 = vmatprep.subr.mxu0 0.0
        %607 = vmatpush1.msra.mxu0 0.0
        %608 = vmatprep.subr.mxu0 0.0
        %609 = vmatpush1.msra.mxu0 0.0
        %610 = vmatprep.subr.mxu0 0.0
        %611 = vmatpush1.msra.mxu0 0.0
        %612 = vmatprep.subr.mxu0 0.0
        %613 = vmatpush1.msra.mxu0 0.0
        %614 = vmatprep.subr.mxu0 0.0
        %615 = vmatpush1.msra.mxu0 0.0
        %616 = vmatprep.subr.mxu0 0.0
        %617 = vmatpush1.msra.mxu0 0.0
        %618 = vmatprep.subr.mxu0 0.0
        %619 = vmatpush1.msra.mxu0 0.0
        %620 = vmatprep.subr.mxu0 0.0
        %621 = vmatpush1.msra.mxu0 0.0
        %622 = vmatprep.subr.mxu0 0.0
        %623 = vmatpush1.msra.mxu0 0.0
        %624 = vmatprep.subr.mxu0 0.0
        %625 = vmatpush1.msra.mxu0 0.0
        %626 = vmatprep.mubr.f32.mxu0 0.0
        %v627 = vand.u32 %v467, 4294901760
        %628 = vmatmul.mubr.f32.gmra.mrb[0].mxu0 %v627
        %v629 = vpop.f32.mrb[0].mxu0
        %v630 = vadd.f32 %v548, %v629
        %v631 = vpop.f32.mrb[0].mxu0
        %v632 = vadd.f32 %v550, %v631
        %633 = vdwg.mxu0
        %v634 = vand.u32 %v472, 4294901760
        %v635 = vsub.f32 %v472, %v634
        %636 = vmatprep.subr.mxu0 %v635
        %v637 = vand.u32 %v470, 4294901760
        %v638 = vsub.f32 %v470, %v637
        %639 = vmatpush1.msra.mxu0 %v638
        %640 = vmatprep.subr.mxu0 0.0
        %641 = vmatpush1.msra.mxu0 0.0
        %642 = vmatprep.subr.mxu0 0.0
        %643 = vmatpush1.msra.mxu0 0.0
        %644 = vmatprep.subr.mxu0 0.0
        %645 = vmatpush1.msra.mxu0 0.0
        %646 = vmatprep.subr.mxu0 0.0
        %647 = vmatpush1.msra.mxu0 0.0
        %648 = vmatprep.subr.mxu0 0.0
        %649 = vmatpush1.msra.mxu0 0.0
        %650 = vmatprep.subr.mxu0 0.0
        %651 = vmatpush1.msra.mxu0 0.0
        %652 = vmatprep.subr.mxu0 0.0
        %653 = vmatpush1.msra.mxu0 0.0
        %654 = vmatprep.subr.mxu0 0.0
        %655 = vmatpush1.msra.mxu0 0.0
        %656 = vmatprep.subr.mxu0 0.0
        %657 = vmatpush1.msra.mxu0 0.0
        %658 = vmatprep.subr.mxu0 0.0
        %659 = vmatpush1.msra.mxu0 0.0
        %660 = vmatprep.subr.mxu0 0.0
        %661 = vmatpush1.msra.mxu0 0.0
        %662 = vmatprep.subr.mxu0 0.0
        %663 = vmatpush1.msra.mxu0 0.0
        %664 = vmatprep.subr.mxu0 0.0
        %665 = vmatpush1.msra.mxu0 0.0
        %666 = vmatprep.subr.mxu0 0.0
        %667 = vmatpush1.msra.mxu0 0.0
        %668 = vmatprep.subr.mxu0 0.0
        %669 = vmatpush1.msra.mxu0 0.0
        %670 = vmatprep.subr.mxu0 0.0
        %671 = vmatpush1.msra.mxu0 0.0
        %672 = vmatprep.subr.mxu0 0.0
        %673 = vmatpush1.msra.mxu0 0.0
        %674 = vmatprep.subr.mxu0 0.0
        %675 = vmatpush1.msra.mxu0 0.0
        %676 = vmatprep.subr.mxu0 0.0
        %677 = vmatpush1.msra.mxu0 0.0
        %678 = vmatprep.subr.mxu0 0.0
        %679 = vmatpush1.msra.mxu0 0.0
        %680 = vmatprep.subr.mxu0 0.0
        %681 = vmatpush1.msra.mxu0 0.0
        %682 = vmatprep.subr.mxu0 0.0
        %683 = vmatpush1.msra.mxu0 0.0
        %684 = vmatprep.subr.mxu0 0.0
        %685 = vmatpush1.msra.mxu0 0.0
        %686 = vmatprep.subr.mxu0 0.0
        %687 = vmatpush1.msra.mxu0 0.0
        %688 = vmatprep.subr.mxu0 0.0
        %689 = vmatpush1.msra.mxu0 0.0
        %690 = vmatprep.subr.mxu0 0.0
        %691 = vmatpush1.msra.mxu0 0.0
        %692 = vmatprep.subr.mxu0 0.0
        %693 = vmatpush1.msra.mxu0 0.0
        %694 = vmatprep.subr.mxu0 0.0
        %695 = vmatpush1.msra.mxu0 0.0
        %696 = vmatprep.subr.mxu0 0.0
        %697 = vmatpush1.msra.mxu0 0.0
        %698 = vmatprep.subr.mxu0 0.0
        %699 = vmatpush1.msra.mxu0 0.0
        %700 = vmatprep.subr.mxu0 0.0
        %701 = vmatpush1.msra.mxu0 0.0
        %702 = vmatprep.mubr.f32.mxu0 0.0
        %v703 = vand.u32 %v467, 4294901760
        %v704 = vsub.f32 %v467, %v703
        %705 = vmatmul.mubr.f32.gmra.mrb[0].mxu0 %v704
        %v706 = vpop.f32.mrb[0].mxu0
        %v707 = vadd.f32 %v630, %v706
        %v708 = vpop.f32.mrb[0].mxu0
        %v709 = vadd.f32 %v632, %v708
        %710 = vdwg.mxu0
        %v711 = vand.u32 %v472, 4294901760
        %712 = vmatprep.subr.mxu0 %v711
        %v713 = vand.u32 %v470, 4294901760
        %714 = vmatpush1.msra.mxu0 %v713
        %715 = vmatprep.subr.mxu0 0.0
        %716 = vmatpush1.msra.mxu0 0.0
        %717 = vmatprep.subr.mxu0 0.0
        %718 = vmatpush1.msra.mxu0 0.0
        %719 = vmatprep.subr.mxu0 0.0
        %720 = vmatpush1.msra.mxu0 0.0
        %721 = vmatprep.subr.mxu0 0.0
        %722 = vmatpush1.msra.mxu0 0.0
        %723 = vmatprep.subr.mxu0 0.0
        %724 = vmatpush1.msra.mxu0 0.0
        %725 = vmatprep.subr.mxu0 0.0
        %726 = vmatpush1.msra.mxu0 0.0
        %727 = vmatprep.subr.mxu0 0.0
        %728 = vmatpush1.msra.mxu0 0.0
        %729 = vmatprep.subr.mxu0 0.0
        %730 = vmatpush1.msra.mxu0 0.0
        %731 = vmatprep.subr.mxu0 0.0
        %732 = vmatpush1.msra.mxu0 0.0
        %733 = vmatprep.subr.mxu0 0.0
        %734 = vmatpush1.msra.mxu0 0.0
        %735 = vmatprep.subr.mxu0 0.0
        %736 = vmatpush1.msra.mxu0 0.0
        %737 = vmatprep.subr.mxu0 0.0
        %738 = vmatpush1.msra.mxu0 0.0
        %739 = vmatprep.subr.mxu0 0.0
        %740 = vmatpush1.msra.mxu0 0.0
        %741 = vmatprep.subr.mxu0 0.0
        %742 = vmatpush1.msra.mxu0 0.0
        %743 = vmatprep.subr.mxu0 0.0
        %744 = vmatpush1.msra.mxu0 0.0
        %745 = vmatprep.subr.mxu0 0.0
        %746 = vmatpush1.msra.mxu0 0.0
        %747 = vmatprep.subr.mxu0 0.0
        %748 = vmatpush1.msra.mxu0 0.0
        %749 = vmatprep.subr.mxu0 0.0
        %750 = vmatpush1.msra.mxu0 0.0
        %751 = vmatprep.subr.mxu0 0.0
        %752 = vmatpush1.msra.mxu0 0.0
        %753 = vmatprep.subr.mxu0 0.0
        %754 = vmatpush1.msra.mxu0 0.0
        %755 = vmatprep.subr.mxu0 0.0
        %756 = vmatpush1.msra.mxu0 0.0
        %757 = vmatprep.subr.mxu0 0.0
        %758 = vmatpush1.msra.mxu0 0.0
        %759 = vmatprep.subr.mxu0 0.0
        %760 = vmatpush1.msra.mxu0 0.0
        %761 = vmatprep.subr.mxu0 0.0
        %762 = vmatpush1.msra.mxu0 0.0
        %763 = vmatprep.subr.mxu0 0.0
        %764 = vmatpush1.msra.mxu0 0.0
        %765 = vmatprep.subr.mxu0 0.0
        %766 = vmatpush1.msra.mxu0 0.0
        %767 = vmatprep.subr.mxu0 0.0
        %768 = vmatpush1.msra.mxu0 0.0
        %769 = vmatprep.subr.mxu0 0.0
        %770 = vmatpush1.msra.mxu0 0.0
        %771 = vmatprep.subr.mxu0 0.0
        %772 = vmatpush1.msra.mxu0 0.0
        %773 = vmatprep.subr.mxu0 0.0
        %774 = vmatpush1.msra.mxu0 0.0
        %775 = vmatprep.subr.mxu0 0.0
        %776 = vmatpush1.msra.mxu0 0.0
        %777 = vmatprep.mubr.f32.mxu0 0.0
        %v778 = vand.u32 %v467, 4294901760
        %v779 = vsub.f32 %v467, %v778
        %v780 = vand.u32 %v779, 4294901760
        %781 = vmatmul.mubr.f32.gmra.mrb[0].mxu0 %v780
        %v782 = vpop.f32.mrb[0].mxu0
        %v783 = vadd.f32 %v707, %v782
        %v784 = vpop.f32.mrb[0].mxu0
        %v785 = vadd.f32 %v709, %v784
        %786 = vdwg.mxu0
        %v787 = vand.u32 %v472, 4294901760
        %v788 = vsub.f32 %v472, %v787
        %v789 = vand.u32 %v788, 4294901760
        %790 = vmatprep.subr.mxu0 %v789
        %v791 = vand.u32 %v470, 4294901760
        %v792 = vsub.f32 %v470, %v791
        %v793 = vand.u32 %v792, 4294901760
        %794 = vmatpush1.msra.mxu0 %v793
        %795 = vmatprep.subr.mxu0 0.0
        %796 = vmatpush1.msra.mxu0 0.0
        %797 = vmatprep.subr.mxu0 0.0
        %798 = vmatpush1.msra.mxu0 0.0
        %799 = vmatprep.subr.mxu0 0.0
        %800 = vmatpush1.msra.mxu0 0.0
        %801 = vmatprep.subr.mxu0 0.0
        %802 = vmatpush1.msra.mxu0 0.0
        %803 = vmatprep.subr.mxu0 0.0
        %804 = vmatpush1.msra.mxu0 0.0
        %805 = vmatprep.subr.mxu0 0.0
        %806 = vmatpush1.msra.mxu0 0.0
        %807 = vmatprep.subr.mxu0 0.0
        %808 = vmatpush1.msra.mxu0 0.0
        %809 = vmatprep.subr.mxu0 0.0
        %810 = vmatpush1.msra.mxu0 0.0
        %811 = vmatprep.subr.mxu0 0.0
        %812 = vmatpush1.msra.mxu0 0.0
        %813 = vmatprep.subr.mxu0 0.0
        %814 = vmatpush1.msra.mxu0 0.0
        %815 = vmatprep.subr.mxu0 0.0
        %816 = vmatpush1.msra.mxu0 0.0
        %817 = vmatprep.subr.mxu0 0.0
        %818 = vmatpush1.msra.mxu0 0.0
        %819 = vmatprep.subr.mxu0 0.0
        %820 = vmatpush1.msra.mxu0 0.0
        %821 = vmatprep.subr.mxu0 0.0
        %822 = vmatpush1.msra.mxu0 0.0
        %823 = vmatprep.subr.mxu0 0.0
        %824 = vmatpush1.msra.mxu0 0.0
        %825 = vmatprep.subr.mxu0 0.0
        %826 = vmatpush1.msra.mxu0 0.0
        %827 = vmatprep.subr.mxu0 0.0
        %828 = vmatpush1.msra.mxu0 0.0
        %829 = vmatprep.subr.mxu0 0.0
        %830 = vmatpush1.msra.mxu0 0.0
        %831 = vmatprep.subr.mxu0 0.0
        %832 = vmatpush1.msra.mxu0 0.0
        %833 = vmatprep.subr.mxu0 0.0
        %834 = vmatpush1.msra.mxu0 0.0
        %835 = vmatprep.subr.mxu0 0.0
        %836 = vmatpush1.msra.mxu0 0.0
        %837 = vmatprep.subr.mxu0 0.0
        %838 = vmatpush1.msra.mxu0 0.0
        %839 = vmatprep.subr.mxu0 0.0
        %840 = vmatpush1.msra.mxu0 0.0
        %841 = vmatprep.subr.mxu0 0.0
        %842 = vmatpush1.msra.mxu0 0.0
        %843 = vmatprep.subr.mxu0 0.0
        %844 = vmatpush1.msra.mxu0 0.0
        %845 = vmatprep.subr.mxu0 0.0
        %846 = vmatpush1.msra.mxu0 0.0
        %847 = vmatprep.subr.mxu0 0.0
        %848 = vmatpush1.msra.mxu0 0.0
        %849 = vmatprep.subr.mxu0 0.0
        %850 = vmatpush1.msra.mxu0 0.0
        %851 = vmatprep.subr.mxu0 0.0
        %852 = vmatpush1.msra.mxu0 0.0
        %853 = vmatprep.subr.mxu0 0.0
        %854 = vmatpush1.msra.mxu0 0.0
        %855 = vmatprep.subr.mxu0 0.0
        %856 = vmatpush1.msra.mxu0 0.0
        %857 = vmatprep.mubr.f32.mxu0 0.0
        %v858 = vand.u32 %v467, 4294901760
        %859 = vmatmul.mubr.f32.gmra.mrb[0].mxu0 %v858
        %v860 = vpop.f32.mrb[0].mxu0
        %v861 = vadd.f32 %v783, %v860
        %v862 = vpop.f32.mrb[0].mxu0
        %v863 = vadd.f32 %v785, %v862
        %864 = vdwg.mxu0
        %v865 = vand.u32 %v472, 4294901760
        %866 = vmatprep.subr.mxu0 %v865
        %v867 = vand.u32 %v470, 4294901760
        %868 = vmatpush1.msra.mxu0 %v867
        %869 = vmatprep.subr.mxu0 0.0
        %870 = vmatpush1.msra.mxu0 0.0
        %871 = vmatprep.subr.mxu0 0.0
        %872 = vmatpush1.msra.mxu0 0.0
        %873 = vmatprep.subr.mxu0 0.0
        %874 = vmatpush1.msra.mxu0 0.0
        %875 = vmatprep.subr.mxu0 0.0
        %876 = vmatpush1.msra.mxu0 0.0
        %877 = vmatprep.subr.mxu0 0.0
        %878 = vmatpush1.msra.mxu0 0.0
        %879 = vmatprep.subr.mxu0 0.0
        %880 = vmatpush1.msra.mxu0 0.0
        %881 = vmatprep.subr.mxu0 0.0
        %882 = vmatpush1.msra.mxu0 0.0
        %883 = vmatprep.subr.mxu0 0.0
        %884 = vmatpush1.msra.mxu0 0.0
        %885 = vmatprep.subr.mxu0 0.0
        %886 = vmatpush1.msra.mxu0 0.0
        %887 = vmatprep.subr.mxu0 0.0
        %888 = vmatpush1.msra.mxu0 0.0
        %889 = vmatprep.subr.mxu0 0.0
        %890 = vmatpush1.msra.mxu0 0.0
        %891 = vmatprep.subr.mxu0 0.0
        %892 = vmatpush1.msra.mxu0 0.0
        %893 = vmatprep.subr.mxu0 0.0
        %894 = vmatpush1.msra.mxu0 0.0
        %895 = vmatprep.subr.mxu0 0.0
        %896 = vmatpush1.msra.mxu0 0.0
        %897 = vmatprep.subr.mxu0 0.0
        %898 = vmatpush1.msra.mxu0 0.0
        %899 = vmatprep.subr.mxu0 0.0
        %900 = vmatpush1.msra.mxu0 0.0
        %901 = vmatprep.subr.mxu0 0.0
        %902 = vmatpush1.msra.mxu0 0.0
        %903 = vmatprep.subr.mxu0 0.0
        %904 = vmatpush1.msra.mxu0 0.0
        %905 = vmatprep.subr.mxu0 0.0
        %906 = vmatpush1.msra.mxu0 0.0
        %907 = vmatprep.subr.mxu0 0.0
        %908 = vmatpush1.msra.mxu0 0.0
        %909 = vmatprep.subr.mxu0 0.0
        %910 = vmatpush1.msra.mxu0 0.0
        %911 = vmatprep.subr.mxu0 0.0
        %912 = vmatpush1.msra.mxu0 0.0
        %913 = vmatprep.subr.mxu0 0.0
        %914 = vmatpush1.msra.mxu0 0.0
        %915 = vmatprep.subr.mxu0 0.0
        %916 = vmatpush1.msra.mxu0 0.0
        %917 = vmatprep.subr.mxu0 0.0
        %918 = vmatpush1.msra.mxu0 0.0
        %919 = vmatprep.subr.mxu0 0.0
        %920 = vmatpush1.msra.mxu0 0.0
        %921 = vmatprep.subr.mxu0 0.0
        %922 = vmatpush1.msra.mxu0 0.0
        %923 = vmatprep.subr.mxu0 0.0
        %924 = vmatpush1.msra.mxu0 0.0
        %925 = vmatprep.subr.mxu0 0.0
        %926 = vmatpush1.msra.mxu0 0.0
        %927 = vmatprep.subr.mxu0 0.0
        %928 = vmatpush1.msra.mxu0 0.0
        %929 = vmatprep.subr.mxu0 0.0
        %930 = vmatpush1.msra.mxu0 0.0
        %931 = vmatprep.mubr.f32.mxu0 0.0
        %v932 = vand.u32 %v467, 4294901760
        %933 = vmatmul.mubr.f32.gmra.mrb[0].mxu0 %v932
        %v934 = vpop.f32.mrb[0].mxu0
        %v935 = vadd.f32 %v861, %v934
        %v936 = vpop.f32.mrb[0].mxu0
        %v937 = vadd.f32 %v863, %v936
        %938 = vdwg.mxu0
        %v940 = vcombine.high %v459, %v459
        %v942 = vsel %vm465, %v461, 0
        %v944 = vsel %vm469, %v459, 0
        %v946 = vsel %vm469, %v940, 0
        %v948 = vand.u32 %v946, 4294901760
        %949 = vmatprep.subr.mxu0 %v948
        %v950 = vand.u32 %v944, 4294901760
        %951 = vmatpush1.msra.mxu0 %v950
        %952 = vmatprep.subr.mxu0 0.0
        %953 = vmatpush1.msra.mxu0 0.0
        %954 = vmatprep.subr.mxu0 0.0
        %955 = vmatpush1.msra.mxu0 0.0
        %956 = vmatprep.subr.mxu0 0.0
        %957 = vmatpush1.msra.mxu0 0.0
        %958 = vmatprep.subr.mxu0 0.0
        %959 = vmatpush1.msra.mxu0 0.0
        %960 = vmatprep.subr.mxu0 0.0
        %961 = vmatpush1.msra.mxu0 0.0
        %962 = vmatprep.subr.mxu0 0.0
        %963 = vmatpush1.msra.mxu0 0.0
        %964 = vmatprep.subr.mxu0 0.0
        %965 = vmatpush1.msra.mxu0 0.0
        %966 = vmatprep.subr.mxu0 0.0
        %967 = vmatpush1.msra.mxu0 0.0
        %968 = vmatprep.subr.mxu0 0.0
        %969 = vmatpush1.msra.mxu0 0.0
        %970 = vmatprep.subr.mxu0 0.0
        %971 = vmatpush1.msra.mxu0 0.0
        %972 = vmatprep.subr.mxu0 0.0
        %973 = vmatpush1.msra.mxu0 0.0
        %974 = vmatprep.subr.mxu0 0.0
        %975 = vmatpush1.msra.mxu0 0.0
        %976 = vmatprep.subr.mxu0 0.0
        %977 = vmatpush1.msra.mxu0 0.0
        %978 = vmatprep.subr.mxu0 0.0
        %979 = vmatpush1.msra.mxu0 0.0
        %980 = vmatprep.subr.mxu0 0.0
        %981 = vmatpush1.msra.mxu0 0.0
        %982 = vmatprep.subr.mxu0 0.0
        %983 = vmatpush1.msra.mxu0 0.0
        %984 = vmatprep.subr.mxu0 0.0
        %985 = vmatpush1.msra.mxu0 0.0
        %986 = vmatprep.subr.mxu0 0.0
        %987 = vmatpush1.msra.mxu0 0.0
        %988 = vmatprep.subr.mxu0 0.0
        %989 = vmatpush1.msra.mxu0 0.0
        %990 = vmatprep.subr.mxu0 0.0
        %991 = vmatpush1.msra.mxu0 0.0
        %992 = vmatprep.subr.mxu0 0.0
        %993 = vmatpush1.msra.mxu0 0.0
        %994 = vmatprep.subr.mxu0 0.0
        %995 = vmatpush1.msra.mxu0 0.0
        %996 = vmatprep.subr.mxu0 0.0
        %997 = vmatpush1.msra.mxu0 0.0
        %998 = vmatprep.subr.mxu0 0.0
        %999 = vmatpush1.msra.mxu0 0.0
        %1000 = vmatprep.subr.mxu0 0.0
        %1001 = vmatpush1.msra.mxu0 0.0
        %1002 = vmatprep.subr.mxu0 0.0
        %1003 = vmatpush1.msra.mxu0 0.0
        %1004 = vmatprep.subr.mxu0 0.0
        %1005 = vmatpush1.msra.mxu0 0.0
        %1006 = vmatprep.subr.mxu0 0.0
        %1007 = vmatpush1.msra.mxu0 0.0
        %1008 = vmatprep.subr.mxu0 0.0
        %1009 = vmatpush1.msra.mxu0 0.0
        %1010 = vmatprep.subr.mxu0 0.0
        %1011 = vmatpush1.msra.mxu0 0.0
        %1012 = vmatprep.subr.mxu0 0.0
        %1013 = vmatpush1.msra.mxu0 0.0
        %1014 = vmatprep.mubr.f32.mxu0 0.0
        %v1015 = vand.u32 %v942, 4294901760
        %v1016 = vsub.f32 %v942, %v1015
        %v1017 = vand.u32 %v1016, 4294901760
        %v1018 = vsub.f32 %v1016, %v1017
        %v1019 = vand.u32 %v1018, 4294901760
        %1020 = vmatmul.mubr.f32.gmra.mrb[0].mxu0 %v1019
        %v1021 = vpop.f32.mrb[0].mxu0
        %v1022 = vadd.f32 %v935, %v1021
        %v1023 = vpop.f32.mrb[0].mxu0
        %v1024 = vadd.f32 %v937, %v1023
        %1025 = vdwg.mxu0
        %v1026 = vand.u32 %v946, 4294901760
        %v1027 = vsub.f32 %v946, %v1026
        %v1028 = vand.u32 %v1027, 4294901760
        %v1029 = vsub.f32 %v1027, %v1028
        %v1030 = vand.u32 %v1029, 4294901760
        %1031 = vmatprep.subr.mxu0 %v1030
        %v1032 = vand.u32 %v944, 4294901760
        %v1033 = vsub.f32 %v944, %v1032
        %v1034 = vand.u32 %v1033, 4294901760
        %v1035 = vsub.f32 %v1033, %v1034
        %v1036 = vand.u32 %v1035, 4294901760
        %1037 = vmatpush1.msra.mxu0 %v1036
        %1038 = vmatprep.subr.mxu0 0.0
        %1039 = vmatpush1.msra.mxu0 0.0
        %1040 = vmatprep.subr.mxu0 0.0
        %1041 = vmatpush1.msra.mxu0 0.0
        %1042 = vmatprep.subr.mxu0 0.0
        %1043 = vmatpush1.msra.mxu0 0.0
        %1044 = vmatprep.subr.mxu0 0.0
        %1045 = vmatpush1.msra.mxu0 0.0
        %1046 = vmatprep.subr.mxu0 0.0
        %1047 = vmatpush1.msra.mxu0 0.0
        %1048 = vmatprep.subr.mxu0 0.0
        %1049 = vmatpush1.msra.mxu0 0.0
        %1050 = vmatprep.subr.mxu0 0.0
        %1051 = vmatpush1.msra.mxu0 0.0
        %1052 = vmatprep.subr.mxu0 0.0
        %1053 = vmatpush1.msra.mxu0 0.0
        %1054 = vmatprep.subr.mxu0 0.0
        %1055 = vmatpush1.msra.mxu0 0.0
        %1056 = vmatprep.subr.mxu0 0.0
        %1057 = vmatpush1.msra.mxu0 0.0
        %1058 = vmatprep.subr.mxu0 0.0
        %1059 = vmatpush1.msra.mxu0 0.0
        %1060 = vmatprep.subr.mxu0 0.0
        %1061 = vmatpush1.msra.mxu0 0.0
        %1062 = vmatprep.subr.mxu0 0.0
        %1063 = vmatpush1.msra.mxu0 0.0
        %1064 = vmatprep.subr.mxu0 0.0
        %1065 = vmatpush1.msra.mxu0 0.0
        %1066 = vmatprep.subr.mxu0 0.0
        %1067 = vmatpush1.msra.mxu0 0.0
        %1068 = vmatprep.subr.mxu0 0.0
        %1069 = vmatpush1.msra.mxu0 0.0
        %1070 = vmatprep.subr.mxu0 0.0
        %1071 = vmatpush1.msra.mxu0 0.0
        %1072 = vmatprep.subr.mxu0 0.0
        %1073 = vmatpush1.msra.mxu0 0.0
        %1074 = vmatprep.subr.mxu0 0.0
        %1075 = vmatpush1.msra.mxu0 0.0
        %1076 = vmatprep.subr.mxu0 0.0
        %1077 = vmatpush1.msra.mxu0 0.0
        %1078 = vmatprep.subr.mxu0 0.0
        %1079 = vmatpush1.msra.mxu0 0.0
        %1080 = vmatprep.subr.mxu0 0.0
        %1081 = vmatpush1.msra.mxu0 0.0
        %1082 = vmatprep.subr.mxu0 0.0
        %1083 = vmatpush1.msra.mxu0 0.0
        %1084 = vmatprep.subr.mxu0 0.0
        %1085 = vmatpush1.msra.mxu0 0.0
        %1086 = vmatprep.subr.mxu0 0.0
        %1087 = vmatpush1.msra.mxu0 0.0
        %1088 = vmatprep.subr.mxu0 0.0
        %1089 = vmatpush1.msra.mxu0 0.0
        %1090 = vmatprep.subr.mxu0 0.0
        %1091 = vmatpush1.msra.mxu0 0.0
        %1092 = vmatprep.subr.mxu0 0.0
        %1093 = vmatpush1.msra.mxu0 0.0
        %1094 = vmatprep.subr.mxu0 0.0
        %1095 = vmatpush1.msra.mxu0 0.0
        %1096 = vmatprep.subr.mxu0 0.0
        %1097 = vmatpush1.msra.mxu0 0.0
        %1098 = vmatprep.subr.mxu0 0.0
        %1099 = vmatpush1.msra.mxu0 0.0
        %1100 = vmatprep.mubr.f32.mxu0 0.0
        %v1101 = vand.u32 %v942, 4294901760
        %1102 = vmatmul.mubr.f32.gmra.mrb[0].mxu0 %v1101
        %v1103 = vpop.f32.mrb[0].mxu0
        %v1104 = vadd.f32 %v1022, %v1103
        %v1105 = vpop.f32.mrb[0].mxu0
        %v1106 = vadd.f32 %v1024, %v1105
        %1107 = vdwg.mxu0
        %v1108 = vand.u32 %v946, 4294901760
        %v1109 = vsub.f32 %v946, %v1108
        %1110 = vmatprep.subr.mxu0 %v1109
        %v1111 = vand.u32 %v944, 4294901760
        %v1112 = vsub.f32 %v944, %v1111
        %1113 = vmatpush1.msra.mxu0 %v1112
        %1114 = vmatprep.subr.mxu0 0.0
        %1115 = vmatpush1.msra.mxu0 0.0
        %1116 = vmatprep.subr.mxu0 0.0
        %1117 = vmatpush1.msra.mxu0 0.0
        %1118 = vmatprep.subr.mxu0 0.0
        %1119 = vmatpush1.msra.mxu0 0.0
        %1120 = vmatprep.subr.mxu0 0.0
        %1121 = vmatpush1.msra.mxu0 0.0
        %1122 = vmatprep.subr.mxu0 0.0
        %1123 = vmatpush1.msra.mxu0 0.0
        %1124 = vmatprep.subr.mxu0 0.0
        %1125 = vmatpush1.msra.mxu0 0.0
        %1126 = vmatprep.subr.mxu0 0.0
        %1127 = vmatpush1.msra.mxu0 0.0
        %1128 = vmatprep.subr.mxu0 0.0
        %1129 = vmatpush1.msra.mxu0 0.0
        %1130 = vmatprep.subr.mxu0 0.0
        %1131 = vmatpush1.msra.mxu0 0.0
        %1132 = vmatprep.subr.mxu0 0.0
        %1133 = vmatpush1.msra.mxu0 0.0
        %1134 = vmatprep.subr.mxu0 0.0
        %1135 = vmatpush1.msra.mxu0 0.0
        %1136 = vmatprep.subr.mxu0 0.0
        %1137 = vmatpush1.msra.mxu0 0.0
        %1138 = vmatprep.subr.mxu0 0.0
        %1139 = vmatpush1.msra.mxu0 0.0
        %1140 = vmatprep.subr.mxu0 0.0
        %1141 = vmatpush1.msra.mxu0 0.0
        %1142 = vmatprep.subr.mxu0 0.0
        %1143 = vmatpush1.msra.mxu0 0.0
        %1144 = vmatprep.subr.mxu0 0.0
        %1145 = vmatpush1.msra.mxu0 0.0
        %1146 = vmatprep.subr.mxu0 0.0
        %1147 = vmatpush1.msra.mxu0 0.0
        %1148 = vmatprep.subr.mxu0 0.0
        %1149 = vmatpush1.msra.mxu0 0.0
        %1150 = vmatprep.subr.mxu0 0.0
        %1151 = vmatpush1.msra.mxu0 0.0
        %1152 = vmatprep.subr.mxu0 0.0
        %1153 = vmatpush1.msra.mxu0 0.0
        %1154 = vmatprep.subr.mxu0 0.0
        %1155 = vmatpush1.msra.mxu0 0.0
        %1156 = vmatprep.subr.mxu0 0.0
        %1157 = vmatpush1.msra.mxu0 0.0
        %1158 = vmatprep.subr.mxu0 0.0
        %1159 = vmatpush1.msra.mxu0 0.0
        %1160 = vmatprep.subr.mxu0 0.0
        %1161 = vmatpush1.msra.mxu0 0.0
        %1162 = vmatprep.subr.mxu0 0.0
        %1163 = vmatpush1.msra.mxu0 0.0
        %1164 = vmatprep.subr.mxu0 0.0
        %1165 = vmatpush1.msra.mxu0 0.0
        %1166 = vmatprep.subr.mxu0 0.0
        %1167 = vmatpush1.msra.mxu0 0.0
        %1168 = vmatprep.subr.mxu0 0.0
        %1169 = vmatpush1.msra.mxu0 0.0
        %1170 = vmatprep.subr.mxu0 0.0
        %1171 = vmatpush1.msra.mxu0 0.0
        %1172 = vmatprep.subr.mxu0 0.0
        %1173 = vmatpush1.msra.mxu0 0.0
        %1174 = vmatprep.subr.mxu0 0.0
        %1175 = vmatpush1.msra.mxu0 0.0
        %1176 = vmatprep.mubr.f32.mxu0 0.0
        %v1177 = vand.u32 %v942, 4294901760
        %v1178 = vsub.f32 %v942, %v1177
        %1179 = vmatmul.mubr.f32.gmra.mrb[0].mxu0 %v1178
        %v1180 = vpop.f32.mrb[0].mxu0
        %v1181 = vadd.f32 %v1104, %v1180
        %v1182 = vpop.f32.mrb[0].mxu0
        %v1183 = vadd.f32 %v1106, %v1182
        %1184 = vdwg.mxu0
        %v1185 = vand.u32 %v946, 4294901760
        %1186 = vmatprep.subr.mxu0 %v1185
        %v1187 = vand.u32 %v944, 4294901760
        %1188 = vmatpush1.msra.mxu0 %v1187
        %1189 = vmatprep.subr.mxu0 0.0
        %1190 = vmatpush1.msra.mxu0 0.0
        %1191 = vmatprep.subr.mxu0 0.0
        %1192 = vmatpush1.msra.mxu0 0.0
        %1193 = vmatprep.subr.mxu0 0.0
        %1194 = vmatpush1.msra.mxu0 0.0
        %1195 = vmatprep.subr.mxu0 0.0
        %1196 = vmatpush1.msra.mxu0 0.0
        %1197 = vmatprep.subr.mxu0 0.0
        %1198 = vmatpush1.msra.mxu0 0.0
        %1199 = vmatprep.subr.mxu0 0.0
        %1200 = vmatpush1.msra.mxu0 0.0
        %1201 = vmatprep.subr.mxu0 0.0
        %1202 = vmatpush1.msra.mxu0 0.0
        %1203 = vmatprep.subr.mxu0 0.0
        %1204 = vmatpush1.msra.mxu0 0.0
        %1205 = vmatprep.subr.mxu0 0.0
        %1206 = vmatpush1.msra.mxu0 0.0
        %1207 = vmatprep.subr.mxu0 0.0
        %1208 = vmatpush1.msra.mxu0 0.0
        %1209 = vmatprep.subr.mxu0 0.0
        %1210 = vmatpush1.msra.mxu0 0.0
        %1211 = vmatprep.subr.mxu0 0.0
        %1212 = vmatpush1.msra.mxu0 0.0
        %1213 = vmatprep.subr.mxu0 0.0
        %1214 = vmatpush1.msra.mxu0 0.0
        %1215 = vmatprep.subr.mxu0 0.0
        %1216 = vmatpush1.msra.mxu0 0.0
        %1217 = vmatprep.subr.mxu0 0.0
        %1218 = vmatpush1.msra.mxu0 0.0
        %1219 = vmatprep.subr.mxu0 0.0
        %1220 = vmatpush1.msra.mxu0 0.0
        %1221 = vmatprep.subr.mxu0 0.0
        %1222 = vmatpush1.msra.mxu0 0.0
        %1223 = vmatprep.subr.mxu0 0.0
        %1224 = vmatpush1.msra.mxu0 0.0
        %1225 = vmatprep.subr.mxu0 0.0
        %1226 = vmatpush1.msra.mxu0 0.0
        %1227 = vmatprep.subr.mxu0 0.0
        %1228 = vmatpush1.msra.mxu0 0.0
        %1229 = vmatprep.subr.mxu0 0.0
        %1230 = vmatpush1.msra.mxu0 0.0
        %1231 = vmatprep.subr.mxu0 0.0
        %1232 = vmatpush1.msra.mxu0 0.0
        %1233 = vmatprep.subr.mxu0 0.0
        %1234 = vmatpush1.msra.mxu0 0.0
        %1235 = vmatprep.subr.mxu0 0.0
        %1236 = vmatpush1.msra.mxu0 0.0
        %1237 = vmatprep.subr.mxu0 0.0
        %1238 = vmatpush1.msra.mxu0 0.0
        %1239 = vmatprep.subr.mxu0 0.0
        %1240 = vmatpush1.msra.mxu0 0.0
        %1241 = vmatprep.subr.mxu0 0.0
        %1242 = vmatpush1.msra.mxu0 0.0
        %1243 = vmatprep.subr.mxu0 0.0
        %1244 = vmatpush1.msra.mxu0 0.0
        %1245 = vmatprep.subr.mxu0 0.0
        %1246 = vmatpush1.msra.mxu0 0.0
        %1247 = vmatprep.subr.mxu0 0.0
        %1248 = vmatpush1.msra.mxu0 0.0
        %1249 = vmatprep.subr.mxu0 0.0
        %1250 = vmatpush1.msra.mxu0 0.0
        %1251 = vmatprep.mubr.f32.mxu0 0.0
        %v1252 = vand.u32 %v942, 4294901760
        %v1253 = vsub.f32 %v942, %v1252
        %v1254 = vand.u32 %v1253, 4294901760
        %1255 = vmatmul.mubr.f32.gmra.mrb[0].mxu0 %v1254
        %v1256 = vpop.f32.mrb[0].mxu0
        %v1257 = vadd.f32 %v1181, %v1256
        %v1258 = vpop.f32.mrb[0].mxu0
        %v1259 = vadd.f32 %v1183, %v1258
        %1260 = vdwg.mxu0
        %v1261 = vand.u32 %v946, 4294901760
        %v1262 = vsub.f32 %v946, %v1261
        %v1263 = vand.u32 %v1262, 4294901760
        %1264 = vmatprep.subr.mxu0 %v1263
        %v1265 = vand.u32 %v944, 4294901760
        %v1266 = vsub.f32 %v944, %v1265
        %v1267 = vand.u32 %v1266, 4294901760
        %1268 = vmatpush1.msra.mxu0 %v1267
        %1269 = vmatprep.subr.mxu0 0.0
        %1270 = vmatpush1.msra.mxu0 0.0
        %1271 = vmatprep.subr.mxu0 0.0
        %1272 = vmatpush1.msra.mxu0 0.0
        %1273 = vmatprep.subr.mxu0 0.0
        %1274 = vmatpush1.msra.mxu0 0.0
        %1275 = vmatprep.subr.mxu0 0.0
        %1276 = vmatpush1.msra.mxu0 0.0
        %1277 = vmatprep.subr.mxu0 0.0
        %1278 = vmatpush1.msra.mxu0 0.0
        %1279 = vmatprep.subr.mxu0 0.0
        %1280 = vmatpush1.msra.mxu0 0.0
        %1281 = vmatprep.subr.mxu0 0.0
        %1282 = vmatpush1.msra.mxu0 0.0
        %1283 = vmatprep.subr.mxu0 0.0
        %1284 = vmatpush1.msra.mxu0 0.0
        %1285 = vmatprep.subr.mxu0 0.0
        %1286 = vmatpush1.msra.mxu0 0.0
        %1287 = vmatprep.subr.mxu0 0.0
        %1288 = vmatpush1.msra.mxu0 0.0
        %1289 = vmatprep.subr.mxu0 0.0
        %1290 = vmatpush1.msra.mxu0 0.0
        %1291 = vmatprep.subr.mxu0 0.0
        %1292 = vmatpush1.msra.mxu0 0.0
        %1293 = vmatprep.subr.mxu0 0.0
        %1294 = vmatpush1.msra.mxu0 0.0
        %1295 = vmatprep.subr.mxu0 0.0
        %1296 = vmatpush1.msra.mxu0 0.0
        %1297 = vmatprep.subr.mxu0 0.0
        %1298 = vmatpush1.msra.mxu0 0.0
        %1299 = vmatprep.subr.mxu0 0.0
        %1300 = vmatpush1.msra.mxu0 0.0
        %1301 = vmatprep.subr.mxu0 0.0
        %1302 = vmatpush1.msra.mxu0 0.0
        %1303 = vmatprep.subr.mxu0 0.0
        %1304 = vmatpush1.msra.mxu0 0.0
        %1305 = vmatprep.subr.mxu0 0.0
        %1306 = vmatpush1.msra.mxu0 0.0
        %1307 = vmatprep.subr.mxu0 0.0
        %1308 = vmatpush1.msra.mxu0 0.0
        %1309 = vmatprep.subr.mxu0 0.0
        %1310 = vmatpush1.msra.mxu0 0.0
        %1311 = vmatprep.subr.mxu0 0.0
        %1312 = vmatpush1.msra.mxu0 0.0
        %1313 = vmatprep.subr.mxu0 0.0
        %1314 = vmatpush1.msra.mxu0 0.0
        %1315 = vmatprep.subr.mxu0 0.0
        %1316 = vmatpush1.msra.mxu0 0.0
        %1317 = vmatprep.subr.mxu0 0.0
        %1318 = vmatpush1.msra.mxu0 0.0
        %1319 = vmatprep.subr.mxu0 0.0
        %1320 = vmatpush1.msra.mxu0 0.0
        %1321 = vmatprep.subr.mxu0 0.0
        %1322 = vmatpush1.msra.mxu0 0.0
        %1323 = vmatprep.subr.mxu0 0.0
        %1324 = vmatpush1.msra.mxu0 0.0
        %1325 = vmatprep.subr.mxu0 0.0
        %1326 = vmatpush1.msra.mxu0 0.0
        %1327 = vmatprep.subr.mxu0 0.0
        %1328 = vmatpush1.msra.mxu0 0.0
        %1329 = vmatprep.subr.mxu0 0.0
        %1330 = vmatpush1.msra.mxu0 0.0
        %1331 = vmatprep.mubr.f32.mxu0 0.0
        %v1332 = vand.u32 %v942, 4294901760
        %1333 = vmatmul.mubr.f32.gmra.mrb[0].mxu0 %v1332
        %v1334 = vpop.f32.mrb[0].mxu0
        %v1335 = vadd.f32 %v1257, %v1334
        %v1336 = vpop.f32.mrb[0].mxu0
        %v1337 = vadd.f32 %v1259, %v1336
        %1338 = vdwg.mxu0
        %v1339 = vand.u32 %v946, 4294901760
        %1340 = vmatprep.subr.mxu0 %v1339
        %v1341 = vand.u32 %v944, 4294901760
        %1342 = vmatpush1.msra.mxu0 %v1341
        %1343 = vmatprep.subr.mxu0 0.0
        %1344 = vmatpush1.msra.mxu0 0.0
        %1345 = vmatprep.subr.mxu0 0.0
        %1346 = vmatpush1.msra.mxu0 0.0
        %1347 = vmatprep.subr.mxu0 0.0
        %1348 = vmatpush1.msra.mxu0 0.0
        %1349 = vmatprep.subr.mxu0 0.0
        %1350 = vmatpush1.msra.mxu0 0.0
        %1351 = vmatprep.subr.mxu0 0.0
        %1352 = vmatpush1.msra.mxu0 0.0
        %1353 = vmatprep.subr.mxu0 0.0
        %1354 = vmatpush1.msra.mxu0 0.0
        %1355 = vmatprep.subr.mxu0 0.0
        %1356 = vmatpush1.msra.mxu0 0.0
        %1357 = vmatprep.subr.mxu0 0.0
        %1358 = vmatpush1.msra.mxu0 0.0
        %1359 = vmatprep.subr.mxu0 0.0
        %1360 = vmatpush1.msra.mxu0 0.0
        %1361 = vmatprep.subr.mxu0 0.0
        %1362 = vmatpush1.msra.mxu0 0.0
        %1363 = vmatprep.subr.mxu0 0.0
        %1364 = vmatpush1.msra.mxu0 0.0
        %1365 = vmatprep.subr.mxu0 0.0
        %1366 = vmatpush1.msra.mxu0 0.0
        %1367 = vmatprep.subr.mxu0 0.0
        %1368 = vmatpush1.msra.mxu0 0.0
        %1369 = vmatprep.subr.mxu0 0.0
        %1370 = vmatpush1.msra.mxu0 0.0
        %1371 = vmatprep.subr.mxu0 0.0
        %1372 = vmatpush1.msra.mxu0 0.0
        %1373 = vmatprep.subr.mxu0 0.0
        %1374 = vmatpush1.msra.mxu0 0.0
        %1375 = vmatprep.subr.mxu0 0.0
        %1376 = vmatpush1.msra.mxu0 0.0
        %1377 = vmatprep.subr.mxu0 0.0
        %1378 = vmatpush1.msra.mxu0 0.0
        %1379 = vmatprep.subr.mxu0 0.0
        %1380 = vmatpush1.msra.mxu0 0.0
        %1381 = vmatprep.subr.mxu0 0.0
        %1382 = vmatpush1.msra.mxu0 0.0
        %1383 = vmatprep.subr.mxu0 0.0
        %1384 = vmatpush1.msra.mxu0 0.0
        %1385 = vmatprep.subr.mxu0 0.0
        %1386 = vmatpush1.msra.mxu0 0.0
        %1387 = vmatprep.subr.mxu0 0.0
        %1388 = vmatpush1.msra.mxu0 0.0
        %1389 = vmatprep.subr.mxu0 0.0
        %1390 = vmatpush1.msra.mxu0 0.0
        %1391 = vmatprep.subr.mxu0 0.0
        %1392 = vmatpush1.msra.mxu0 0.0
        %1393 = vmatprep.subr.mxu0 0.0
        %1394 = vmatpush1.msra.mxu0 0.0
        %1395 = vmatprep.subr.mxu0 0.0
        %1396 = vmatpush1.msra.mxu0 0.0
        %1397 = vmatprep.subr.mxu0 0.0
        %1398 = vmatpush1.msra.mxu0 0.0
        %1399 = vmatprep.subr.mxu0 0.0
        %1400 = vmatpush1.msra.mxu0 0.0
        %1401 = vmatprep.subr.mxu0 0.0
        %1402 = vmatpush1.msra.mxu0 0.0
        %1403 = vmatprep.subr.mxu0 0.0
        %1404 = vmatpush1.msra.mxu0 0.0
        %1405 = vmatprep.mubr.f32.mxu0 0.0
        %v1406 = vand.u32 %v942, 4294901760
        %1407 = vmatmul.mubr.f32.gmra.mrb[0].mxu0 %v1406
        %v1408 = vpop.f32.mrb[0].mxu0
        %v1409 = vadd.f32 %v1335, %v1408
        %v1410 = vpop.f32.mrb[0].mxu0
        %v1411 = vadd.f32 %v1337, %v1410
        %1412 = vdwg.mxu0
        %v1413 = vld [vmem:[%s4] sm:$0xf]
        %1415 = vset.pattern.permute.xlu0 0
        %1416 = vperm.xlu0 %1415, %v1413
        %v1417 = vpop.permute.xlu0 %1416
        %v1419 = vadd.f32 %v1409, %v1417
        %v1420 = vadd.f32 %v1411, %v1417
        %v1421 = vmax.f32 %v1419, 0.0
        %v1422 = vmax.f32 %v1420, 0.0
        %v1423 = vld [vmem:[%s5] sm:$0x3]
        %v1424 = vld [vmem:[%s6] sm:$0x3]
        %1426 = vset.pattern.permute.xlu0 0
        %1427 = vperm.xlu0 %1426, %v1424
        %v1428 = vpop.permute.xlu0 %1427
        %v1431 = vsel %vm465, %v1423, 0
        %v1434 = vsel %vm469, %v1421, 0
        %v1437 = vsel %vm469, %v1422, 0
        %v1439 = vand.u32 %v1437, 4294901760
        %1440 = vmatprep.subr.mxu0 %v1439
        %v1441 = vand.u32 %v1434, 4294901760
        %1442 = vmatpush1.msra.mxu0 %v1441
        %1443 = vmatprep.subr.mxu0 0.0
        %1444 = vmatpush1.msra.mxu0 0.0
        %1445 = vmatprep.subr.mxu0 0.0
        %1446 = vmatpush1.msra.mxu0 0.0
        %1447 = vmatprep.subr.mxu0 0.0
        %1448 = vmatpush1.msra.mxu0 0.0
        %1449 = vmatprep.subr.mxu0 0.0
        %1450 = vmatpush1.msra.mxu0 0.0
        %1451 = vmatprep.subr.mxu0 0.0
        %1452 = vmatpush1.msra.mxu0 0.0
        %1453 = vmatprep.subr.mxu0 0.0
        %1454 = vmatpush1.msra.mxu0 0.0
        %1455 = vmatprep.subr.mxu0 0.0
        %1456 = vmatpush1.msra.mxu0 0.0
        %1457 = vmatprep.subr.mxu0 0.0
        %1458 = vmatpush1.msra.mxu0 0.0
        %1459 = vmatprep.subr.mxu0 0.0
        %1460 = vmatpush1.msra.mxu0 0.0
        %1461 = vmatprep.subr.mxu0 0.0
        %1462 = vmatpush1.msra.mxu0 0.0
        %1463 = vmatprep.subr.mxu0 0.0
        %1464 = vmatpush1.msra.mxu0 0.0
        %1465 = vmatprep.subr.mxu0 0.0
        %1466 = vmatpush1.msra.mxu0 0.0
        %1467 = vmatprep.subr.mxu0 0.0
        %1468 = vmatpush1.msra.mxu0 0.0
        %1469 = vmatprep.subr.mxu0 0.0
        %1470 = vmatpush1.msra.mxu0 0.0
        %1471 = vmatprep.subr.mxu0 0.0
        %1472 = vmatpush1.msra.mxu0 0.0
        %1473 = vmatprep.subr.mxu0 0.0
        %1474 = vmatpush1.msra.mxu0 0.0
        %1475 = vmatprep.subr.mxu0 0.0
        %1476 = vmatpush1.msra.mxu0 0.0
        %1477 = vmatprep.subr.mxu0 0.0
        %1478 = vmatpush1.msra.mxu0 0.0
        %1479 = vmatprep.subr.mxu0 0.0
        %1480 = vmatpush1.msra.mxu0 0.0
        %1481 = vmatprep.subr.mxu0 0.0
        %1482 = vmatpush1.msra.mxu0 0.0
        %1483 = vmatprep.subr.mxu0 0.0
        %1484 = vmatpush1.msra.mxu0 0.0
        %1485 = vmatprep.subr.mxu0 0.0
        %1486 = vmatpush1.msra.mxu0 0.0
        %1487 = vmatprep.subr.mxu0 0.0
        %1488 = vmatpush1.msra.mxu0 0.0
        %1489 = vmatprep.subr.mxu0 0.0
        %1490 = vmatpush1.msra.mxu0 0.0
        %1491 = vmatprep.subr.mxu0 0.0
        %1492 = vmatpush1.msra.mxu0 0.0
        %1493 = vmatprep.subr.mxu0 0.0
        %1494 = vmatpush1.msra.mxu0 0.0
        %1495 = vmatprep.subr.mxu0 0.0
        %1496 = vmatpush1.msra.mxu0 0.0
        %1497 = vmatprep.subr.mxu0 0.0
        %1498 = vmatpush1.msra.mxu0 0.0
        %1499 = vmatprep.subr.mxu0 0.0
        %1500 = vmatpush1.msra.mxu0 0.0
        %1501 = vmatprep.subr.mxu0 0.0
        %1502 = vmatpush1.msra.mxu0 0.0
        %1503 = vmatprep.subr.mxu0 0.0
        %1504 = vmatpush1.msra.mxu0 0.0
        %1505 = vmatprep.mubr.f32.mxu0 0.0
        %v1506 = vand.u32 %v1431, 4294901760
        %v1507 = vsub.f32 %v1431, %v1506
        %v1508 = vand.u32 %v1507, 4294901760
        %v1509 = vsub.f32 %v1507, %v1508
        %v1510 = vand.u32 %v1509, 4294901760
        %1511 = vmatmul.mubr.f32.gmra.mrb[0].mxu0 %v1510
        %v1512 = vpop.f32.mrb[0].mxu0
        %v1513 = vadd.f32 %v1428, %v1512
        %v1514 = vpop.f32.mrb[0].mxu0
        %v1515 = vadd.f32 %v1428, %v1514
        %1516 = vdwg.mxu0
        %v1517 = vand.u32 %v1437, 4294901760
        %v1518 = vsub.f32 %v1437, %v1517
        %v1519 = vand.u32 %v1518, 4294901760
        %v1520 = vsub.f32 %v1518, %v1519
        %v1521 = vand.u32 %v1520, 4294901760
        %1522 = vmatprep.subr.mxu0 %v1521
        %v1523 = vand.u32 %v1434, 4294901760
        %v1524 = vsub.f32 %v1434, %v1523
        %v1525 = vand.u32 %v1524, 4294901760
        %v1526 = vsub.f32 %v1524, %v1525
        %v1527 = vand.u32 %v1526, 4294901760
        %1528 = vmatpush1.msra.mxu0 %v1527
        %1529 = vmatprep.subr.mxu0 0.0
        %1530 = vmatpush1.msra.mxu0 0.0
        %1531 = vmatprep.subr.mxu0 0.0
        %1532 = vmatpush1.msra.mxu0 0.0
        %1533 = vmatprep.subr.mxu0 0.0
        %1534 = vmatpush1.msra.mxu0 0.0
        %1535 = vmatprep.subr.mxu0 0.0
        %1536 = vmatpush1.msra.mxu0 0.0
        %1537 = vmatprep.subr.mxu0 0.0
        %1538 = vmatpush1.msra.mxu0 0.0
        %1539 = vmatprep.subr.mxu0 0.0
        %1540 = vmatpush1.msra.mxu0 0.0
        %1541 = vmatprep.subr.mxu0 0.0
        %1542 = vmatpush1.msra.mxu0 0.0
        %1543 = vmatprep.subr.mxu0 0.0
        %1544 = vmatpush1.msra.mxu0 0.0
        %1545 = vmatprep.subr.mxu0 0.0
        %1546 = vmatpush1.msra.mxu0 0.0
        %1547 = vmatprep.subr.mxu0 0.0
        %1548 = vmatpush1.msra.mxu0 0.0
        %1549 = vmatprep.subr.mxu0 0.0
        %1550 = vmatpush1.msra.mxu0 0.0
        %1551 = vmatprep.subr.mxu0 0.0
        %1552 = vmatpush1.msra.mxu0 0.0
        %1553 = vmatprep.subr.mxu0 0.0
        %1554 = vmatpush1.msra.mxu0 0.0
        %1555 = vmatprep.subr.mxu0 0.0
        %1556 = vmatpush1.msra.mxu0 0.0
        %1557 = vmatprep.subr.mxu0 0.0
        %1558 = vmatpush1.msra.mxu0 0.0
        %1559 = vmatprep.subr.mxu0 0.0
        %1560 = vmatpush1.msra.mxu0 0.0
        %1561 = vmatprep.subr.mxu0 0.0
        %1562 = vmatpush1.msra.mxu0 0.0
        %1563 = vmatprep.subr.mxu0 0.0
        %1564 = vmatpush1.msra.mxu0 0.0
        %1565 = vmatprep.subr.mxu0 0.0
        %1566 = vmatpush1.msra.mxu0 0.0
        %1567 = vmatprep.subr.mxu0 0.0
        %1568 = vmatpush1.msra.mxu0 0.0
        %1569 = vmatprep.subr.mxu0 0.0
        %1570 = vmatpush1.msra.mxu0 0.0
        %1571 = vmatprep.subr.mxu0 0.0
        %1572 = vmatpush1.msra.mxu0 0.0
        %1573 = vmatprep.subr.mxu0 0.0
        %1574 = vmatpush1.msra.mxu0 0.0
        %1575 = vmatprep.subr.mxu0 0.0
        %1576 = vmatpush1.msra.mxu0 0.0
        %1577 = vmatprep.subr.mxu0 0.0
        %1578 = vmatpush1.msra.mxu0 0.0
        %1579 = vmatprep.subr.mxu0 0.0
        %1580 = vmatpush1.msra.mxu0 0.0
        %1581 = vmatprep.subr.mxu0 0.0
        %1582 = vmatpush1.msra.mxu0 0.0
        %1583 = vmatprep.subr.mxu0 0.0
        %1584 = vmatpush1.msra.mxu0 0.0
        %1585 = vmatprep.subr.mxu0 0.0
        %1586 = vmatpush1.msra.mxu0 0.0
        %1587 = vmatprep.subr.mxu0 0.0
        %1588 = vmatpush1.msra.mxu0 0.0
        %1589 = vmatprep.subr.mxu0 0.0
        %1590 = vmatpush1.msra.mxu0 0.0
        %1591 = vmatprep.mubr.f32.mxu0 0.0
        %v1592 = vand.u32 %v1431, 4294901760
        %1593 = vmatmul.mubr.f32.gmra.mrb[0].mxu0 %v1592
        %v1594 = vpop.f32.mrb[0].mxu0
        %v1595 = vadd.f32 %v1513, %v1594
        %v1596 = vpop.f32.mrb[0].mxu0
        %v1597 = vadd.f32 %v1515, %v1596
        %1598 = vdwg.mxu0
        %v1599 = vand.u32 %v1437, 4294901760
        %v1600 = vsub.f32 %v1437, %v1599
        %1601 = vmatprep.subr.mxu0 %v1600
        %v1602 = vand.u32 %v1434, 4294901760
        %v1603 = vsub.f32 %v1434, %v1602
        %1604 = vmatpush1.msra.mxu0 %v1603
        %1605 = vmatprep.subr.mxu0 0.0
        %1606 = vmatpush1.msra.mxu0 0.0
        %1607 = vmatprep.subr.mxu0 0.0
        %1608 = vmatpush1.msra.mxu0 0.0
        %1609 = vmatprep.subr.mxu0 0.0
        %1610 = vmatpush1.msra.mxu0 0.0
        %1611 = vmatprep.subr.mxu0 0.0
        %1612 = vmatpush1.msra.mxu0 0.0
        %1613 = vmatprep.subr.mxu0 0.0
        %1614 = vmatpush1.msra.mxu0 0.0
        %1615 = vmatprep.subr.mxu0 0.0
        %1616 = vmatpush1.msra.mxu0 0.0
        %1617 = vmatprep.subr.mxu0 0.0
        %1618 = vmatpush1.msra.mxu0 0.0
        %1619 = vmatprep.subr.mxu0 0.0
        %1620 = vmatpush1.msra.mxu0 0.0
        %1621 = vmatprep.subr.mxu0 0.0
        %1622 = vmatpush1.msra.mxu0 0.0
        %1623 = vmatprep.subr.mxu0 0.0
        %1624 = vmatpush1.msra.mxu0 0.0
        %1625 = vmatprep.subr.mxu0 0.0
        %1626 = vmatpush1.msra.mxu0 0.0
        %1627 = vmatprep.subr.mxu0 0.0
        %1628 = vmatpush1.msra.mxu0 0.0
        %1629 = vmatprep.subr.mxu0 0.0
        %1630 = vmatpush1.msra.mxu0 0.0
        %1631 = vmatprep.subr.mxu0 0.0
        %1632 = vmatpush1.msra.mxu0 0.0
        %1633 = vmatprep.subr.mxu0 0.0
        %1634 = vmatpush1.msra.mxu0 0.0
        %1635 = vmatprep.subr.mxu0 0.0
        %1636 = vmatpush1.msra.mxu0 0.0
        %1637 = vmatprep.subr.mxu0 0.0
        %1638 = vmatpush1.msra.mxu0 0.0
        %1639 = vmatprep.subr.mxu0 0.0
        %1640 = vmatpush1.msra.mxu0 0.0
        %1641 = vmatprep.subr.mxu0 0.0
        %1642 = vmatpush1.msra.mxu0 0.0
        %1643 = vmatprep.subr.mxu0 0.0
        %1644 = vmatpush1.msra.mxu0 0.0
        %1645 = vmatprep.subr.mxu0 0.0
        %1646 = vmatpush1.msra.mxu0 0.0
        %1647 = vmatprep.subr.mxu0 0.0
        %1648 = vmatpush1.msra.mxu0 0.0
        %1649 = vmatprep.subr.mxu0 0.0
        %1650 = vmatpush1.msra.mxu0 0.0
        %1651 = vmatprep.subr.mxu0 0.0
        %1652 = vmatpush1.msra.mxu0 0.0
        %1653 = vmatprep.subr.mxu0 0.0
        %1654 = vmatpush1.msra.mxu0 0.0
        %1655 = vmatprep.subr.mxu0 0.0
        %1656 = vmatpush1.msra.mxu0 0.0
        %1657 = vmatprep.subr.mxu0 0.0
        %1658 = vmatpush1.msra.mxu0 0.0
        %1659 = vmatprep.subr.mxu0 0.0
        %1660 = vmatpush1.msra.mxu0 0.0
        %1661 = vmatprep.subr.mxu0 0.0
        %1662 = vmatpush1.msra.mxu0 0.0
        %1663 = vmatprep.subr.mxu0 0.0
        %1664 = vmatpush1.msra.mxu0 0.0
        %1665 = vmatprep.subr.mxu0 0.0
        %1666 = vmatpush1.msra.mxu0 0.0
        %1667 = vmatprep.mubr.f32.mxu0 0.0
        %v1668 = vand.u32 %v1431, 4294901760
        %v1669 = vsub.f32 %v1431, %v1668
        %1670 = vmatmul.mubr.f32.gmra.mrb[0].mxu0 %v1669
        %v1671 = vpop.f32.mrb[0].mxu0
        %v1672 = vadd.f32 %v1595, %v1671
        %v1673 = vpop.f32.mrb[0].mxu0
        %v1674 = vadd.f32 %v1597, %v1673
        %1675 = vdwg.mxu0
        %v1676 = vand.u32 %v1437, 4294901760
        %1677 = vmatprep.subr.mxu0 %v1676
        %v1678 = vand.u32 %v1434, 4294901760
        %1679 = vmatpush1.msra.mxu0 %v1678
        %1680 = vmatprep.subr.mxu0 0.0
        %1681 = vmatpush1.msra.mxu0 0.0
        %1682 = vmatprep.subr.mxu0 0.0
        %1683 = vmatpush1.msra.mxu0 0.0
        %1684 = vmatprep.subr.mxu0 0.0
        %1685 = vmatpush1.msra.mxu0 0.0
        %1686 = vmatprep.subr.mxu0 0.0
        %1687 = vmatpush1.msra.mxu0 0.0
        %1688 = vmatprep.subr.mxu0 0.0
        %1689 = vmatpush1.msra.mxu0 0.0
        %1690 = vmatprep.subr.mxu0 0.0
        %1691 = vmatpush1.msra.mxu0 0.0
        %1692 = vmatprep.subr.mxu0 0.0
        %1693 = vmatpush1.msra.mxu0 0.0
        %1694 = vmatprep.subr.mxu0 0.0
        %1695 = vmatpush1.msra.mxu0 0.0
        %1696 = vmatprep.subr.mxu0 0.0
        %1697 = vmatpush1.msra.mxu0 0.0
        %1698 = vmatprep.subr.mxu0 0.0
        %1699 = vmatpush1.msra.mxu0 0.0
        %1700 = vmatprep.subr.mxu0 0.0
        %1701 = vmatpush1.msra.mxu0 0.0
        %1702 = vmatprep.subr.mxu0 0.0
        %1703 = vmatpush1.msra.mxu0 0.0
        %1704 = vmatprep.subr.mxu0 0.0
        %1705 = vmatpush1.msra.mxu0 0.0
        %1706 = vmatprep.subr.mxu0 0.0
        %1707 = vmatpush1.msra.mxu0 0.0
        %1708 = vmatprep.subr.mxu0 0.0
        %1709 = vmatpush1.msra.mxu0 0.0
        %1710 = vmatprep.subr.mxu0 0.0
        %1711 = vmatpush1.msra.mxu0 0.0
        %1712 = vmatprep.subr.mxu0 0.0
        %1713 = vmatpush1.msra.mxu0 0.0
        %1714 = vmatprep.subr.mxu0 0.0
        %1715 = vmatpush1.msra.mxu0 0.0
        %1716 = vmatprep.subr.mxu0 0.0
        %1717 = vmatpush1.msra.mxu0 0.0
        %1718 = vmatprep.subr.mxu0 0.0
        %1719 = vmatpush1.msra.mxu0 0.0
        %1720 = vmatprep.subr.mxu0 0.0
        %1721 = vmatpush1.msra.mxu0 0.0
        %1722 = vmatprep.subr.mxu0 0.0
        %1723 = vmatpush1.msra.mxu0 0.0
        %1724 = vmatprep.subr.mxu0 0.0
        %1725 = vmatpush1.msra.mxu0 0.0
        %1726 = vmatprep.subr.mxu0 0.0
        %1727 = vmatpush1.msra.mxu0 0.0
        %1728 = vmatprep.subr.mxu0 0.0
        %1729 = vmatpush1.msra.mxu0 0.0
        %1730 = vmatprep.subr.mxu0 0.0
        %1731 = vmatpush1.msra.mxu0 0.0
        %1732 = vmatprep.subr.mxu0 0.0
        %1733 = vmatpush1.msra.mxu0 0.0
        %1734 = vmatprep.subr.mxu0 0.0
        %1735 = vmatpush1.msra.mxu0 0.0
        %1736 = vmatprep.subr.mxu0 0.0
        %1737 = vmatpush1.msra.mxu0 0.0
        %1738 = vmatprep.subr.mxu0 0.0
        %1739 = vmatpush1.msra.mxu0 0.0
        %1740 = vmatprep.subr.mxu0 0.0
        %1741 = vmatpush1.msra.mxu0 0.0
        %1742 = vmatprep.mubr.f32.mxu0 0.0
        %v1743 = vand.u32 %v1431, 4294901760
        %v1744 = vsub.f32 %v1431, %v1743
        %v1745 = vand.u32 %v1744, 4294901760
        %1746 = vmatmul.mubr.f32.gmra.mrb[0].mxu0 %v1745
        %v1747 = vpop.f32.mrb[0].mxu0
        %v1748 = vadd.f32 %v1672, %v1747
        %v1749 = vpop.f32.mrb[0].mxu0
        %v1750 = vadd.f32 %v1674, %v1749
        %1751 = vdwg.mxu0
        %v1752 = vand.u32 %v1437, 4294901760
        %v1753 = vsub.f32 %v1437, %v1752
        %v1754 = vand.u32 %v1753, 4294901760
        %1755 = vmatprep.subr.mxu0 %v1754
        %v1756 = vand.u32 %v1434, 4294901760
        %v1757 = vsub.f32 %v1434, %v1756
        %v1758 = vand.u32 %v1757, 4294901760
        %1759 = vmatpush1.msra.mxu0 %v1758
        %1760 = vmatprep.subr.mxu0 0.0
        %1761 = vmatpush1.msra.mxu0 0.0
        %1762 = vmatprep.subr.mxu0 0.0
        %1763 = vmatpush1.msra.mxu0 0.0
        %1764 = vmatprep.subr.mxu0 0.0
        %1765 = vmatpush1.msra.mxu0 0.0
        %1766 = vmatprep.subr.mxu0 0.0
        %1767 = vmatpush1.msra.mxu0 0.0
        %1768 = vmatprep.subr.mxu0 0.0
        %1769 = vmatpush1.msra.mxu0 0.0
        %1770 = vmatprep.subr.mxu0 0.0
        %1771 = vmatpush1.msra.mxu0 0.0
        %1772 = vmatprep.subr.mxu0 0.0
        %1773 = vmatpush1.msra.mxu0 0.0
        %1774 = vmatprep.subr.mxu0 0.0
        %1775 = vmatpush1.msra.mxu0 0.0
        %1776 = vmatprep.subr.mxu0 0.0
        %1777 = vmatpush1.msra.mxu0 0.0
        %1778 = vmatprep.subr.mxu0 0.0
        %1779 = vmatpush1.msra.mxu0 0.0
        %1780 = vmatprep.subr.mxu0 0.0
        %1781 = vmatpush1.msra.mxu0 0.0
        %1782 = vmatprep.subr.mxu0 0.0
        %1783 = vmatpush1.msra.mxu0 0.0
        %1784 = vmatprep.subr.mxu0 0.0
        %1785 = vmatpush1.msra.mxu0 0.0
        %1786 = vmatprep.subr.mxu0 0.0
        %1787 = vmatpush1.msra.mxu0 0.0
        %1788 = vmatprep.subr.mxu0 0.0
        %1789 = vmatpush1.msra.mxu0 0.0
        %1790 = vmatprep.subr.mxu0 0.0
        %1791 = vmatpush1.msra.mxu0 0.0
        %1792 = vmatprep.subr.mxu0 0.0
        %1793 = vmatpush1.msra.mxu0 0.0
        %1794 = vmatprep.subr.mxu0 0.0
        %1795 = vmatpush1.msra.mxu0 0.0
        %1796 = vmatprep.subr.mxu0 0.0
        %1797 = vmatpush1.msra.mxu0 0.0
        %1798 = vmatprep.subr.mxu0 0.0
        %1799 = vmatpush1.msra.mxu0 0.0
        %1800 = vmatprep.subr.mxu0 0.0
        %1801 = vmatpush1.msra.mxu0 0.0
        %1802 = vmatprep.subr.mxu0 0.0
        %1803 = vmatpush1.msra.mxu0 0.0
        %1804 = vmatprep.subr.mxu0 0.0
        %1805 = vmatpush1.msra.mxu0 0.0
        %1806 = vmatprep.subr.mxu0 0.0
        %1807 = vmatpush1.msra.mxu0 0.0
        %1808 = vmatprep.subr.mxu0 0.0
        %1809 = vmatpush1.msra.mxu0 0.0
        %1810 = vmatprep.subr.mxu0 0.0
        %1811 = vmatpush1.msra.mxu0 0.0
        %1812 = vmatprep.subr.mxu0 0.0
        %1813 = vmatpush1.msra.mxu0 0.0
        %1814 = vmatprep.subr.mxu0 0.0
        %1815 = vmatpush1.msra.mxu0 0.0
        %1816 = vmatprep.subr.mxu0 0.0
        %1817 = vmatpush1.msra.mxu0 0.0
        %1818 = vmatprep.subr.mxu0 0.0
        %1819 = vmatpush1.msra.mxu0 0.0
        %1820 = vmatprep.subr.mxu0 0.0
        %1821 = vmatpush1.msra.mxu0 0.0
        %1822 = vmatprep.mubr.f32.mxu0 0.0
        %v1823 = vand.u32 %v1431, 4294901760
        %1824 = vmatmul.mubr.f32.gmra.mrb[0].mxu0 %v1823
        %v1825 = vpop.f32.mrb[0].mxu0
        %v1826 = vadd.f32 %v1748, %v1825
        %v1827 = vpop.f32.mrb[0].mxu0
        %v1828 = vadd.f32 %v1750, %v1827
        %1829 = vdwg.mxu0
        %v1830 = vand.u32 %v1437, 4294901760
        %1831 = vmatprep.subr.mxu0 %v1830
        %v1832 = vand.u32 %v1434, 4294901760
        %1833 = vmatpush1.msra.mxu0 %v1832
        %1834 = vmatprep.subr.mxu0 0.0
        %1835 = vmatpush1.msra.mxu0 0.0
        %1836 = vmatprep.subr.mxu0 0.0
        %1837 = vmatpush1.msra.mxu0 0.0
        %1838 = vmatprep.subr.mxu0 0.0
        %1839 = vmatpush1.msra.mxu0 0.0
        %1840 = vmatprep.subr.mxu0 0.0
        %1841 = vmatpush1.msra.mxu0 0.0
        %1842 = vmatprep.subr.mxu0 0.0
        %1843 = vmatpush1.msra.mxu0 0.0
        %1844 = vmatprep.subr.mxu0 0.0
        %1845 = vmatpush1.msra.mxu0 0.0
        %1846 = vmatprep.subr.mxu0 0.0
        %1847 = vmatpush1.msra.mxu0 0.0
        %1848 = vmatprep.subr.mxu0 0.0
        %1849 = vmatpush1.msra.mxu0 0.0
        %1850 = vmatprep.subr.mxu0 0.0
        %1851 = vmatpush1.msra.mxu0 0.0
        %1852 = vmatprep.subr.mxu0 0.0
        %1853 = vmatpush1.msra.mxu0 0.0
        %1854 = vmatprep.subr.mxu0 0.0
        %1855 = vmatpush1.msra.mxu0 0.0
        %1856 = vmatprep.subr.mxu0 0.0
        %1857 = vmatpush1.msra.mxu0 0.0
        %1858 = vmatprep.subr.mxu0 0.0
        %1859 = vmatpush1.msra.mxu0 0.0
        %1860 = vmatprep.subr.mxu0 0.0
        %1861 = vmatpush1.msra.mxu0 0.0
        %1862 = vmatprep.subr.mxu0 0.0
        %1863 = vmatpush1.msra.mxu0 0.0
        %1864 = vmatprep.subr.mxu0 0.0
        %1865 = vmatpush1.msra.mxu0 0.0
        %1866 = vmatprep.subr.mxu0 0.0
        %1867 = vmatpush1.msra.mxu0 0.0
        %1868 = vmatprep.subr.mxu0 0.0
        %1869 = vmatpush1.msra.mxu0 0.0
        %1870 = vmatprep.subr.mxu0 0.0
        %1871 = vmatpush1.msra.mxu0 0.0
        %1872 = vmatprep.subr.mxu0 0.0
        %1873 = vmatpush1.msra.mxu0 0.0
        %1874 = vmatprep.subr.mxu0 0.0
        %1875 = vmatpush1.msra.mxu0 0.0
        %1876 = vmatprep.subr.mxu0 0.0
        %1877 = vmatpush1.msra.mxu0 0.0
        %1878 = vmatprep.subr.mxu0 0.0
        %1879 = vmatpush1.msra.mxu0 0.0
        %1880 = vmatprep.subr.mxu0 0.0
        %1881 = vmatpush1.msra.mxu0 0.0
        %1882 = vmatprep.subr.mxu0 0.0
        %1883 = vmatpush1.msra.mxu0 0.0
        %1884 = vmatprep.subr.mxu0 0.0
        %1885 = vmatpush1.msra.mxu0 0.0
        %1886 = vmatprep.subr.mxu0 0.0
        %1887 = vmatpush1.msra.mxu0 0.0
        %1888 = vmatprep.subr.mxu0 0.0
        %1889 = vmatpush1.msra.mxu0 0.0
        %1890 = vmatprep.subr.mxu0 0.0
        %1891 = vmatpush1.msra.mxu0 0.0
        %1892 = vmatprep.subr.mxu0 0.0
        %1893 = vmatpush1.msra.mxu0 0.0
        %1894 = vmatprep.subr.mxu0 0.0
        %1895 = vmatpush1.msra.mxu0 0.0
        %1896 = vmatprep.mubr.f32.mxu0 0.0
        %v1897 = vand.u32 %v1431, 4294901760
        %1898 = vmatmul.mubr.f32.gmra.mrb[0].mxu0 %v1897
        %v1899 = vpop.f32.mrb[0].mxu0
        %v1900 = vadd.f32 %v1826, %v1899
        %v1901 = vpop.f32.mrb[0].mxu0
        %v1902 = vadd.f32 %v1828, %v1901
        %1903 = vdwg.mxu0
        %v1904 = vmax.f32 %v1900, 0.0
        %v1905 = vmax.f32 %v1902, 0.0
        %v1906 = vld [vmem:[%s7] sm:$0xf]
        %v1907 = vld [vmem:[%s8] sm:$0xf]
        %1909 = vset.pattern.permute.xlu0 0
        %1910 = vperm.xlu0 %1909, %v1907
        %v1911 = vpop.permute.xlu0 %1910
        %vm1913 = vcmask 15360
        %v1915 = vsel %vm1913, %v1906, 0
        %vm1917 = vcmask 1041408
        %v1919 = vsel %vm1917, %v1904, 0
        %v1922 = vsel %vm1917, %v1905, 0
        %v1924 = vand.u32 %v1922, 4294901760
        %1925 = vmatprep.subr.mxu0 %v1924
        %v1926 = vand.u32 %v1919, 4294901760
        %1927 = vmatpush1.msra.mxu0 %v1926
        %1928 = vmatprep.subr.mxu0 0.0
        %1929 = vmatpush1.msra.mxu0 0.0
        %1930 = vmatprep.subr.mxu0 0.0
        %1931 = vmatpush1.msra.mxu0 0.0
        %1932 = vmatprep.subr.mxu0 0.0
        %1933 = vmatpush1.msra.mxu0 0.0
        %1934 = vmatprep.subr.mxu0 0.0
        %1935 = vmatpush1.msra.mxu0 0.0
        %1936 = vmatprep.subr.mxu0 0.0
        %1937 = vmatpush1.msra.mxu0 0.0
        %1938 = vmatprep.subr.mxu0 0.0
        %1939 = vmatpush1.msra.mxu0 0.0
        %1940 = vmatprep.subr.mxu0 0.0
        %1941 = vmatpush1.msra.mxu0 0.0
        %1942 = vmatprep.subr.mxu0 0.0
        %1943 = vmatpush1.msra.mxu0 0.0
        %1944 = vmatprep.subr.mxu0 0.0
        %1945 = vmatpush1.msra.mxu0 0.0
        %1946 = vmatprep.subr.mxu0 0.0
        %1947 = vmatpush1.msra.mxu0 0.0
        %1948 = vmatprep.subr.mxu0 0.0
        %1949 = vmatpush1.msra.mxu0 0.0
        %1950 = vmatprep.subr.mxu0 0.0
        %1951 = vmatpush1.msra.mxu0 0.0
        %1952 = vmatprep.subr.mxu0 0.0
        %1953 = vmatpush1.msra.mxu0 0.0
        %1954 = vmatprep.subr.mxu0 0.0
        %1955 = vmatpush1.msra.mxu0 0.0
        %1956 = vmatprep.subr.mxu0 0.0
        %1957 = vmatpush1.msra.mxu0 0.0
        %1958 = vmatprep.subr.mxu0 0.0
        %1959 = vmatpush1.msra.mxu0 0.0
        %1960 = vmatprep.subr.mxu0 0.0
        %1961 = vmatpush1.msra.mxu0 0.0
        %1962 = vmatprep.subr.mxu0 0.0
        %1963 = vmatpush1.msra.mxu0 0.0
        %1964 = vmatprep.subr.mxu0 0.0
        %1965 = vmatpush1.msra.mxu0 0.0
        %1966 = vmatprep.subr.mxu0 0.0
        %1967 = vmatpush1.msra.mxu0 0.0
        %1968 = vmatprep.subr.mxu0 0.0
        %1969 = vmatpush1.msra.mxu0 0.0
        %1970 = vmatprep.subr.mxu0 0.0
        %1971 = vmatpush1.msra.mxu0 0.0
        %1972 = vmatprep.subr.mxu0 0.0
        %1973 = vmatpush1.msra.mxu0 0.0
        %1974 = vmatprep.subr.mxu0 0.0
        %1975 = vmatpush1.msra.mxu0 0.0
        %1976 = vmatprep.subr.mxu0 0.0
        %1977 = vmatpush1.msra.mxu0 0.0
        %1978 = vmatprep.subr.mxu0 0.0
        %1979 = vmatpush1.msra.mxu0 0.0
        %1980 = vmatprep.subr.mxu0 0.0
        %1981 = vmatpush1.msra.mxu0 0.0
        %1982 = vmatprep.subr.mxu0 0.0
        %1983 = vmatpush1.msra.mxu0 0.0
        %1984 = vmatprep.subr.mxu0 0.0
        %1985 = vmatpush1.msra.mxu0 0.0
        %1986 = vmatprep.subr.mxu0 0.0
        %1987 = vmatpush1.msra.mxu0 0.0
        %1988 = vmatprep.subr.mxu0 0.0
        %1989 = vmatpush1.msra.mxu0 0.0
        %1990 = vmatprep.mubr.f32.mxu0 0.0
        %v1991 = vand.u32 %v1915, 4294901760
        %v1992 = vsub.f32 %v1915, %v1991
        %v1993 = vand.u32 %v1992, 4294901760
        %v1994 = vsub.f32 %v1992, %v1993
        %v1995 = vand.u32 %v1994, 4294901760
        %1996 = vmatmul.mubr.f32.gmra.mrb[0].mxu0 %v1995
        %v1997 = vpop.f32.mrb[0].mxu0
        %v1998 = vadd.f32 %v1911, %v1997
        %v1999 = vpop.f32.mrb[0].mxu0
        %v2000 = vadd.f32 %v1911, %v1999
        %2001 = vdwg.mxu0
        %v2002 = vand.u32 %v1922, 4294901760
        %v2003 = vsub.f32 %v1922, %v2002
        %v2004 = vand.u32 %v2003, 4294901760
        %v2005 = vsub.f32 %v2003, %v2004
        %v2006 = vand.u32 %v2005, 4294901760
        %2007 = vmatprep.subr.mxu0 %v2006
        %v2008 = vand.u32 %v1919, 4294901760
        %v2009 = vsub.f32 %v1919, %v2008
        %v2010 = vand.u32 %v2009, 4294901760
        %v2011 = vsub.f32 %v2009, %v2010
        %v2012 = vand.u32 %v2011, 4294901760
        %2013 = vmatpush1.msra.mxu0 %v2012
        %2014 = vmatprep.subr.mxu0 0.0
        %2015 = vmatpush1.msra.mxu0 0.0
        %2016 = vmatprep.subr.mxu0 0.0
        %2017 = vmatpush1.msra.mxu0 0.0
        %2018 = vmatprep.subr.mxu0 0.0
        %2019 = vmatpush1.msra.mxu0 0.0
        %2020 = vmatprep.subr.mxu0 0.0
        %2021 = vmatpush1.msra.mxu0 0.0
        %2022 = vmatprep.subr.mxu0 0.0
        %2023 = vmatpush1.msra.mxu0 0.0
        %2024 = vmatprep.subr.mxu0 0.0
        %2025 = vmatpush1.msra.mxu0 0.0
        %2026 = vmatprep.subr.mxu0 0.0
        %2027 = vmatpush1.msra.mxu0 0.0
        %2028 = vmatprep.subr.mxu0 0.0
        %2029 = vmatpush1.msra.mxu0 0.0
        %2030 = vmatprep.subr.mxu0 0.0
        %2031 = vmatpush1.msra.mxu0 0.0
        %2032 = vmatprep.subr.mxu0 0.0
        %2033 = vmatpush1.msra.mxu0 0.0
        %2034 = vmatprep.subr.mxu0 0.0
        %2035 = vmatpush1.msra.mxu0 0.0
        %2036 = vmatprep.subr.mxu0 0.0
        %2037 = vmatpush1.msra.mxu0 0.0
        %2038 = vmatprep.subr.mxu0 0.0
        %2039 = vmatpush1.msra.mxu0 0.0
        %2040 = vmatprep.subr.mxu0 0.0
        %2041 = vmatpush1.msra.mxu0 0.0
        %2042 = vmatprep.subr.mxu0 0.0
        %2043 = vmatpush1.msra.mxu0 0.0
        %2044 = vmatprep.subr.mxu0 0.0
        %2045 = vmatpush1.msra.mxu0 0.0
        %2046 = vmatprep.subr.mxu0 0.0
        %2047 = vmatpush1.msra.mxu0 0.0
        %2048 = vmatprep.subr.mxu0 0.0
        %2049 = vmatpush1.msra.mxu0 0.0
        %2050 = vmatprep.subr.mxu0 0.0
        %2051 = vmatpush1.msra.mxu0 0.0
        %2052 = vmatprep.subr.mxu0 0.0
        %2053 = vmatpush1.msra.mxu0 0.0
        %2054 = vmatprep.subr.mxu0 0.0
        %2055 = vmatpush1.msra.mxu0 0.0
        %2056 = vmatprep.subr.mxu0 0.0
        %2057 = vmatpush1.msra.mxu0 0.0
        %2058 = vmatprep.subr.mxu0 0.0
        %2059 = vmatpush1.msra.mxu0 0.0
        %2060 = vmatprep.subr.mxu0 0.0
        %2061 = vmatpush1.msra.mxu0 0.0
        %2062 = vmatprep.subr.mxu0 0.0
        %2063 = vmatpush1.msra.mxu0 0.0
        %2064 = vmatprep.subr.mxu0 0.0
        %2065 = vmatpush1.msra.mxu0 0.0
        %2066 = vmatprep.subr.mxu0 0.0
        %2067 = vmatpush1.msra.mxu0 0.0
        %2068 = vmatprep.subr.mxu0 0.0
        %2069 = vmatpush1.msra.mxu0 0.0
        %2070 = vmatprep.subr.mxu0 0.0
        %2071 = vmatpush1.msra.mxu0 0.0
        %2072 = vmatprep.subr.mxu0 0.0
        %2073 = vmatpush1.msra.mxu0 0.0
        %2074 = vmatprep.subr.mxu0 0.0
        %2075 = vmatpush1.msra.mxu0 0.0
        %2076 = vmatprep.mubr.f32.mxu0 0.0
        %v2077 = vand.u32 %v1915, 4294901760
        %2078 = vmatmul.mubr.f32.gmra.mrb[0].mxu0 %v2077
        %v2079 = vpop.f32.mrb[0].mxu0
        %v2080 = vadd.f32 %v1998, %v2079
        %v2081 = vpop.f32.mrb[0].mxu0
        %v2082 = vadd.f32 %v2000, %v2081
        %2083 = vdwg.mxu0
        %v2084 = vand.u32 %v1922, 4294901760
        %v2085 = vsub.f32 %v1922, %v2084
        %2086 = vmatprep.subr.mxu0 %v2085
        %v2087 = vand.u32 %v1919, 4294901760
        %v2088 = vsub.f32 %v1919, %v2087
        %2089 = vmatpush1.msra.mxu0 %v2088
        %2090 = vmatprep.subr.mxu0 0.0
        %2091 = vmatpush1.msra.mxu0 0.0
        %2092 = vmatprep.subr.mxu0 0.0
        %2093 = vmatpush1.msra.mxu0 0.0
        %2094 = vmatprep.subr.mxu0 0.0
        %2095 = vmatpush1.msra.mxu0 0.0
        %2096 = vmatprep.subr.mxu0 0.0
        %2097 = vmatpush1.msra.mxu0 0.0
        %2098 = vmatprep.subr.mxu0 0.0
        %2099 = vmatpush1.msra.mxu0 0.0
        %2100 = vmatprep.subr.mxu0 0.0
        %2101 = vmatpush1.msra.mxu0 0.0
        %2102 = vmatprep.subr.mxu0 0.0
        %2103 = vmatpush1.msra.mxu0 0.0
        %2104 = vmatprep.subr.mxu0 0.0
        %2105 = vmatpush1.msra.mxu0 0.0
        %2106 = vmatprep.subr.mxu0 0.0
        %2107 = vmatpush1.msra.mxu0 0.0
        %2108 = vmatprep.subr.mxu0 0.0
        %2109 = vmatpush1.msra.mxu0 0.0
        %2110 = vmatprep.subr.mxu0 0.0
        %2111 = vmatpush1.msra.mxu0 0.0
        %2112 = vmatprep.subr.mxu0 0.0
        %2113 = vmatpush1.msra.mxu0 0.0
        %2114 = vmatprep.subr.mxu0 0.0
        %2115 = vmatpush1.msra.mxu0 0.0
        %2116 = vmatprep.subr.mxu0 0.0
        %2117 = vmatpush1.msra.mxu0 0.0
        %2118 = vmatprep.subr.mxu0 0.0
        %2119 = vmatpush1.msra.mxu0 0.0
        %2120 = vmatprep.subr.mxu0 0.0
        %2121 = vmatpush1.msra.mxu0 0.0
        %2122 = vmatprep.subr.mxu0 0.0
        %2123 = vmatpush1.msra.mxu0 0.0
        %2124 = vmatprep.subr.mxu0 0.0
        %2125 = vmatpush1.msra.mxu0 0.0
        %2126 = vmatprep.subr.mxu0 0.0
        %2127 = vmatpush1.msra.mxu0 0.0
        %2128 = vmatprep.subr.mxu0 0.0
        %2129 = vmatpush1.msra.mxu0 0.0
        %2130 = vmatprep.subr.mxu0 0.0
        %2131 = vmatpush1.msra.mxu0 0.0
        %2132 = vmatprep.subr.mxu0 0.0
        %2133 = vmatpush1.msra.mxu0 0.0
        %2134 = vmatprep.subr.mxu0 0.0
        %2135 = vmatpush1.msra.mxu0 0.0
        %2136 = vmatprep.subr.mxu0 0.0
        %2137 = vmatpush1.msra.mxu0 0.0
        %2138 = vmatprep.subr.mxu0 0.0
        %2139 = vmatpush1.msra.mxu0 0.0
        %2140 = vmatprep.subr.mxu0 0.0
        %2141 = vmatpush1.msra.mxu0 0.0
        %2142 = vmatprep.subr.mxu0 0.0
        %2143 = vmatpush1.msra.mxu0 0.0
        %2144 = vmatprep.subr.mxu0 0.0
        %2145 = vmatpush1.msra.mxu0 0.0
        %2146 = vmatprep.subr.mxu0 0.0
        %2147 = vmatpush1.msra.mxu0 0.0
        %2148 = vmatprep.subr.mxu0 0.0
        %2149 = vmatpush1.msra.mxu0 0.0
        %2150 = vmatprep.subr.mxu0 0.0
        %2151 = vmatpush1.msra.mxu0 0.0
        %2152 = vmatprep.mubr.f32.mxu0 0.0
        %v2153 = vand.u32 %v1915, 4294901760
        %v2154 = vsub.f32 %v1915, %v2153
        %2155 = vmatmul.mubr.f32.gmra.mrb[0].mxu0 %v2154
        %v2156 = vpop.f32.mrb[0].mxu0
        %v2157 = vadd.f32 %v2080, %v2156
        %v2158 = vpop.f32.mrb[0].mxu0
        %v2159 = vadd.f32 %v2082, %v2158
        %2160 = vdwg.mxu0
        %v2161 = vand.u32 %v1922, 4294901760
        %2162 = vmatprep.subr.mxu0 %v2161
        %v2163 = vand.u32 %v1919, 4294901760
        %2164 = vmatpush1.msra.mxu0 %v2163
        %2165 = vmatprep.subr.mxu0 0.0
        %2166 = vmatpush1.msra.mxu0 0.0
        %2167 = vmatprep.subr.mxu0 0.0
        %2168 = vmatpush1.msra.mxu0 0.0
        %2169 = vmatprep.subr.mxu0 0.0
        %2170 = vmatpush1.msra.mxu0 0.0
        %2171 = vmatprep.subr.mxu0 0.0
        %2172 = vmatpush1.msra.mxu0 0.0
        %2173 = vmatprep.subr.mxu0 0.0
        %2174 = vmatpush1.msra.mxu0 0.0
        %2175 = vmatprep.subr.mxu0 0.0
        %2176 = vmatpush1.msra.mxu0 0.0
        %2177 = vmatprep.subr.mxu0 0.0
        %2178 = vmatpush1.msra.mxu0 0.0
        %2179 = vmatprep.subr.mxu0 0.0
        %2180 = vmatpush1.msra.mxu0 0.0
        %2181 = vmatprep.subr.mxu0 0.0
        %2182 = vmatpush1.msra.mxu0 0.0
        %2183 = vmatprep.subr.mxu0 0.0
        %2184 = vmatpush1.msra.mxu0 0.0
        %2185 = vmatprep.subr.mxu0 0.0
        %2186 = vmatpush1.msra.mxu0 0.0
        %2187 = vmatprep.subr.mxu0 0.0
        %2188 = vmatpush1.msra.mxu0 0.0
        %2189 = vmatprep.subr.mxu0 0.0
        %2190 = vmatpush1.msra.mxu0 0.0
        %2191 = vmatprep.subr.mxu0 0.0
        %2192 = vmatpush1.msra.mxu0 0.0
        %2193 = vmatprep.subr.mxu0 0.0
        %2194 = vmatpush1.msra.mxu0 0.0
        %2195 = vmatprep.subr.mxu0 0.0
        %2196 = vmatpush1.msra.mxu0 0.0
        %2197 = vmatprep.subr.mxu0 0.0
        %2198 = vmatpush1.msra.mxu0 0.0
        %2199 = vmatprep.subr.mxu0 0.0
        %2200 = vmatpush1.msra.mxu0 0.0
        %2201 = vmatprep.subr.mxu0 0.0
        %2202 = vmatpush1.msra.mxu0 0.0
        %2203 = vmatprep.subr.mxu0 0.0
        %2204 = vmatpush1.msra.mxu0 0.0
        %2205 = vmatprep.subr.mxu0 0.0
        %2206 = vmatpush1.msra.mxu0 0.0
        %2207 = vmatprep.subr.mxu0 0.0
        %2208 = vmatpush1.msra.mxu0 0.0
        %2209 = vmatprep.subr.mxu0 0.0
        %2210 = vmatpush1.msra.mxu0 0.0
        %2211 = vmatprep.subr.mxu0 0.0
        %2212 = vmatpush1.msra.mxu0 0.0
        %2213 = vmatprep.subr.mxu0 0.0
        %2214 = vmatpush1.msra.mxu0 0.0
        %2215 = vmatprep.subr.mxu0 0.0
        %2216 = vmatpush1.msra.mxu0 0.0
        %2217 = vmatprep.subr.mxu0 0.0
        %2218 = vmatpush1.msra.mxu0 0.0
        %2219 = vmatprep.subr.mxu0 0.0
        %2220 = vmatpush1.msra.mxu0 0.0
        %2221 = vmatprep.subr.mxu0 0.0
        %2222 = vmatpush1.msra.mxu0 0.0
        %2223 = vmatprep.subr.mxu0 0.0
        %2224 = vmatpush1.msra.mxu0 0.0
        %2225 = vmatprep.subr.mxu0 0.0
        %2226 = vmatpush1.msra.mxu0 0.0
        %2227 = vmatprep.mubr.f32.mxu0 0.0
        %v2228 = vand.u32 %v1915, 4294901760
        %v2229 = vsub.f32 %v1915, %v2228
        %v2230 = vand.u32 %v2229, 4294901760
        %2231 = vmatmul.mubr.f32.gmra.mrb[0].mxu0 %v2230
        %v2232 = vpop.f32.mrb[0].mxu0
        %v2233 = vadd.f32 %v2157, %v2232
        %v2234 = vpop.f32.mrb[0].mxu0
        %v2235 = vadd.f32 %v2159, %v2234
        %2236 = vdwg.mxu0
        %v2237 = vand.u32 %v1922, 4294901760
        %v2238 = vsub.f32 %v1922, %v2237
        %v2239 = vand.u32 %v2238, 4294901760
        %2240 = vmatprep.subr.mxu0 %v2239
        %v2241 = vand.u32 %v1919, 4294901760
        %v2242 = vsub.f32 %v1919, %v2241
        %v2243 = vand.u32 %v2242, 4294901760
        %2244 = vmatpush1.msra.mxu0 %v2243
        %2245 = vmatprep.subr.mxu0 0.0
        %2246 = vmatpush1.msra.mxu0 0.0
        %2247 = vmatprep.subr.mxu0 0.0
        %2248 = vmatpush1.msra.mxu0 0.0
        %2249 = vmatprep.subr.mxu0 0.0
        %2250 = vmatpush1.msra.mxu0 0.0
        %2251 = vmatprep.subr.mxu0 0.0
        %2252 = vmatpush1.msra.mxu0 0.0
        %2253 = vmatprep.subr.mxu0 0.0
        %2254 = vmatpush1.msra.mxu0 0.0
        %2255 = vmatprep.subr.mxu0 0.0
        %2256 = vmatpush1.msra.mxu0 0.0
        %2257 = vmatprep.subr.mxu0 0.0
        %2258 = vmatpush1.msra.mxu0 0.0
        %2259 = vmatprep.subr.mxu0 0.0
        %2260 = vmatpush1.msra.mxu0 0.0
        %2261 = vmatprep.subr.mxu0 0.0
        %2262 = vmatpush1.msra.mxu0 0.0
        %2263 = vmatprep.subr.mxu0 0.0
        %2264 = vmatpush1.msra.mxu0 0.0
        %2265 = vmatprep.subr.mxu0 0.0
        %2266 = vmatpush1.msra.mxu0 0.0
        %2267 = vmatprep.subr.mxu0 0.0
        %2268 = vmatpush1.msra.mxu0 0.0
        %2269 = vmatprep.subr.mxu0 0.0
        %2270 = vmatpush1.msra.mxu0 0.0
        %2271 = vmatprep.subr.mxu0 0.0
        %2272 = vmatpush1.msra.mxu0 0.0
        %2273 = vmatprep.subr.mxu0 0.0
        %2274 = vmatpush1.msra.mxu0 0.0
        %2275 = vmatprep.subr.mxu0 0.0
        %2276 = vmatpush1.msra.mxu0 0.0
        %2277 = vmatprep.subr.mxu0 0.0
        %2278 = vmatpush1.msra.mxu0 0.0
        %2279 = vmatprep.subr.mxu0 0.0
        %2280 = vmatpush1.msra.mxu0 0.0
        %2281 = vmatprep.subr.mxu0 0.0
        %2282 = vmatpush1.msra.mxu0 0.0
        %2283 = vmatprep.subr.mxu0 0.0
        %2284 = vmatpush1.msra.mxu0 0.0
        %2285 = vmatprep.subr.mxu0 0.0
        %2286 = vmatpush1.msra.mxu0 0.0
        %2287 = vmatprep.subr.mxu0 0.0
        %2288 = vmatpush1.msra.mxu0 0.0
        %2289 = vmatprep.subr.mxu0 0.0
        %2290 = vmatpush1.msra.mxu0 0.0
        %2291 = vmatprep.subr.mxu0 0.0
        %2292 = vmatpush1.msra.mxu0 0.0
        %2293 = vmatprep.subr.mxu0 0.0
        %2294 = vmatpush1.msra.mxu0 0.0
        %2295 = vmatprep.subr.mxu0 0.0
        %2296 = vmatpush1.msra.mxu0 0.0
        %2297 = vmatprep.subr.mxu0 0.0
        %2298 = vmatpush1.msra.mxu0 0.0
        %2299 = vmatprep.subr.mxu0 0.0
        %2300 = vmatpush1.msra.mxu0 0.0
        %2301 = vmatprep.subr.mxu0 0.0
        %2302 = vmatpush1.msra.mxu0 0.0
        %2303 = vmatprep.subr.mxu0 0.0
        %2304 = vmatpush1.msra.mxu0 0.0
        %2305 = vmatprep.subr.mxu0 0.0
        %2306 = vmatpush1.msra.mxu0 0.0
        %2307 = vmatprep.mubr.f32.mxu0 0.0
        %v2308 = vand.u32 %v1915, 4294901760
        %2309 = vmatmul.mubr.f32.gmra.mrb[0].mxu0 %v2308
        %v2310 = vpop.f32.mrb[0].mxu0
        %v2311 = vadd.f32 %v2233, %v2310
        %v2312 = vpop.f32.mrb[0].mxu0
        %v2313 = vadd.f32 %v2235, %v2312
        %2314 = vdwg.mxu0
        %v2315 = vand.u32 %v1922, 4294901760
        %2316 = vmatprep.subr.mxu0 %v2315
        %v2317 = vand.u32 %v1919, 4294901760
        %2318 = vmatpush1.msra.mxu0 %v2317
        %2319 = vmatprep.subr.mxu0 0.0
        %2320 = vmatpush1.msra.mxu0 0.0
        %2321 = vmatprep.subr.mxu0 0.0
        %2322 = vmatpush1.msra.mxu0 0.0
        %2323 = vmatprep.subr.mxu0 0.0
        %2324 = vmatpush1.msra.mxu0 0.0
        %2325 = vmatprep.subr.mxu0 0.0
        %2326 = vmatpush1.msra.mxu0 0.0
        %2327 = vmatprep.subr.mxu0 0.0
        %2328 = vmatpush1.msra.mxu0 0.0
        %2329 = vmatprep.subr.mxu0 0.0
        %2330 = vmatpush1.msra.mxu0 0.0
        %2331 = vmatprep.subr.mxu0 0.0
        %2332 = vmatpush1.msra.mxu0 0.0
        %2333 = vmatprep.subr.mxu0 0.0
        %2334 = vmatpush1.msra.mxu0 0.0
        %2335 = vmatprep.subr.mxu0 0.0
        %2336 = vmatpush1.msra.mxu0 0.0
        %2337 = vmatprep.subr.mxu0 0.0
        %2338 = vmatpush1.msra.mxu0 0.0
        %2339 = vmatprep.subr.mxu0 0.0
        %2340 = vmatpush1.msra.mxu0 0.0
        %2341 = vmatprep.subr.mxu0 0.0
        %2342 = vmatpush1.msra.mxu0 0.0
        %2343 = vmatprep.subr.mxu0 0.0
        %2344 = vmatpush1.msra.mxu0 0.0
        %2345 = vmatprep.subr.mxu0 0.0
        %2346 = vmatpush1.msra.mxu0 0.0
        %2347 = vmatprep.subr.mxu0 0.0
        %2348 = vmatpush1.msra.mxu0 0.0
        %2349 = vmatprep.subr.mxu0 0.0
        %2350 = vmatpush1.msra.mxu0 0.0
        %2351 = vmatprep.subr.mxu0 0.0
        %2352 = vmatpush1.msra.mxu0 0.0
        %2353 = vmatprep.subr.mxu0 0.0
        %2354 = vmatpush1.msra.mxu0 0.0
        %2355 = vmatprep.subr.mxu0 0.0
        %2356 = vmatpush1.msra.mxu0 0.0
        %2357 = vmatprep.subr.mxu0 0.0
        %2358 = vmatpush1.msra.mxu0 0.0
        %2359 = vmatprep.subr.mxu0 0.0
        %2360 = vmatpush1.msra.mxu0 0.0
        %2361 = vmatprep.subr.mxu0 0.0
        %2362 = vmatpush1.msra.mxu0 0.0
        %2363 = vmatprep.subr.mxu0 0.0
        %2364 = vmatpush1.msra.mxu0 0.0
        %2365 = vmatprep.subr.mxu0 0.0
        %2366 = vmatpush1.msra.mxu0 0.0
        %2367 = vmatprep.subr.mxu0 0.0
        %2368 = vmatpush1.msra.mxu0 0.0
        %2369 = vmatprep.subr.mxu0 0.0
        %2370 = vmatpush1.msra.mxu0 0.0
        %2371 = vmatprep.subr.mxu0 0.0
        %2372 = vmatpush1.msra.mxu0 0.0
        %2373 = vmatprep.subr.mxu0 0.0
        %2374 = vmatpush1.msra.mxu0 0.0
        %2375 = vmatprep.subr.mxu0 0.0
        %2376 = vmatpush1.msra.mxu0 0.0
        %2377 = vmatprep.subr.mxu0 0.0
        %2378 = vmatpush1.msra.mxu0 0.0
        %2379 = vmatprep.subr.mxu0 0.0
        %2380 = vmatpush1.msra.mxu0 0.0
        %2381 = vmatprep.mubr.f32.mxu0 0.0
        %v2382 = vand.u32 %v1915, 4294901760
        %2383 = vmatmul.mubr.f32.gmra.mrb[0].mxu0 %v2382
        %v2384 = vpop.f32.mrb[0].mxu0
        %v2385 = vadd.f32 %v2311, %v2384
        %v2386 = vpop.f32.mrb[0].mxu0
        %v2387 = vadd.f32 %v2313, %v2386
        %2388 = vdwg.mxu0
        %v2389 = vsel %vm469, %v1421, 0.0
        %v2390 = vsel %vm469, %v1422, 0.0
        %v2391 = vadd.f32 %v2389, %v2390
        %2392 = vadd.xlane.f32.xlu0 %v2391
        %v2393 = vpop.xlane.xlu0 %2392
        %v2394 = vrcp.pop 256.0
        %v2395 = vmul.f32 %v2393, %v2394
        %v2396 = vld [vmem:[%s9] sm:$0x3]
        %v2397 = vld [vmem:[%s10] sm:$0x3]
        %v2399 = vsel %vm465, %v2396, 0
        %v2402 = vsel %vm469, %v2395, 0
        %2404 = vmatprep.subr.mxu0 0.0
        %v2405 = vand.u32 %v2402, 4294901760
        %2406 = vmatpush1.msra.mxu0 %v2405
        %2407 = vmatprep.subr.mxu0 0.0
        %2408 = vmatpush1.msra.mxu0 0.0
        %2409 = vmatprep.subr.mxu0 0.0
        %2410 = vmatpush1.msra.mxu0 0.0
        %2411 = vmatprep.subr.mxu0 0.0
        %2412 = vmatpush1.msra.mxu0 0.0
        %2413 = vmatprep.subr.mxu0 0.0
        %2414 = vmatpush1.msra.mxu0 0.0
        %2415 = vmatprep.subr.mxu0 0.0
        %2416 = vmatpush1.msra.mxu0 0.0
        %2417 = vmatprep.subr.mxu0 0.0
        %2418 = vmatpush1.msra.mxu0 0.0
        %2419 = vmatprep.subr.mxu0 0.0
        %2420 = vmatpush1.msra.mxu0 0.0
        %2421 = vmatprep.subr.mxu0 0.0
        %2422 = vmatpush1.msra.mxu0 0.0
        %2423 = vmatprep.subr.mxu0 0.0
        %2424 = vmatpush1.msra.mxu0 0.0
        %2425 = vmatprep.subr.mxu0 0.0
        %2426 = vmatpush1.msra.mxu0 0.0
        %2427 = vmatprep.subr.mxu0 0.0
        %2428 = vmatpush1.msra.mxu0 0.0
        %2429 = vmatprep.subr.mxu0 0.0
        %2430 = vmatpush1.msra.mxu0 0.0
        %2431 = vmatprep.subr.mxu0 0.0
        %2432 = vmatpush1.msra.mxu0 0.0
        %2433 = vmatprep.subr.mxu0 0.0
        %2434 = vmatpush1.msra.mxu0 0.0
        %2435 = vmatprep.subr.mxu0 0.0
        %2436 = vmatpush1.msra.mxu0 0.0
        %2437 = vmatprep.subr.mxu0 0.0
        %2438 = vmatpush1.msra.mxu0 0.0
        %2439 = vmatprep.subr.mxu0 0.0
        %2440 = vmatpush1.msra.mxu0 0.0
        %2441 = vmatprep.subr.mxu0 0.0
        %2442 = vmatpush1.msra.mxu0 0.0
        %2443 = vmatprep.subr.mxu0 0.0
        %2444 = vmatpush1.msra.mxu0 0.0
        %2445 = vmatprep.subr.mxu0 0.0
        %2446 = vmatpush1.msra.mxu0 0.0
        %2447 = vmatprep.subr.mxu0 0.0
        %2448 = vmatpush1.msra.mxu0 0.0
        %2449 = vmatprep.subr.mxu0 0.0
        %2450 = vmatpush1.msra.mxu0 0.0
        %2451 = vmatprep.subr.mxu0 0.0
        %2452 = vmatpush1.msra.mxu0 0.0
        %2453 = vmatprep.subr.mxu0 0.0
        %2454 = vmatpush1.msra.mxu0 0.0
        %2455 = vmatprep.subr.mxu0 0.0
        %2456 = vmatpush1.msra.mxu0 0.0
        %2457 = vmatprep.subr.mxu0 0.0
        %2458 = vmatpush1.msra.mxu0 0.0
        %2459 = vmatprep.subr.mxu0 0.0
        %2460 = vmatpush1.msra.mxu0 0.0
        %2461 = vmatprep.subr.mxu0 0.0
        %2462 = vmatpush1.msra.mxu0 0.0
        %2463 = vmatprep.subr.mxu0 0.0
        %2464 = vmatpush1.msra.mxu0 0.0
        %2465 = vmatprep.subr.mxu0 0.0
        %2466 = vmatpush1.msra.mxu0 0.0
        %2467 = vmatprep.subr.mxu0 0.0
        %2468 = vmatpush1.msra.mxu0 0.0
        %2469 = vmatprep.mubr.f32.mxu0 0.0
        %v2470 = vand.u32 %v2399, 4294901760
        %v2471 = vsub.f32 %v2399, %v2470
        %v2472 = vand.u32 %v2471, 4294901760
        %v2473 = vsub.f32 %v2471, %v2472
        %v2474 = vand.u32 %v2473, 4294901760
        %2475 = vmatmul.mubr.f32.gmra.mrb[0].mxu0 %v2474
        %v2476 = vpop.f32.mrb[0].mxu0
        %v2477 = vadd.f32 %v2397, %v2476
        %v2478 = vpop.f32.mrb[0].mxu0
        %2479 = vdwg.mxu0
        %2480 = vmatprep.subr.mxu0 0.0
        %v2481 = vand.u32 %v2402, 4294901760
        %v2482 = vsub.f32 %v2402, %v2481
        %v2483 = vand.u32 %v2482, 4294901760
        %v2484 = vsub.f32 %v2482, %v2483
        %v2485 = vand.u32 %v2484, 4294901760
        %2486 = vmatpush1.msra.mxu0 %v2485
        %2487 = vmatprep.subr.mxu0 0.0
        %2488 = vmatpush1.msra.mxu0 0.0
        %2489 = vmatprep.subr.mxu0 0.0
        %2490 = vmatpush1.msra.mxu0 0.0
        %2491 = vmatprep.subr.mxu0 0.0
        %2492 = vmatpush1.msra.mxu0 0.0
        %2493 = vmatprep.subr.mxu0 0.0
        %2494 = vmatpush1.msra.mxu0 0.0
        %2495 = vmatprep.subr.mxu0 0.0
        %2496 = vmatpush1.msra.mxu0 0.0
        %2497 = vmatprep.subr.mxu0 0.0
        %2498 = vmatpush1.msra.mxu0 0.0
        %2499 = vmatprep.subr.mxu0 0.0
        %2500 = vmatpush1.msra.mxu0 0.0
        %2501 = vmatprep.subr.mxu0 0.0
        %2502 = vmatpush1.msra.mxu0 0.0
        %2503 = vmatprep.subr.mxu0 0.0
        %2504 = vmatpush1.msra.mxu0 0.0
        %2505 = vmatprep.subr.mxu0 0.0
        %2506 = vmatpush1.msra.mxu0 0.0
        %2507 = vmatprep.subr.mxu0 0.0
        %2508 = vmatpush1.msra.mxu0 0.0
        %2509 = vmatprep.subr.mxu0 0.0
        %2510 = vmatpush1.msra.mxu0 0.0
        %2511 = vmatprep.subr.mxu0 0.0
        %2512 = vmatpush1.msra.mxu0 0.0
        %2513 = vmatprep.subr.mxu0 0.0
        %2514 = vmatpush1.msra.mxu0 0.0
        %2515 = vmatprep.subr.mxu0 0.0
        %2516 = vmatpush1.msra.mxu0 0.0
        %2517 = vmatprep.subr.mxu0 0.0
        %2518 = vmatpush1.msra.mxu0 0.0
        %2519 = vmatprep.subr.mxu0 0.0
        %2520 = vmatpush1.msra.mxu0 0.0
        %2521 = vmatprep.subr.mxu0 0.0
        %2522 = vmatpush1.msra.mxu0 0.0
        %2523 = vmatprep.subr.mxu0 0.0
        %2524 = vmatpush1.msra.mxu0 0.0
        %2525 = vmatprep.subr.mxu0 0.0
        %2526 = vmatpush1.msra.mxu0 0.0
        %2527 = vmatprep.subr.mxu0 0.0
        %2528 = vmatpush1.msra.mxu0 0.0
        %2529 = vmatprep.subr.mxu0 0.0
        %2530 = vmatpush1.msra.mxu0 0.0
        %2531 = vmatprep.subr.mxu0 0.0
        %2532 = vmatpush1.msra.mxu0 0.0
        %2533 = vmatprep.subr.mxu0 0.0
        %2534 = vmatpush1.msra.mxu0 0.0
        %2535 = vmatprep.subr.mxu0 0.0
        %2536 = vmatpush1.msra.mxu0 0.0
        %2537 = vmatprep.subr.mxu0 0.0
        %2538 = vmatpush1.msra.mxu0 0.0
        %2539 = vmatprep.subr.mxu0 0.0
        %2540 = vmatpush1.msra.mxu0 0.0
        %2541 = vmatprep.subr.mxu0 0.0
        %2542 = vmatpush1.msra.mxu0 0.0
        %2543 = vmatprep.subr.mxu0 0.0
        %2544 = vmatpush1.msra.mxu0 0.0
        %2545 = vmatprep.subr.mxu0 0.0
        %2546 = vmatpush1.msra.mxu0 0.0
        %2547 = vmatprep.subr.mxu0 0.0
        %2548 = vmatpush1.msra.mxu0 0.0
        %2549 = vmatprep.mubr.f32.mxu0 0.0
        %v2550 = vand.u32 %v2399, 4294901760
        %2551 = vmatmul.mubr.f32.gmra.mrb[0].mxu0 %v2550
        %v2552 = vpop.f32.mrb[0].mxu0
        %v2553 = vadd.f32 %v2477, %v2552
        %v2554 = vpop.f32.mrb[0].mxu0
        %2555 = vdwg.mxu0
        %2556 = vmatprep.subr.mxu0 0.0
        %v2557 = vand.u32 %v2402, 4294901760
        %v2558 = vsub.f32 %v2402, %v2557
        %2559 = vmatpush1.msra.mxu0 %v2558
        %2560 = vmatprep.subr.mxu0 0.0
        %2561 = vmatpush1.msra.mxu0 0.0
        %2562 = vmatprep.subr.mxu0 0.0
        %2563 = vmatpush1.msra.mxu0 0.0
        %2564 = vmatprep.subr.mxu0 0.0
        %2565 = vmatpush1.msra.mxu0 0.0
        %2566 = vmatprep.subr.mxu0 0.0
        %2567 = vmatpush1.msra.mxu0 0.0
        %2568 = vmatprep.subr.mxu0 0.0
        %2569 = vmatpush1.msra.mxu0 0.0
        %2570 = vmatprep.subr.mxu0 0.0
        %2571 = vmatpush1.msra.mxu0 0.0
        %2572 = vmatprep.subr.mxu0 0.0
        %2573 = vmatpush1.msra.mxu0 0.0
        %2574 = vmatprep.subr.mxu0 0.0
        %2575 = vmatpush1.msra.mxu0 0.0
        %2576 = vmatprep.subr.mxu0 0.0
        %2577 = vmatpush1.msra.mxu0 0.0
        %2578 = vmatprep.subr.mxu0 0.0
        %2579 = vmatpush1.msra.mxu0 0.0
        %2580 = vmatprep.subr.mxu0 0.0
        %2581 = vmatpush1.msra.mxu0 0.0
        %2582 = vmatprep.subr.mxu0 0.0
        %2583 = vmatpush1.msra.mxu0 0.0
        %2584 = vmatprep.subr.mxu0 0.0
        %2585 = vmatpush1.msra.mxu0 0.0
        %2586 = vmatprep.subr.mxu0 0.0
        %2587 = vmatpush1.msra.mxu0 0.0
        %2588 = vmatprep.subr.mxu0 0.0
        %2589 = vmatpush1.msra.mxu0 0.0
        %2590 = vmatprep.subr.mxu0 0.0
        %2591 = vmatpush1.msra.mxu0 0.0
        %2592 = vmatprep.subr.mxu0 0.0
        %2593 = vmatpush1.msra.mxu0 0.0
        %2594 = vmatprep.subr.mxu0 0.0
        %2595 = vmatpush1.msra.mxu0 0.0
        %2596 = vmatprep.subr.mxu0 0.0
        %2597 = vmatpush1.msra.mxu0 0.0
        %2598 = vmatprep.subr.mxu0 0.0
        %2599 = vmatpush1.msra.mxu0 0.0
        %2600 = vmatprep.subr.mxu0 0.0
        %2601 = vmatpush1.msra.mxu0 0.0
        %2602 = vmatprep.subr.mxu0 0.0
        %2603 = vmatpush1.msra.mxu0 0.0
        %2604 = vmatprep.subr.mxu0 0.0
        %2605 = vmatpush1.msra.mxu0 0.0
        %2606 = vmatprep.subr.mxu0 0.0
        %2607 = vmatpush1.msra.mxu0 0.0
        %2608 = vmatprep.subr.mxu0 0.0
        %2609 = vmatpush1.msra.mxu0 0.0
        %2610 = vmatprep.subr.mxu0 0.0
        %2611 = vmatpush1.msra.mxu0 0.0
        %2612 = vmatprep.subr.mxu0 0.0
        %2613 = vmatpush1.msra.mxu0 0.0
        %2614 = vmatprep.subr.mxu0 0.0
        %2615 = vmatpush1.msra.mxu0 0.0
        %2616 = vmatprep.subr.mxu0 0.0
        %2617 = vmatpush1.msra.mxu0 0.0
        %2618 = vmatprep.subr.mxu0 0.0
        %2619 = vmatpush1.msra.mxu0 0.0
        %2620 = vmatprep.subr.mxu0 0.0
        %2621 = vmatpush1.msra.mxu0 0.0
        %2622 = vmatprep.mubr.f32.mxu0 0.0
        %v2623 = vand.u32 %v2399, 4294901760
        %v2624 = vsub.f32 %v2399, %v2623
        %2625 = vmatmul.mubr.f32.gmra.mrb[0].mxu0 %v2624
        %v2626 = vpop.f32.mrb[0].mxu0
        %v2627 = vadd.f32 %v2553, %v2626
        %v2628 = vpop.f32.mrb[0].mxu0
        %2629 = vdwg.mxu0
        %2630 = vmatprep.subr.mxu0 0.0
        %v2631 = vand.u32 %v2402, 4294901760
        %2632 = vmatpush1.msra.mxu0 %v2631
        %2633 = vmatprep.subr.mxu0 0.0
        %2634 = vmatpush1.msra.mxu0 0.0
        %2635 = vmatprep.subr.mxu0 0.0
        %2636 = vmatpush1.msra.mxu0 0.0
        %2637 = vmatprep.subr.mxu0 0.0
        %2638 = vmatpush1.msra.mxu0 0.0
        %2639 = vmatprep.subr.mxu0 0.0
        %2640 = vmatpush1.msra.mxu0 0.0
        %2641 = vmatprep.subr.mxu0 0.0
        %2642 = vmatpush1.msra.mxu0 0.0
        %2643 = vmatprep.subr.mxu0 0.0
        %2644 = vmatpush1.msra.mxu0 0.0
        %2645 = vmatprep.subr.mxu0 0.0
        %2646 = vmatpush1.msra.mxu0 0.0
        %2647 = vmatprep.subr.mxu0 0.0
        %2648 = vmatpush1.msra.mxu0 0.0
        %2649 = vmatprep.subr.mxu0 0.0
        %2650 = vmatpush1.msra.mxu0 0.0
        %2651 = vmatprep.subr.mxu0 0.0
        %2652 = vmatpush1.msra.mxu0 0.0
        %2653 = vmatprep.subr.mxu0 0.0
        %2654 = vmatpush1.msra.mxu0 0.0
        %2655 = vmatprep.subr.mxu0 0.0
        %2656 = vmatpush1.msra.mxu0 0.0
        %2657 = vmatprep.subr.mxu0 0.0
        %2658 = vmatpush1.msra.mxu0 0.0
        %2659 = vmatprep.subr.mxu0 0.0
        %2660 = vmatpush1.msra.mxu0 0.0
        %2661 = vmatprep.subr.mxu0 0.0
        %2662 = vmatpush1.msra.mxu0 0.0
        %2663 = vmatprep.subr.mxu0 0.0
        %2664 = vmatpush1.msra.mxu0 0.0
        %2665 = vmatprep.subr.mxu0 0.0
        %2666 = vmatpush1.msra.mxu0 0.0
        %2667 = vmatprep.subr.mxu0 0.0
        %2668 = vmatpush1.msra.mxu0 0.0
        %2669 = vmatprep.subr.mxu0 0.0
        %2670 = vmatpush1.msra.mxu0 0.0
        %2671 = vmatprep.subr.mxu0 0.0
        %2672 = vmatpush1.msra.mxu0 0.0
        %2673 = vmatprep.subr.mxu0 0.0
        %2674 = vmatpush1.msra.mxu0 0.0
        %2675 = vmatprep.subr.mxu0 0.0
        %2676 = vmatpush1.msra.mxu0 0.0
        %2677 = vmatprep.subr.mxu0 0.0
        %2678 = vmatpush1.msra.mxu0 0.0
        %2679 = vmatprep.subr.mxu0 0.0
        %2680 = vmatpush1.msra.mxu0 0.0
        %2681 = vmatprep.subr.mxu0 0.0
        %2682 = vmatpush1.msra.mxu0 0.0
        %2683 = vmatprep.subr.mxu0 0.0
        %2684 = vmatpush1.msra.mxu0 0.0
        %2685 = vmatprep.subr.mxu0 0.0
        %2686 = vmatpush1.msra.mxu0 0.0
        %2687 = vmatprep.subr.mxu0 0.0
        %2688 = vmatpush1.msra.mxu0 0.0
        %2689 = vmatprep.subr.mxu0 0.0
        %2690 = vmatpush1.msra.mxu0 0.0
        %2691 = vmatprep.subr.mxu0 0.0
        %2692 = vmatpush1.msra.mxu0 0.0
        %2693 = vmatprep.subr.mxu0 0.0
        %2694 = vmatpush1.msra.mxu0 0.0
        %2695 = vmatprep.mubr.f32.mxu0 0.0
        %v2696 = vand.u32 %v2399, 4294901760
        %v2697 = vsub.f32 %v2399, %v2696
        %v2698 = vand.u32 %v2697, 4294901760
        %2699 = vmatmul.mubr.f32.gmra.mrb[0].mxu0 %v2698
        %v2700 = vpop.f32.mrb[0].mxu0
        %v2701 = vadd.f32 %v2627, %v2700
        %v2702 = vpop.f32.mrb[0].mxu0
        %2703 = vdwg.mxu0
        %2704 = vmatprep.subr.mxu0 0.0
        %v2705 = vand.u32 %v2402, 4294901760
        %v2706 = vsub.f32 %v2402, %v2705
        %v2707 = vand.u32 %v2706, 4294901760
        %2708 = vmatpush1.msra.mxu0 %v2707
        %2709 = vmatprep.subr.mxu0 0.0
        %2710 = vmatpush1.msra.mxu0 0.0
        %2711 = vmatprep.subr.mxu0 0.0
        %2712 = vmatpush1.msra.mxu0 0.0
        %2713 = vmatprep.subr.mxu0 0.0
        %2714 = vmatpush1.msra.mxu0 0.0
        %2715 = vmatprep.subr.mxu0 0.0
        %2716 = vmatpush1.msra.mxu0 0.0
        %2717 = vmatprep.subr.mxu0 0.0
        %2718 = vmatpush1.msra.mxu0 0.0
        %2719 = vmatprep.subr.mxu0 0.0
        %2720 = vmatpush1.msra.mxu0 0.0
        %2721 = vmatprep.subr.mxu0 0.0
        %2722 = vmatpush1.msra.mxu0 0.0
        %2723 = vmatprep.subr.mxu0 0.0
        %2724 = vmatpush1.msra.mxu0 0.0
        %2725 = vmatprep.subr.mxu0 0.0
        %2726 = vmatpush1.msra.mxu0 0.0
        %2727 = vmatprep.subr.mxu0 0.0
        %2728 = vmatpush1.msra.mxu0 0.0
        %2729 = vmatprep.subr.mxu0 0.0
        %2730 = vmatpush1.msra.mxu0 0.0
        %2731 = vmatprep.subr.mxu0 0.0
        %2732 = vmatpush1.msra.mxu0 0.0
        %2733 = vmatprep.subr.mxu0 0.0
        %2734 = vmatpush1.msra.mxu0 0.0
        %2735 = vmatprep.subr.mxu0 0.0
        %2736 = vmatpush1.msra.mxu0 0.0
        %2737 = vmatprep.subr.mxu0 0.0
        %2738 = vmatpush1.msra.mxu0 0.0
        %2739 = vmatprep.subr.mxu0 0.0
        %2740 = vmatpush1.msra.mxu0 0.0
        %2741 = vmatprep.subr.mxu0 0.0
        %2742 = vmatpush1.msra.mxu0 0.0
        %2743 = vmatprep.subr.mxu0 0.0
        %2744 = vmatpush1.msra.mxu0 0.0
        %2745 = vmatprep.subr.mxu0 0.0
        %2746 = vmatpush1.msra.mxu0 0.0
        %2747 = vmatprep.subr.mxu0 0.0
        %2748 = vmatpush1.msra.mxu0 0.0
        %2749 = vmatprep.subr.mxu0 0.0
        %2750 = vmatpush1.msra.mxu0 0.0
        %2751 = vmatprep.subr.mxu0 0.0
        %2752 = vmatpush1.msra.mxu0 0.0
        %2753 = vmatprep.subr.mxu0 0.0
        %2754 = vmatpush1.msra.mxu0 0.0
        %2755 = vmatprep.subr.mxu0 0.0
        %2756 = vmatpush1.msra.mxu0 0.0
        %2757 = vmatprep.subr.mxu0 0.0
        %2758 = vmatpush1.msra.mxu0 0.0
        %2759 = vmatprep.subr.mxu0 0.0
        %2760 = vmatpush1.msra.mxu0 0.0
        %2761 = vmatprep.subr.mxu0 0.0
        %2762 = vmatpush1.msra.mxu0 0.0
        %2763 = vmatprep.subr.mxu0 0.0
        %2764 = vmatpush1.msra.mxu0 0.0
        %2765 = vmatprep.subr.mxu0 0.0
        %2766 = vmatpush1.msra.mxu0 0.0
        %2767 = vmatprep.subr.mxu0 0.0
        %2768 = vmatpush1.msra.mxu0 0.0
        %2769 = vmatprep.subr.mxu0 0.0
        %2770 = vmatpush1.msra.mxu0 0.0
        %2771 = vmatprep.mubr.f32.mxu0 0.0
        %v2772 = vand.u32 %v2399, 4294901760
        %2773 = vmatmul.mubr.f32.gmra.mrb[0].mxu0 %v2772
        %v2774 = vpop.f32.mrb[0].mxu0
        %v2775 = vadd.f32 %v2701, %v2774
        %v2776 = vpop.f32.mrb[0].mxu0
        %2777 = vdwg.mxu0
        %2778 = vmatprep.subr.mxu0 0.0
        %v2779 = vand.u32 %v2402, 4294901760
        %2780 = vmatpush1.msra.mxu0 %v2779
        %2781 = vmatprep.subr.mxu0 0.0
        %2782 = vmatpush1.msra.mxu0 0.0
        %2783 = vmatprep.subr.mxu0 0.0
        %2784 = vmatpush1.msra.mxu0 0.0
        %2785 = vmatprep.subr.mxu0 0.0
        %2786 = vmatpush1.msra.mxu0 0.0
        %2787 = vmatprep.subr.mxu0 0.0
        %2788 = vmatpush1.msra.mxu0 0.0
        %2789 = vmatprep.subr.mxu0 0.0
        %2790 = vmatpush1.msra.mxu0 0.0
        %2791 = vmatprep.subr.mxu0 0.0
        %2792 = vmatpush1.msra.mxu0 0.0
        %2793 = vmatprep.subr.mxu0 0.0
        %2794 = vmatpush1.msra.mxu0 0.0
        %2795 = vmatprep.subr.mxu0 0.0
        %2796 = vmatpush1.msra.mxu0 0.0
        %2797 = vmatprep.subr.mxu0 0.0
        %2798 = vmatpush1.msra.mxu0 0.0
        %2799 = vmatprep.subr.mxu0 0.0
        %2800 = vmatpush1.msra.mxu0 0.0
        %2801 = vmatprep.subr.mxu0 0.0
        %2802 = vmatpush1.msra.mxu0 0.0
        %2803 = vmatprep.subr.mxu0 0.0
        %2804 = vmatpush1.msra.mxu0 0.0
        %2805 = vmatprep.subr.mxu0 0.0
        %2806 = vmatpush1.msra.mxu0 0.0
        %2807 = vmatprep.subr.mxu0 0.0
        %2808 = vmatpush1.msra.mxu0 0.0
        %2809 = vmatprep.subr.mxu0 0.0
        %2810 = vmatpush1.msra.mxu0 0.0
        %2811 = vmatprep.subr.mxu0 0.0
        %2812 = vmatpush1.msra.mxu0 0.0
        %2813 = vmatprep.subr.mxu0 0.0
        %2814 = vmatpush1.msra.mxu0 0.0
        %2815 = vmatprep.subr.mxu0 0.0
        %2816 = vmatpush1.msra.mxu0 0.0
        %2817 = vmatprep.subr.mxu0 0.0
        %2818 = vmatpush1.msra.mxu0 0.0
        %2819 = vmatprep.subr.mxu0 0.0
        %2820 = vmatpush1.msra.mxu0 0.0
        %2821 = vmatprep.subr.mxu0 0.0
        %2822 = vmatpush1.msra.mxu0 0.0
        %2823 = vmatprep.subr.mxu0 0.0
        %2824 = vmatpush1.msra.mxu0 0.0
        %2825 = vmatprep.subr.mxu0 0.0
        %2826 = vmatpush1.msra.mxu0 0.0
        %2827 = vmatprep.subr.mxu0 0.0
        %2828 = vmatpush1.msra.mxu0 0.0
        %2829 = vmatprep.subr.mxu0 0.0
        %2830 = vmatpush1.msra.mxu0 0.0
        %2831 = vmatprep.subr.mxu0 0.0
        %2832 = vmatpush1.msra.mxu0 0.0
        %2833 = vmatprep.subr.mxu0 0.0
        %2834 = vmatpush1.msra.mxu0 0.0
        %2835 = vmatprep.subr.mxu0 0.0
        %2836 = vmatpush1.msra.mxu0 0.0
        %2837 = vmatprep.subr.mxu0 0.0
        %2838 = vmatpush1.msra.mxu0 0.0
        %2839 = vmatprep.subr.mxu0 0.0
        %2840 = vmatpush1.msra.mxu0 0.0
        %2841 = vmatprep.subr.mxu0 0.0
        %2842 = vmatpush1.msra.mxu0 0.0
        %2843 = vmatprep.mubr.f32.mxu0 0.0
        %v2844 = vand.u32 %v2399, 4294901760
        %2845 = vmatmul.mubr.f32.gmra.mrb[0].mxu0 %v2844
        %v2846 = vpop.f32.mrb[0].mxu0
        %v2847 = vadd.f32 %v2775, %v2846
        %v2848 = vpop.f32.mrb[0].mxu0
        %2849 = vdwg.mxu0
        %v2850 = vmax.f32 %v2847, 0.0
        %v2851 = vld [vmem:[%s11] sm:$0xf]
        %v2852 = vld [vmem:[%s12] sm:$0xf]
        %v2854 = vsel %vm1913, %v2851, 0
        %v2857 = vsel %vm1917, %v2850, 0
        %2859 = vmatprep.subr.mxu0 0.0
        %v2860 = vand.u32 %v2857, 4294901760
        %2861 = vmatpush1.msra.mxu0 %v2860
        %2862 = vmatprep.subr.mxu0 0.0
        %2863 = vmatpush1.msra.mxu0 0.0
        %2864 = vmatprep.subr.mxu0 0.0
        %2865 = vmatpush1.msra.mxu0 0.0
        %2866 = vmatprep.subr.mxu0 0.0
        %2867 = vmatpush1.msra.mxu0 0.0
        %2868 = vmatprep.subr.mxu0 0.0
        %2869 = vmatpush1.msra.mxu0 0.0
        %2870 = vmatprep.subr.mxu0 0.0
        %2871 = vmatpush1.msra.mxu0 0.0
        %2872 = vmatprep.subr.mxu0 0.0
        %2873 = vmatpush1.msra.mxu0 0.0
        %2874 = vmatprep.subr.mxu0 0.0
        %2875 = vmatpush1.msra.mxu0 0.0
        %2876 = vmatprep.subr.mxu0 0.0
        %2877 = vmatpush1.msra.mxu0 0.0
        %2878 = vmatprep.subr.mxu0 0.0
        %2879 = vmatpush1.msra.mxu0 0.0
        %2880 = vmatprep.subr.mxu0 0.0
        %2881 = vmatpush1.msra.mxu0 0.0
        %2882 = vmatprep.subr.mxu0 0.0
        %2883 = vmatpush1.msra.mxu0 0.0
        %2884 = vmatprep.subr.mxu0 0.0
        %2885 = vmatpush1.msra.mxu0 0.0
        %2886 = vmatprep.subr.mxu0 0.0
        %2887 = vmatpush1.msra.mxu0 0.0
        %2888 = vmatprep.subr.mxu0 0.0
        %2889 = vmatpush1.msra.mxu0 0.0
        %2890 = vmatprep.subr.mxu0 0.0
        %2891 = vmatpush1.msra.mxu0 0.0
        %2892 = vmatprep.subr.mxu0 0.0
        %2893 = vmatpush1.msra.mxu0 0.0
        %2894 = vmatprep.subr.mxu0 0.0
        %2895 = vmatpush1.msra.mxu0 0.0
        %2896 = vmatprep.subr.mxu0 0.0
        %2897 = vmatpush1.msra.mxu0 0.0
        %2898 = vmatprep.subr.mxu0 0.0
        %2899 = vmatpush1.msra.mxu0 0.0
        %2900 = vmatprep.subr.mxu0 0.0
        %2901 = vmatpush1.msra.mxu0 0.0
        %2902 = vmatprep.subr.mxu0 0.0
        %2903 = vmatpush1.msra.mxu0 0.0
        %2904 = vmatprep.subr.mxu0 0.0
        %2905 = vmatpush1.msra.mxu0 0.0
        %2906 = vmatprep.subr.mxu0 0.0
        %2907 = vmatpush1.msra.mxu0 0.0
        %2908 = vmatprep.subr.mxu0 0.0
        %2909 = vmatpush1.msra.mxu0 0.0
        %2910 = vmatprep.subr.mxu0 0.0
        %2911 = vmatpush1.msra.mxu0 0.0
        %2912 = vmatprep.subr.mxu0 0.0
        %2913 = vmatpush1.msra.mxu0 0.0
        %2914 = vmatprep.subr.mxu0 0.0
        %2915 = vmatpush1.msra.mxu0 0.0
        %2916 = vmatprep.subr.mxu0 0.0
        %2917 = vmatpush1.msra.mxu0 0.0
        %2918 = vmatprep.subr.mxu0 0.0
        %2919 = vmatpush1.msra.mxu0 0.0
        %2920 = vmatprep.subr.mxu0 0.0
        %2921 = vmatpush1.msra.mxu0 0.0
        %2922 = vmatprep.subr.mxu0 0.0
        %2923 = vmatpush1.msra.mxu0 0.0
        %2924 = vmatprep.mubr.f32.mxu0 0.0
        %v2925 = vand.u32 %v2854, 4294901760
        %v2926 = vsub.f32 %v2854, %v2925
        %v2927 = vand.u32 %v2926, 4294901760
        %v2928 = vsub.f32 %v2926, %v2927
        %v2929 = vand.u32 %v2928, 4294901760
        %2930 = vmatmul.mubr.f32.gmra.mrb[0].mxu0 %v2929
        %v2931 = vpop.f32.mrb[0].mxu0
        %v2932 = vadd.f32 %v2852, %v2931
        %v2933 = vpop.f32.mrb[0].mxu0
        %2934 = vdwg.mxu0
        %2935 = vmatprep.subr.mxu0 0.0
        %v2936 = vand.u32 %v2857, 4294901760
        %v2937 = vsub.f32 %v2857, %v2936
        %v2938 = vand.u32 %v2937, 4294901760
        %v2939 = vsub.f32 %v2937, %v2938
        %v2940 = vand.u32 %v2939, 4294901760
        %2941 = vmatpush1.msra.mxu0 %v2940
        %2942 = vmatprep.subr.mxu0 0.0
        %2943 = vmatpush1.msra.mxu0 0.0
        %2944 = vmatprep.subr.mxu0 0.0
        %2945 = vmatpush1.msra.mxu0 0.0
        %2946 = vmatprep.subr.mxu0 0.0
        %2947 = vmatpush1.msra.mxu0 0.0
        %2948 = vmatprep.subr.mxu0 0.0
        %2949 = vmatpush1.msra.mxu0 0.0
        %2950 = vmatprep.subr.mxu0 0.0
        %2951 = vmatpush1.msra.mxu0 0.0
        %2952 = vmatprep.subr.mxu0 0.0
        %2953 = vmatpush1.msra.mxu0 0.0
        %2954 = vmatprep.subr.mxu0 0.0
        %2955 = vmatpush1.msra.mxu0 0.0
        %2956 = vmatprep.subr.mxu0 0.0
        %2957 = vmatpush1.msra.mxu0 0.0
        %2958 = vmatprep.subr.mxu0 0.0
        %2959 = vmatpush1.msra.mxu0 0.0
        %2960 = vmatprep.subr.mxu0 0.0
        %2961 = vmatpush1.msra.mxu0 0.0
        %2962 = vmatprep.subr.mxu0 0.0
        %2963 = vmatpush1.msra.mxu0 0.0
        %2964 = vmatprep.subr.mxu0 0.0
        %2965 = vmatpush1.msra.mxu0 0.0
        %2966 = vmatprep.subr.mxu0 0.0
        %2967 = vmatpush1.msra.mxu0 0.0
        %2968 = vmatprep.subr.mxu0 0.0
        %2969 = vmatpush1.msra.mxu0 0.0
        %2970 = vmatprep.subr.mxu0 0.0
        %2971 = vmatpush1.msra.mxu0 0.0
        %2972 = vmatprep.subr.mxu0 0.0
        %2973 = vmatpush1.msra.mxu0 0.0
        %2974 = vmatprep.subr.mxu0 0.0
        %2975 = vmatpush1.msra.mxu0 0.0
        %2976 = vmatprep.subr.mxu0 0.0
        %2977 = vmatpush1.msra.mxu0 0.0
        %2978 = vmatprep.subr.mxu0 0.0
        %2979 = vmatpush1.msra.mxu0 0.0
        %2980 = vmatprep.subr.mxu0 0.0
        %2981 = vmatpush1.msra.mxu0 0.0
        %2982 = vmatprep.subr.mxu0 0.0
        %2983 = vmatpush1.msra.mxu0 0.0
        %2984 = vmatprep.subr.mxu0 0.0
        %2985 = vmatpush1.msra.mxu0 0.0
        %2986 = vmatprep.subr.mxu0 0.0
        %2987 = vmatpush1.msra.mxu0 0.0
        %2988 = vmatprep.subr.mxu0 0.0
        %2989 = vmatpush1.msra.mxu0 0.0
        %2990 = vmatprep.subr.mxu0 0.0
        %2991 = vmatpush1.msra.mxu0 0.0
        %2992 = vmatprep.subr.mxu0 0.0
        %2993 = vmatpush1.msra.mxu0 0.0
        %2994 = vmatprep.subr.mxu0 0.0
        %2995 = vmatpush1.msra.mxu0 0.0
        %2996 = vmatprep.subr.mxu0 0.0
        %2997 = vmatpush1.msra.mxu0 0.0
        %2998 = vmatprep.subr.mxu0 0.0
        %2999 = vmatpush1.msra.mxu0 0.0
        %3000 = vmatprep.subr.mxu0 0.0
        %3001 = vmatpush1.msra.mxu0 0.0
        %3002 = vmatprep.subr.mxu0 0.0
        %3003 = vmatpush1.msra.mxu0 0.0
        %3004 = vmatprep.mubr.f32.mxu0 0.0
        %v3005 = vand.u32 %v2854, 4294901760
        %3006 = vmatmul.mubr.f32.gmra.mrb[0].mxu0 %v3005
        %v3007 = vpop.f32.mrb[0].mxu0
        %v3008 = vadd.f32 %v2932, %v3007
        %v3009 = vpop.f32.mrb[0].mxu0
        %3010 = vdwg.mxu0
        %3011 = vmatprep.subr.mxu0 0.0
        %v3012 = vand.u32 %v2857, 4294901760
        %v3013 = vsub.f32 %v2857, %v3012
        %3014 = vmatpush1.msra.mxu0 %v3013
        %3015 = vmatprep.subr.mxu0 0.0
        %3016 = vmatpush1.msra.mxu0 0.0
        %3017 = vmatprep.subr.mxu0 0.0
        %3018 = vmatpush1.msra.mxu0 0.0
        %3019 = vmatprep.subr.mxu0 0.0
        %3020 = vmatpush1.msra.mxu0 0.0
        %3021 = vmatprep.subr.mxu0 0.0
        %3022 = vmatpush1.msra.mxu0 0.0
        %3023 = vmatprep.subr.mxu0 0.0
        %3024 = vmatpush1.msra.mxu0 0.0
        %3025 = vmatprep.subr.mxu0 0.0
        %3026 = vmatpush1.msra.mxu0 0.0
        %3027 = vmatprep.subr.mxu0 0.0
        %3028 = vmatpush1.msra.mxu0 0.0
        %3029 = vmatprep.subr.mxu0 0.0
        %3030 = vmatpush1.msra.mxu0 0.0
        %3031 = vmatprep.subr.mxu0 0.0
        %3032 = vmatpush1.msra.mxu0 0.0
        %3033 = vmatprep.subr.mxu0 0.0
        %3034 = vmatpush1.msra.mxu0 0.0
        %3035 = vmatprep.subr.mxu0 0.0
        %3036 = vmatpush1.msra.mxu0 0.0
        %3037 = vmatprep.subr.mxu0 0.0
        %3038 = vmatpush1.msra.mxu0 0.0
        %3039 = vmatprep.subr.mxu0 0.0
        %3040 = vmatpush1.msra.mxu0 0.0
        %3041 = vmatprep.subr.mxu0 0.0
        %3042 = vmatpush1.msra.mxu0 0.0
        %3043 = vmatprep.subr.mxu0 0.0
        %3044 = vmatpush1.msra.mxu0 0.0
        %3045 = vmatprep.subr.mxu0 0.0
        %3046 = vmatpush1.msra.mxu0 0.0
        %3047 = vmatprep.subr.mxu0 0.0
        %3048 = vmatpush1.msra.mxu0 0.0
        %3049 = vmatprep.subr.mxu0 0.0
        %3050 = vmatpush1.msra.mxu0 0.0
        %3051 = vmatprep.subr.mxu0 0.0
        %3052 = vmatpush1.msra.mxu0 0.0
        %3053 = vmatprep.subr.mxu0 0.0
        %3054 = vmatpush1.msra.mxu0 0.0
        %3055 = vmatprep.subr.mxu0 0.0
        %3056 = vmatpush1.msra.mxu0 0.0
        %3057 = vmatprep.subr.mxu0 0.0
        %3058 = vmatpush1.msra.mxu0 0.0
        %3059 = vmatprep.subr.mxu0 0.0
        %3060 = vmatpush1.msra.mxu0 0.0
        %3061 = vmatprep.subr.mxu0 0.0
        %3062 = vmatpush1.msra.mxu0 0.0
        %3063 = vmatprep.subr.mxu0 0.0
        %3064 = vmatpush1.msra.mxu0 0.0
        %3065 = vmatprep.subr.mxu0 0.0
        %3066 = vmatpush1.msra.mxu0 0.0
        %3067 = vmatprep.subr.mxu0 0.0
        %3068 = vmatpush1.msra.mxu0 0.0
        %3069 = vmatprep.subr.mxu0 0.0
        %3070 = vmatpush1.msra.mxu0 0.0
        %3071 = vmatprep.subr.mxu0 0.0
        %3072 = vmatpush1.msra.mxu0 0.0
        %3073 = vmatprep.subr.mxu0 0.0
        %3074 = vmatpush1.msra.mxu0 0.0
        %3075 = vmatprep.subr.mxu0 0.0
        %3076 = vmatpush1.msra.mxu0 0.0
        %3077 = vmatprep.mubr.f32.mxu0 0.0
        %v3078 = vand.u32 %v2854, 4294901760
        %v3079 = vsub.f32 %v2854, %v3078
        %3080 = vmatmul.mubr.f32.gmra.mrb[0].mxu0 %v3079
        %v3081 = vpop.f32.mrb[0].mxu0
        %v3082 = vadd.f32 %v3008, %v3081
        %v3083 = vpop.f32.mrb[0].mxu0
        %3084 = vdwg.mxu0
        %3085 = vmatprep.subr.mxu0 0.0
        %v3086 = vand.u32 %v2857, 4294901760
        %3087 = vmatpush1.msra.mxu0 %v3086
        %3088 = vmatprep.subr.mxu0 0.0
        %3089 = vmatpush1.msra.mxu0 0.0
        %3090 = vmatprep.subr.mxu0 0.0
        %3091 = vmatpush1.msra.mxu0 0.0
        %3092 = vmatprep.subr.mxu0 0.0
        %3093 = vmatpush1.msra.mxu0 0.0
        %3094 = vmatprep.subr.mxu0 0.0
        %3095 = vmatpush1.msra.mxu0 0.0
        %3096 = vmatprep.subr.mxu0 0.0
        %3097 = vmatpush1.msra.mxu0 0.0
        %3098 = vmatprep.subr.mxu0 0.0
        %3099 = vmatpush1.msra.mxu0 0.0
        %3100 = vmatprep.subr.mxu0 0.0
        %3101 = vmatpush1.msra.mxu0 0.0
        %3102 = vmatprep.subr.mxu0 0.0
        %3103 = vmatpush1.msra.mxu0 0.0
        %3104 = vmatprep.subr.mxu0 0.0
        %3105 = vmatpush1.msra.mxu0 0.0
        %3106 = vmatprep.subr.mxu0 0.0
        %3107 = vmatpush1.msra.mxu0 0.0
        %3108 = vmatprep.subr.mxu0 0.0
        %3109 = vmatpush1.msra.mxu0 0.0
        %3110 = vmatprep.subr.mxu0 0.0
        %3111 = vmatpush1.msra.mxu0 0.0
        %3112 = vmatprep.subr.mxu0 0.0
        %3113 = vmatpush1.msra.mxu0 0.0
        %3114 = vmatprep.subr.mxu0 0.0
        %3115 = vmatpush1.msra.mxu0 0.0
        %3116 = vmatprep.subr.mxu0 0.0
        %3117 = vmatpush1.msra.mxu0 0.0
        %3118 = vmatprep.subr.mxu0 0.0
        %3119 = vmatpush1.msra.mxu0 0.0
        %3120 = vmatprep.subr.mxu0 0.0
        %3121 = vmatpush1.msra.mxu0 0.0
        %3122 = vmatprep.subr.mxu0 0.0
        %3123 = vmatpush1.msra.mxu0 0.0
        %3124 = vmatprep.subr.mxu0 0.0
        %3125 = vmatpush1.msra.mxu0 0.0
        %3126 = vmatprep.subr.mxu0 0.0
        %3127 = vmatpush1.msra.mxu0 0.0
        %3128 = vmatprep.subr.mxu0 0.0
        %3129 = vmatpush1.msra.mxu0 0.0
        %3130 = vmatprep.subr.mxu0 0.0
        %3131 = vmatpush1.msra.mxu0 0.0
        %3132 = vmatprep.subr.mxu0 0.0
        %3133 = vmatpush1.msra.mxu0 0.0
        %3134 = vmatprep.subr.mxu0 0.0
        %3135 = vmatpush1.msra.mxu0 0.0
        %3136 = vmatprep.subr.mxu0 0.0
        %3137 = vmatpush1.msra.mxu0 0.0
        %3138 = vmatprep.subr.mxu0 0.0
        %3139 = vmatpush1.msra.mxu0 0.0
        %3140 = vmatprep.subr.mxu0 0.0
        %3141 = vmatpush1.msra.mxu0 0.0
        %3142 = vmatprep.subr.mxu0 0.0
        %3143 = vmatpush1.msra.mxu0 0.0
        %3144 = vmatprep.subr.mxu0 0.0
        %3145 = vmatpush1.msra.mxu0 0.0
        %3146 = vmatprep.subr.mxu0 0.0
        %3147 = vmatpush1.msra.mxu0 0.0
        %3148 = vmatprep.subr.mxu0 0.0
        %3149 = vmatpush1.msra.mxu0 0.0
        %3150 = vmatprep.mubr.f32.mxu0 0.0
        %v3151 = vand.u32 %v2854, 4294901760
        %v3152 = vsub.f32 %v2854, %v3151
        %v3153 = vand.u32 %v3152, 4294901760
        %3154 = vmatmul.mubr.f32.gmra.mrb[0].mxu0 %v3153
        %v3155 = vpop.f32.mrb[0].mxu0
        %v3156 = vadd.f32 %v3082, %v3155
        %v3157 = vpop.f32.mrb[0].mxu0
        %3158 = vdwg.mxu0
        %3159 = vmatprep.subr.mxu0 0.0
        %v3160 = vand.u32 %v2857, 4294901760
        %v3161 = vsub.f32 %v2857, %v3160
        %v3162 = vand.u32 %v3161, 4294901760
        %3163 = vmatpush1.msra.mxu0 %v3162
        %3164 = vmatprep.subr.mxu0 0.0
        %3165 = vmatpush1.msra.mxu0 0.0
        %3166 = vmatprep.subr.mxu0 0.0
        %3167 = vmatpush1.msra.mxu0 0.0
        %3168 = vmatprep.subr.mxu0 0.0
        %3169 = vmatpush1.msra.mxu0 0.0
        %3170 = vmatprep.subr.mxu0 0.0
        %3171 = vmatpush1.msra.mxu0 0.0
        %3172 = vmatprep.subr.mxu0 0.0
        %3173 = vmatpush1.msra.mxu0 0.0
        %3174 = vmatprep.subr.mxu0 0.0
        %3175 = vmatpush1.msra.mxu0 0.0
        %3176 = vmatprep.subr.mxu0 0.0
        %3177 = vmatpush1.msra.mxu0 0.0
        %3178 = vmatprep.subr.mxu0 0.0
        %3179 = vmatpush1.msra.mxu0 0.0
        %3180 = vmatprep.subr.mxu0 0.0
        %3181 = vmatpush1.msra.mxu0 0.0
        %3182 = vmatprep.subr.mxu0 0.0
        %3183 = vmatpush1.msra.mxu0 0.0
        %3184 = vmatprep.subr.mxu0 0.0
        %3185 = vmatpush1.msra.mxu0 0.0
        %3186 = vmatprep.subr.mxu0 0.0
        %3187 = vmatpush1.msra.mxu0 0.0
        %3188 = vmatprep.subr.mxu0 0.0
        %3189 = vmatpush1.msra.mxu0 0.0
        %3190 = vmatprep.subr.mxu0 0.0
        %3191 = vmatpush1.msra.mxu0 0.0
        %3192 = vmatprep.subr.mxu0 0.0
        %3193 = vmatpush1.msra.mxu0 0.0
        %3194 = vmatprep.subr.mxu0 0.0
        %3195 = vmatpush1.msra.mxu0 0.0
        %3196 = vmatprep.subr.mxu0 0.0
        %3197 = vmatpush1.msra.mxu0 0.0
        %3198 = vmatprep.subr.mxu0 0.0
        %3199 = vmatpush1.msra.mxu0 0.0
        %3200 = vmatprep.subr.mxu0 0.0
        %3201 = vmatpush1.msra.mxu0 0.0
        %3202 = vmatprep.subr.mxu0 0.0
        %3203 = vmatpush1.msra.mxu0 0.0
        %3204 = vmatprep.subr.mxu0 0.0
        %3205 = vmatpush1.msra.mxu0 0.0
        %3206 = vmatprep.subr.mxu0 0.0
        %3207 = vmatpush1.msra.mxu0 0.0
        %3208 = vmatprep.subr.mxu0 0.0
        %3209 = vmatpush1.msra.mxu0 0.0
        %3210 = vmatprep.subr.mxu0 0.0
        %3211 = vmatpush1.msra.mxu0 0.0
        %3212 = vmatprep.subr.mxu0 0.0
        %3213 = vmatpush1.msra.mxu0 0.0
        %3214 = vmatprep.subr.mxu0 0.0
        %3215 = vmatpush1.msra.mxu0 0.0
        %3216 = vmatprep.subr.mxu0 0.0
        %3217 = vmatpush1.msra.mxu0 0.0
        %3218 = vmatprep.subr.mxu0 0.0
        %3219 = vmatpush1.msra.mxu0 0.0
        %3220 = vmatprep.subr.mxu0 0.0
        %3221 = vmatpush1.msra.mxu0 0.0
        %3222 = vmatprep.subr.mxu0 0.0
        %3223 = vmatpush1.msra.mxu0 0.0
        %3224 = vmatprep.subr.mxu0 0.0
        %3225 = vmatpush1.msra.mxu0 0.0
        %3226 = vmatprep.mubr.f32.mxu0 0.0
        %v3227 = vand.u32 %v2854, 4294901760
        %3228 = vmatmul.mubr.f32.gmra.mrb[0].mxu0 %v3227
        %v3229 = vpop.f32.mrb[0].mxu0
        %v3230 = vadd.f32 %v3156, %v3229
        %v3231 = vpop.f32.mrb[0].mxu0
        %3232 = vdwg.mxu0
        %3233 = vmatprep.subr.mxu0 0.0
        %v3234 = vand.u32 %v2857, 4294901760
        %3235 = vmatpush1.msra.mxu0 %v3234
        %3236 = vmatprep.subr.mxu0 0.0
        %3237 = vmatpush1.msra.mxu0 0.0
        %3238 = vmatprep.subr.mxu0 0.0
        %3239 = vmatpush1.msra.mxu0 0.0
        %3240 = vmatprep.subr.mxu0 0.0
        %3241 = vmatpush1.msra.mxu0 0.0
        %3242 = vmatprep.subr.mxu0 0.0
        %3243 = vmatpush1.msra.mxu0 0.0
        %3244 = vmatprep.subr.mxu0 0.0
        %3245 = vmatpush1.msra.mxu0 0.0
        %3246 = vmatprep.subr.mxu0 0.0
        %3247 = vmatpush1.msra.mxu0 0.0
        %3248 = vmatprep.subr.mxu0 0.0
        %3249 = vmatpush1.msra.mxu0 0.0
        %3250 = vmatprep.subr.mxu0 0.0
        %3251 = vmatpush1.msra.mxu0 0.0
        %3252 = vmatprep.subr.mxu0 0.0
        %3253 = vmatpush1.msra.mxu0 0.0
        %3254 = vmatprep.subr.mxu0 0.0
        %3255 = vmatpush1.msra.mxu0 0.0
        %3256 = vmatprep.subr.mxu0 0.0
        %3257 = vmatpush1.msra.mxu0 0.0
        %3258 = vmatprep.subr.mxu0 0.0
        %3259 = vmatpush1.msra.mxu0 0.0
        %3260 = vmatprep.subr.mxu0 0.0
        %3261 = vmatpush1.msra.mxu0 0.0
        %3262 = vmatprep.subr.mxu0 0.0
        %3263 = vmatpush1.msra.mxu0 0.0
        %3264 = vmatprep.subr.mxu0 0.0
        %3265 = vmatpush1.msra.mxu0 0.0
        %3266 = vmatprep.subr.mxu0 0.0
        %3267 = vmatpush1.msra.mxu0 0.0
        %3268 = vmatprep.subr.mxu0 0.0
        %3269 = vmatpush1.msra.mxu0 0.0
        %3270 = vmatprep.subr.mxu0 0.0
        %3271 = vmatpush1.msra.mxu0 0.0
        %3272 = vmatprep.subr.mxu0 0.0
        %3273 = vmatpush1.msra.mxu0 0.0
        %3274 = vmatprep.subr.mxu0 0.0
        %3275 = vmatpush1.msra.mxu0 0.0
        %3276 = vmatprep.subr.mxu0 0.0
        %3277 = vmatpush1.msra.mxu0 0.0
        %3278 = vmatprep.subr.mxu0 0.0
        %3279 = vmatpush1.msra.mxu0 0.0
        %3280 = vmatprep.subr.mxu0 0.0
        %3281 = vmatpush1.msra.mxu0 0.0
        %3282 = vmatprep.subr.mxu0 0.0
        %3283 = vmatpush1.msra.mxu0 0.0
        %3284 = vmatprep.subr.mxu0 0.0
        %3285 = vmatpush1.msra.mxu0 0.0
        %3286 = vmatprep.subr.mxu0 0.0
        %3287 = vmatpush1.msra.mxu0 0.0
        %3288 = vmatprep.subr.mxu0 0.0
        %3289 = vmatpush1.msra.mxu0 0.0
        %3290 = vmatprep.subr.mxu0 0.0
        %3291 = vmatpush1.msra.mxu0 0.0
        %3292 = vmatprep.subr.mxu0 0.0
        %3293 = vmatpush1.msra.mxu0 0.0
        %3294 = vmatprep.subr.mxu0 0.0
        %3295 = vmatpush1.msra.mxu0 0.0
        %3296 = vmatprep.subr.mxu0 0.0
        %3297 = vmatpush1.msra.mxu0 0.0
        %3298 = vmatprep.mubr.f32.mxu0 0.0
        %v3299 = vand.u32 %v2854, 4294901760
        %3300 = vmatmul.mubr.f32.gmra.mrb[0].mxu0 %v3299
        %v3301 = vpop.f32.mrb[0].mxu0
        %v3302 = vadd.f32 %v3230, %v3301
        %v3303 = vpop.f32.mrb[0].mxu0
        %3304 = vdwg.mxu0
        %3306 = vset.pattern.permute.xlu0 0
        %3307 = vperm.xlu0 %3306, %v3302
        %v3308 = vpop.permute.xlu0 %3307
        %v3310 = vadd.f32 %v2385, %v3308
        %v3311 = vadd.f32 %v2387, %v3308
        %v3312 = vsub.f32 0.0, %v3310
        %v3313 = vsub.f32 0.0, %v3311
        %v3314 = vmul.f32 %v3312, 1.442695
        %v3315 = vpow.pop %v3314
        %v3316 = vmul.f32 %v3313, 1.442695
        %v3317 = vpow.pop %v3316
        %v3318 = vadd.f32 %v3315, 1.0
        %v3319 = vadd.f32 %v3317, 1.0
        %v3320 = vrcp.pop %v3318
        %v3321 = vmul.f32 1.0, %v3320
        %v3322 = vrcp.pop %v3319
        %v3323 = vmul.f32 1.0, %v3322
        %v3324 = vmul.f32 %v1421, %v3321
        %v3325 = vmul.f32 %v1422, %v3323
        %v3328 = vcombine.low %v3324, %v3325
        %v3330 = vadd.f32 %v460, %v3328
        %3331 = vst [vmem:[%s448] sm:$0xff] %v3330
        %s3332 = sand.u32 %s318, 1
        %s3333 = scalar_lea.sflag [#allocation3], %s3332
        %s3334 = sand.u32 %s318, 1
        %s3335 = smul.addr %s3334, 8
        %s3336 = scalar_lea.vmem [#allocation2], %s3335
        // Predicated region
        $region73: #{tpu_custom_call.1} parent=71 // pred_check
          %p3337 = pneg %p328
        $region74: #{tpu_custom_call.1} parent=71 // pred_check_branch
          %3339 = sbr.rel (%p3337) target = $region76
        $region75: #{tpu_custom_call.1} parent=71 // pred_region
          %s3341 = ssub.s32 128, 128
          %3342 = vsyncadd %s3333, %s3341
          %s3343 = smul.addr %s27, 2
          %s3344 = smul.addr %s3343, 64
          %s3345 = scalar_lea.hbm %s13, %s3344
          %s3347 = sshll.u32 %s3336, 4
          %s3348 = int_to_ptr.vmem [resolvable:$true] %s3347
          %3350 = dma.vmem_to_hbm [thread:$0]  %s3348, 128, %s3345, %s3333
        $region76: #{tpu_custom_call.1} parent=71 // pred_fallthru
          _
      $region72: #{tpu_custom_call.1} parent=5 // pred_fallthru
        _
      %p3351 = scmp.le.s32.totalorder 2, %s22
      // Predicated region
      $region77: #{tpu_custom_call.1} parent=5 // pred_check
        %p3352 = pneg %p3351
      $region78: #{tpu_custom_call.1} parent=5 // pred_check_branch
        %3354 = sbr.rel (%p3352) target = $region80
      $region79: #{tpu_custom_call.1} parent=5 // pred_region
        %s3355 = ssub.s32 %s22, 2
        // Predicated region
        $region81: #{tpu_custom_call.1} parent=79 // pred_check
          %p3356 = pneg %p334
        $region82: #{tpu_custom_call.1} parent=79 // pred_check_branch
          %3358 = sbr.rel (%p3356) target = $region84
        $region83: #{tpu_custom_call.1} parent=79 // pred_region
          %s3359 = sand.u32 %s319, 1
          %s3360 = scalar_lea.sflag [#allocation3], %s3359
          %s3361 = sand.u32 %s319, 1
          %s3362 = smul.addr %s3361, 8
          %s3363 = scalar_lea.vmem [#allocation2], %s3362
          %3364 = dma.done %s3360, 128
        $region84: #{tpu_custom_call.1} parent=79 // pred_fallthru
          _
      $region80: #{tpu_custom_call.1} parent=5 // pred_fallthru
        _
    $region6: #{tpu_custom_call.1} parent=1 // loop_footer
      %s26 = sadd.s32 1, %s22
    $region7: #{tpu_custom_call.1} parent=1 // loop_footer_branch
      %21 = sbr.rel target = $region3
    $region8: #{tpu_custom_call.1} parent=1 // loop_exit
      _
    %3365 = vsyncpa [#allocation3], 1
    %s3366 = scalar_lea.sflag [#allocation3], 1
    %3367 = vsyncpa %s3366, 1

</llo_original>
